<compile_context>
chip_gen: v7x
topology: tpu7x:2x2x1
jax: 0.10.0
libtpu: 0.0.40
codegen_flags: <defaults>
</compile_context>

<pallas_src>
import jax
import jax.numpy as jnp
from jax.experimental import pallas as pl
from jax.experimental.pallas import tpu as pltpu


# ------------------------------ fused kernel --------------------------------

def fused_cnn_kernel(p1_ref, w1_ref, b1_ref, w2_ref, b2_ref,
                     fw1_ref, fb1_ref, fw2_ref, fb2_ref,
                     o_ref, y1_s, u_s):
    """One batch tile of the whole network.

    p1_ref : (2, 2, 12, tb, 300) bf16  conv1 im2col, dims (qx, qy, Yp, b, k),
                                       k = (j, kh, kw); pre-pool X = 2*j+qx,
                                       pre-pool Y = 2*Yp+qy.
    w1_ref : (300, 120) bf16           conv1 weight, block-diag over the 12
                                       pooled-x positions j.
    b1_ref : (1, 120) f32              conv1 bias tiled over the 12 positions.
    w2_ref : (5, 200, 80) bf16         per-dy conv2 weight, block-diag over the
                                       4 pooled-x positions (k = (dx, cin)).
    b2_ref : (1, 80) f32               conv2 bias tiled over the 4 positions.
    fw1_ref: (4, 80, 50) bf16          fc1 weight split per pooled row py,
                                       rows = (px, cout) (flatten order folded
                                       in on the host).
    fw2_ref: (50, 128) bf16            fc2 weight, cols zero-padded 10 -> 128.
    fb2_ref: (1, 128) f32              fc2 bias, pad lanes = -1e30.
    o_ref  : (tb, 128) f32             log_softmax logits (first 10 lanes real).
    y1_s   : (12, tb, 120) bf16        pooled conv1 output, lanes = (X, c).
    u_s    : (12, tb, 400) bf16        x-unfolded conv1 output,
                                       lanes = (x%2, x//2, dx, c).
    """
    tb = o_ref.shape[0]
    f32 = jnp.float32

    # ---- conv1: one block-diag matmul per (qx, qy) pool-parity group; the
    #      2x2 max-pool is an elementwise max of the 4 groups.  Bias after the
    #      max is exact (bias constant per channel, relu monotonic). ---------
    def conv1_group(qx, qy):
        lhs = p1_ref[qx, qy].reshape(12 * tb, 300)
        return jnp.dot(lhs, w1_ref[...], preferred_element_type=f32)

    c1 = jnp.maximum(jnp.maximum(conv1_group(0, 0), conv1_group(0, 1)),
                     jnp.maximum(conv1_group(1, 0), conv1_group(1, 1)))
    y1 = jnp.maximum(c1 + b1_ref[...], 0.0)                     # (12*tb, 120)
    y1_s[...] = y1.reshape(12, tb, 120).astype(jnp.bfloat16)

    # ---- conv2: unfold x into lanes once (8 lane-window copies), then
    #      2 parity groups x 5 dy accumulating block-diag matmuls. -----------
    for x in range(8):
        dst = (x % 2) * 200 + (x // 2) * 50
        u_s[:, :, dst:dst + 50] = y1_s[:, :, x * 10:x * 10 + 50]

    z_even = jnp.zeros((8 * tb, 80), f32)                 # conv2 cols x = 2*px
    z_odd = jnp.zeros((8 * tb, 80), f32)                  # conv2 cols x = 2*px+1
    for dy in range(5):
        wdy = w2_ref[dy]                                  # (200, 80)
        z_even = z_even + jnp.dot(
            u_s[dy:dy + 8, :, 0:200].reshape(8 * tb, 200), wdy,
            preferred_element_type=f32)
        z_odd = z_odd + jnp.dot(
            u_s[dy:dy + 8, :, 200:400].reshape(8 * tb, 200), wdy,
            preferred_element_type=f32)

    # TODO(synk): nn.Dropout2d / F.dropout are stochastic; identity (eval mode).
    c2 = jnp.maximum(z_even, z_odd).reshape(8, tb, 80)    # 2x2 max-pool over x

    # ---- pool over y, conv2 bias + relu, flatten+fc1 as 4 accumulating dots.
    h1 = jnp.zeros((tb, 50), f32) + fb1_ref[...]
    for py in range(4):
        r = jnp.maximum(c2[2 * py], c2[2 * py + 1])       # max-pool over y
        r = jnp.maximum(r + b2_ref[...], 0.0)             # conv2 bias + relu
        h1 = h1 + jnp.dot(r.astype(jnp.bfloat16), fw1_ref[py],
                          preferred_element_type=f32)

    # ---- fc1 relu, fc2, stable log_softmax (pad lanes carry -1e30 bias). ----
    h1 = jnp.maximum(h1, 0.0).astype(jnp.bfloat16)
    logits = jnp.dot(h1, fw2_ref[...], preferred_element_type=f32) + fb2_ref[...]
    m = jnp.max(logits, axis=-1, keepdims=True)
    s = logits - m
    o_ref[...] = s - jnp.log(jnp.sum(jnp.exp(s), axis=-1, keepdims=True))


# ------------------------------ wrapper / glue -------------------------------

def cnn_mnist_forward(x, params, tb=None):
    """Equivalent of CNNMNIST.forward in eval mode.  x: (B, 1, 28, 28) f32."""
    w1, b1, w2, b2, fw1, fb1, fw2, fb2 = params
    B = x.shape[0]
    if tb is None:
        # Largest of {8,16,24,32} that keeps >= 2 grid steps once B allows it.
        tb = min(32, max(8, ((B + 15) // 16) * 8))
    Bp = ((B + tb - 1) // tb) * tb

    xb = jnp.pad(x.reshape(B, 28, 28).astype(jnp.float32),
                 ((0, Bp - B), (0, 0), (0, 0)))

    # conv1 im2col: dims (qx, qy, Yp, b, k), k = (j, kh, kw);
    # patch value = x[b, 2*Yp+qy+kh, 2*j+qx+kw].
    yp, qy, kh = jnp.arange(12), jnp.arange(2), jnp.arange(5)
    row_idx = 2 * yp[None, :, None] + qy[:, None, None] + kh[None, None, :]
    xr = xb[:, row_idx, :]                                 # (Bp, qy, Yp, kh, 28)
    jx, qx, kw = jnp.arange(12), jnp.arange(2), jnp.arange(5)
    col_idx = 2 * jx[None, :, None] + qx[:, None, None] + kw[None, None, :]
    pt = xr[:, :, :, :, col_idx]                           # (Bp,qy,Yp,kh,qx,j,kw)
    pt = pt.transpose(4, 1, 2, 0, 5, 3, 6)                 # (qx,qy,Yp,b,j,kh,kw)
    p1 = pt.reshape(2, 2, 12, Bp, 300).astype(jnp.bfloat16)

    # Weight / bias re-layouts (tiny; block-diagonal packing done host-side).
    w1m = w1.reshape(10, 25).T                             # (25, 10), rows=(kh,kw)
    w1bd = jnp.einsum('ab,ij->aibj', jnp.eye(12, dtype=jnp.float32),
                      w1m).reshape(300, 120).astype(jnp.bfloat16)
    b1t = jnp.tile(b1, 12).reshape(1, 120).astype(jnp.float32)

    w2m = w2.transpose(2, 3, 1, 0).reshape(5, 50, 20)      # (dy, (dx,cin), cout)
    w2g = jnp.einsum('ab,dij->daibj', jnp.eye(4, dtype=jnp.float32),
                     w2m).reshape(5, 200, 80).astype(jnp.bfloat16)
    b2t = jnp.tile(b2, 4).reshape(1, 80).astype(jnp.float32)

    fw1m = (fw1.reshape(50, 20, 4, 4).transpose(2, 3, 1, 0)   # (py, px, cout, 50)
               .reshape(4, 80, 50).astype(jnp.bfloat16))
    fb1m = fb1.reshape(1, 50).astype(jnp.float32)
    fw2m = jnp.pad(fw2.T, ((0, 0), (0, 118))).astype(jnp.bfloat16)   # (50, 128)
    fb2m = jnp.pad(fb2.reshape(1, 10).astype(jnp.float32),
                   ((0, 0), (0, 118)), constant_values=-1e30)        # (1, 128)

    grid = (Bp // tb,)
    out = pl.pallas_call(
        fused_cnn_kernel,
        out_shape=jax.ShapeDtypeStruct((Bp, 128), jnp.float32),
        grid_spec=pltpu.PrefetchScalarGridSpec(
            num_scalar_prefetch=0,
            grid=grid,
            in_specs=[
                pl.BlockSpec((2, 2, 12, tb, 300), lambda i: (0, 0, 0, i, 0)),
                pl.BlockSpec((300, 120), lambda i: (0, 0)),
                pl.BlockSpec((1, 120), lambda i: (0, 0)),
                pl.BlockSpec((5, 200, 80), lambda i: (0, 0, 0)),
                pl.BlockSpec((1, 80), lambda i: (0, 0)),
                pl.BlockSpec((4, 80, 50), lambda i: (0, 0, 0)),
                pl.BlockSpec((1, 50), lambda i: (0, 0)),
                pl.BlockSpec((50, 128), lambda i: (0, 0)),
                pl.BlockSpec((1, 128), lambda i: (0, 0)),
            ],
            out_specs=pl.BlockSpec((tb, 128), lambda i: (i, 0)),
            scratch_shapes=[
                pltpu.VMEM((12, tb, 120), jnp.bfloat16),   # pooled conv1 output
                pltpu.VMEM((12, tb, 400), jnp.bfloat16),   # x-unfolded conv1 out
            ]),
        compiler_params=pltpu.CompilerParams(
            dimension_semantics=("parallel",),
            vmem_limit_bytes=32 * 1024 * 1024),
    )(p1, w1bd, b1t, w2g, b2t, fw1m, fb1m, fw2m, fb2m)

    return out[:B, :10]


# --------------------------- reference / params / main -----------------------

def reference_forward(x, params):
    """Pure-JAX f32 reference of CNNMNIST.forward (eval mode)."""
    w1, b1, w2, b2, fw1, fb1, fw2, fb2 = params
    dn = ('NCHW', 'OIHW', 'NCHW')
    y = jax.lax.conv_general_dilated(x, w1, (1, 1), 'VALID', dimension_numbers=dn)
    y = y + b1[None, :, None, None]
    y = jax.lax.reduce_window(y, -jnp.inf, jax.lax.max,
                              (1, 1, 2, 2), (1, 1, 2, 2), 'VALID')
    y = jnp.maximum(y, 0.0)
    y = jax.lax.conv_general_dilated(y, w2, (1, 1), 'VALID', dimension_numbers=dn)
    y = y + b2[None, :, None, None]
    y = jax.lax.reduce_window(y, -jnp.inf, jax.lax.max,
                              (1, 1, 2, 2), (1, 1, 2, 2), 'VALID')
    y = jnp.maximum(y, 0.0)
    y = y.reshape(y.shape[0], -1)
    y = jnp.maximum(y @ fw1.T + fb1, 0.0)
    y = y @ fw2.T + fb2
    return jax.nn.log_softmax(y, axis=1)


def init_params(key):
    ks = jax.random.split(key, 8)

    def u(k, shape, fan_in):
        bound = 1.0 / float(fan_in) ** 0.5
        return jax.random.uniform(k, shape, jnp.float32, -bound, bound)

    w1 = u(ks[0], (10, 1, 5, 5), 1 * 5 * 5)
    b1 = u(ks[1], (10,), 1 * 5 * 5)
    w2 = u(ks[2], (20, 10, 5, 5), 10 * 5 * 5)
    b2 = u(ks[3], (20,), 10 * 5 * 5)
    fw1 = u(ks[4], (50, 320), 320)
    fb1 = u(ks[5], (50,), 320)
    fw2 = u(ks[6], (10, 50), 50)
    fb2 = u(ks[7], (10,), 50)
    return (w1, b1, w2, b2, fw1, fb1, fw2, fb2)


if __name__ == "__main__":
    key = jax.random.PRNGKey(0)
    pkey, xkey = jax.random.split(key)
    params = init_params(pkey)

    # MNIST-shaped input (fc1 = Linear(320, 50) implies 1x28x28); batch=2.
    x = jax.random.normal(xkey, (2, 1, 28, 28), jnp.float32)

    fwd = jax.jit(lambda xx: cnn_mnist_forward(xx, params))
    out = jax.block_until_ready(fwd(x))
    assert out.shape == (2, 10), out.shape

    # log_softmax sanity: rows of exp(out) sum to 1.
    row_sums = jnp.exp(out).sum(axis=1)
    assert bool(jnp.all(jnp.abs(row_sums - 1.0) < 1e-3)), row_sums

    # Numerical check against a pure-JAX f32 reference (kernel uses bf16 MXU
    # inputs, so allow a loose tolerance).
    ref = reference_forward(x, params)
    max_err = float(jnp.max(jnp.abs(out - ref)))
    assert max_err < 0.1, max_err

    print("KERNEL_OK")
</pallas_src>

<mosaic_0001>
module attributes {stable_mosaic.version = 11 : i64} {
  func.func @fused_cnn_kernel(%arg0: i32, %arg1: memref<2x2x12x8x300xbf16, #tpu.memory_space<vmem>>, %arg2: memref<300x120xbf16, #tpu.memory_space<vmem>>, %arg3: memref<1x120xf32, #tpu.memory_space<vmem>>, %arg4: memref<5x200x80xbf16, #tpu.memory_space<vmem>>, %arg5: memref<1x80xf32, #tpu.memory_space<vmem>>, %arg6: memref<4x80x50xbf16, #tpu.memory_space<vmem>>, %arg7: memref<1x50xf32, #tpu.memory_space<vmem>>, %arg8: memref<50x128xbf16, #tpu.memory_space<vmem>>, %arg9: memref<1x128xf32, #tpu.memory_space<vmem>>, %arg10: memref<8x128xf32, #tpu.memory_space<vmem>>, %arg11: memref<12x8x120xbf16, #tpu.memory_space<vmem>>, %arg12: memref<12x8x400xbf16, #tpu.memory_space<vmem>>) attributes {dimension_semantics = [#tpu.dimension_semantics<parallel>], iteration_bounds = array<i64: 1>, scalar_prefetch = 0 : i64, scratch_operands = 2 : i64, tpu.core_type = #tpu.core_type<tc>, window_params = [{transform_indices = @transform_0, window_bounds = array<i64: 2, 2, 12, 8, 300>}, {pipeline_mode = #tpu.pipeline_mode<synchronous>, transform_indices = @transform_1, window_bounds = array<i64: 300, 120>}, {pipeline_mode = #tpu.pipeline_mode<synchronous>, transform_indices = @transform_2, window_bounds = array<i64: 1, 120>}, {pipeline_mode = #tpu.pipeline_mode<synchronous>, transform_indices = @transform_3, window_bounds = array<i64: 5, 200, 80>}, {pipeline_mode = #tpu.pipeline_mode<synchronous>, transform_indices = @transform_4, window_bounds = array<i64: 1, 80>}, {pipeline_mode = #tpu.pipeline_mode<synchronous>, transform_indices = @transform_5, window_bounds = array<i64: 4, 80, 50>}, {pipeline_mode = #tpu.pipeline_mode<synchronous>, transform_indices = @transform_6, window_bounds = array<i64: 1, 50>}, {pipeline_mode = #tpu.pipeline_mode<synchronous>, transform_indices = @transform_7, window_bounds = array<i64: 50, 128>}, {pipeline_mode = #tpu.pipeline_mode<synchronous>, transform_indices = @transform_8, window_bounds = array<i64: 1, 128>}, {transform_indices = @transform_9, window_bounds = array<i64: 8, 128>}]} {
    %c0 = arith.constant 0 : index
    %c0_0 = arith.constant 0 : index
    %c0_1 = arith.constant 0 : index
    %c0_2 = arith.constant 0 : index
    %c0_3 = arith.constant 0 : index
    %0 = vector.load %arg1[%c0, %c0_0, %c0_1, %c0_2, %c0_3] : memref<2x2x12x8x300xbf16, #tpu.memory_space<vmem>>, vector<1x1x12x8x300xbf16>
    %1 = vector.shape_cast %0 : vector<1x1x12x8x300xbf16> to vector<12x8x300xbf16>
    %2 = vector.shape_cast %1 : vector<12x8x300xbf16> to vector<96x300xbf16>
    %c0_4 = arith.constant 0 : index
    %c0_5 = arith.constant 0 : index
    %3 = vector.load %arg2[%c0_4, %c0_5] : memref<300x120xbf16, #tpu.memory_space<vmem>>, vector<300x120xbf16>
    %cst = arith.constant dense<0.000000e+00> : vector<96x120xf32>
    %4 = tpu.matmul %2, %3, %cst {dimension_numbers = #tpu.dot_dimension_numbers<[1], [0], [0], [1], [0, 0, 1, 1], [], []>} : vector<96x300xbf16>, vector<300x120xbf16>, vector<96x120xf32> -> vector<96x120xf32>
    %c0_6 = arith.constant 0 : index
    %c1 = arith.constant 1 : index
    %c0_7 = arith.constant 0 : index
    %c0_8 = arith.constant 0 : index
    %c0_9 = arith.constant 0 : index
    %5 = vector.load %arg1[%c0_6, %c1, %c0_7, %c0_8, %c0_9] : memref<2x2x12x8x300xbf16, #tpu.memory_space<vmem>>, vector<1x1x12x8x300xbf16>
    %6 = vector.shape_cast %5 : vector<1x1x12x8x300xbf16> to vector<12x8x300xbf16>
    %7 = vector.shape_cast %6 : vector<12x8x300xbf16> to vector<96x300xbf16>
    %c0_10 = arith.constant 0 : index
    %c0_11 = arith.constant 0 : index
    %8 = vector.load %arg2[%c0_10, %c0_11] : memref<300x120xbf16, #tpu.memory_space<vmem>>, vector<300x120xbf16>
    %cst_12 = arith.constant dense<0.000000e+00> : vector<96x120xf32>
    %9 = tpu.matmul %7, %8, %cst_12 {dimension_numbers = #tpu.dot_dimension_numbers<[1], [0], [0], [1], [0, 0, 1, 1], [], []>} : vector<96x300xbf16>, vector<300x120xbf16>, vector<96x120xf32> -> vector<96x120xf32>
    %10 = arith.maximumf %4, %9 : vector<96x120xf32>
    %c1_13 = arith.constant 1 : index
    %c0_14 = arith.constant 0 : index
    %c0_15 = arith.constant 0 : index
    %c0_16 = arith.constant 0 : index
    %c0_17 = arith.constant 0 : index
    %11 = vector.load %arg1[%c1_13, %c0_14, %c0_15, %c0_16, %c0_17] : memref<2x2x12x8x300xbf16, #tpu.memory_space<vmem>>, vector<1x1x12x8x300xbf16>
    %12 = vector.shape_cast %11 : vector<1x1x12x8x300xbf16> to vector<12x8x300xbf16>
    %13 = vector.shape_cast %12 : vector<12x8x300xbf16> to vector<96x300xbf16>
    %c0_18 = arith.constant 0 : index
    %c0_19 = arith.constant 0 : index
    %14 = vector.load %arg2[%c0_18, %c0_19] : memref<300x120xbf16, #tpu.memory_space<vmem>>, vector<300x120xbf16>
    %cst_20 = arith.constant dense<0.000000e+00> : vector<96x120xf32>
    %15 = tpu.matmul %13, %14, %cst_20 {dimension_numbers = #tpu.dot_dimension_numbers<[1], [0], [0], [1], [0, 0, 1, 1], [], []>} : vector<96x300xbf16>, vector<300x120xbf16>, vector<96x120xf32> -> vector<96x120xf32>
    %c1_21 = arith.constant 1 : index
    %c1_22 = arith.constant 1 : index
    %c0_23 = arith.constant 0 : index
    %c0_24 = arith.constant 0 : index
    %c0_25 = arith.constant 0 : index
    %16 = vector.load %arg1[%c1_21, %c1_22, %c0_23, %c0_24, %c0_25] : memref<2x2x12x8x300xbf16, #tpu.memory_space<vmem>>, vector<1x1x12x8x300xbf16>
    %17 = vector.shape_cast %16 : vector<1x1x12x8x300xbf16> to vector<12x8x300xbf16>
    %18 = vector.shape_cast %17 : vector<12x8x300xbf16> to vector<96x300xbf16>
    %c0_26 = arith.constant 0 : index
    %c0_27 = arith.constant 0 : index
    %19 = vector.load %arg2[%c0_26, %c0_27] : memref<300x120xbf16, #tpu.memory_space<vmem>>, vector<300x120xbf16>
    %cst_28 = arith.constant dense<0.000000e+00> : vector<96x120xf32>
    %20 = tpu.matmul %18, %19, %cst_28 {dimension_numbers = #tpu.dot_dimension_numbers<[1], [0], [0], [1], [0, 0, 1, 1], [], []>} : vector<96x300xbf16>, vector<300x120xbf16>, vector<96x120xf32> -> vector<96x120xf32>
    %21 = arith.maximumf %15, %20 : vector<96x120xf32>
    %22 = arith.maximumf %10, %21 : vector<96x120xf32>
    %c0_29 = arith.constant 0 : index
    %c0_30 = arith.constant 0 : index
    %23 = vector.load %arg3[%c0_29, %c0_30] : memref<1x120xf32, #tpu.memory_space<vmem>>, vector<1x120xf32>
    %24 = vector.broadcast %23 : vector<1x120xf32> to vector<96x120xf32>
    %25 = arith.addf %22, %24 : vector<96x120xf32>
    %cst_31 = arith.constant 0.000000e+00 : f32
    %26 = vector.broadcast %cst_31 : f32 to vector<96x120xf32>
    %27 = arith.maximumf %25, %26 : vector<96x120xf32>
    %28 = vector.shape_cast %27 : vector<96x120xf32> to vector<12x8x120xf32>
    %29 = arith.truncf %28 : vector<12x8x120xf32> to vector<12x8x120xbf16>
    %c0_32 = arith.constant 0 : index
    %c0_33 = arith.constant 0 : index
    %c0_34 = arith.constant 0 : index
    %30 = vector.load %arg11[%c0_32, %c0_33, %c0_34] : memref<12x8x120xbf16, #tpu.memory_space<vmem>>, vector<12x8x120xbf16>
    tpu.vector_store %arg11[%c0_32, %c0_33, %c0_34], %29 {strides = array<i32>} : memref<12x8x120xbf16, #tpu.memory_space<vmem>>, vector<12x8x120xbf16>,
    %c0_35 = arith.constant 0 : index
    %c0_36 = arith.constant 0 : index
    %c0_37 = arith.constant 0 : index
    %31 = vector.load %arg11[%c0_35, %c0_36, %c0_37] : memref<12x8x120xbf16, #tpu.memory_space<vmem>>, vector<12x8x50xbf16>
    %c0_38 = arith.constant 0 : index
    %c0_39 = arith.constant 0 : index
    %c0_40 = arith.constant 0 : index
    %32 = vector.load %arg12[%c0_38, %c0_39, %c0_40] : memref<12x8x400xbf16, #tpu.memory_space<vmem>>, vector<12x8x50xbf16>
    tpu.vector_store %arg12[%c0_38, %c0_39, %c0_40], %31 {strides = array<i32>} : memref<12x8x400xbf16, #tpu.memory_space<vmem>>, vector<12x8x50xbf16>,
    %c0_41 = arith.constant 0 : index
    %c0_42 = arith.constant 0 : index
    %c10 = arith.constant 10 : index
    %33 = vector.load %arg11[%c0_41, %c0_42, %c10] : memref<12x8x120xbf16, #tpu.memory_space<vmem>>, vector<12x8x50xbf16>
    %c0_43 = arith.constant 0 : index
    %c0_44 = arith.constant 0 : index
    %c200 = arith.constant 200 : index
    %34 = vector.load %arg12[%c0_43, %c0_44, %c200] : memref<12x8x400xbf16, #tpu.memory_space<vmem>>, vector<12x8x50xbf16>
    tpu.vector_store %arg12[%c0_43, %c0_44, %c200], %33 {strides = array<i32>} : memref<12x8x400xbf16, #tpu.memory_space<vmem>>, vector<12x8x50xbf16>,
    %c0_45 = arith.constant 0 : index
    %c0_46 = arith.constant 0 : index
    %c20 = arith.constant 20 : index
    %35 = vector.load %arg11[%c0_45, %c0_46, %c20] : memref<12x8x120xbf16, #tpu.memory_space<vmem>>, vector<12x8x50xbf16>
    %c0_47 = arith.constant 0 : index
    %c0_48 = arith.constant 0 : index
    %c50 = arith.constant 50 : index
    %36 = vector.load %arg12[%c0_47, %c0_48, %c50] : memref<12x8x400xbf16, #tpu.memory_space<vmem>>, vector<12x8x50xbf16>
    tpu.vector_store %arg12[%c0_47, %c0_48, %c50], %35 {strides = array<i32>} : memref<12x8x400xbf16, #tpu.memory_space<vmem>>, vector<12x8x50xbf16>,
    %c0_49 = arith.constant 0 : index
    %c0_50 = arith.constant 0 : index
    %c30 = arith.constant 30 : index
    %37 = vector.load %arg11[%c0_49, %c0_50, %c30] : memref<12x8x120xbf16, #tpu.memory_space<vmem>>, vector<12x8x50xbf16>
    %c0_51 = arith.constant 0 : index
    %c0_52 = arith.constant 0 : index
    %c250 = arith.constant 250 : index
    %38 = vector.load %arg12[%c0_51, %c0_52, %c250] : memref<12x8x400xbf16, #tpu.memory_space<vmem>>, vector<12x8x50xbf16>
    tpu.vector_store %arg12[%c0_51, %c0_52, %c250], %37 {strides = array<i32>} : memref<12x8x400xbf16, #tpu.memory_space<vmem>>, vector<12x8x50xbf16>,
    %c0_53 = arith.constant 0 : index
    %c0_54 = arith.constant 0 : index
    %c40 = arith.constant 40 : index
    %39 = vector.load %arg11[%c0_53, %c0_54, %c40] : memref<12x8x120xbf16, #tpu.memory_space<vmem>>, vector<12x8x50xbf16>
    %c0_55 = arith.constant 0 : index
    %c0_56 = arith.constant 0 : index
    %c100 = arith.constant 100 : index
    %40 = vector.load %arg12[%c0_55, %c0_56, %c100] : memref<12x8x400xbf16, #tpu.memory_space<vmem>>, vector<12x8x50xbf16>
    tpu.vector_store %arg12[%c0_55, %c0_56, %c100], %39 {strides = array<i32>} : memref<12x8x400xbf16, #tpu.memory_space<vmem>>, vector<12x8x50xbf16>,
    %c0_57 = arith.constant 0 : index
    %c0_58 = arith.constant 0 : index
    %c50_59 = arith.constant 50 : index
    %41 = vector.load %arg11[%c0_57, %c0_58, %c50_59] : memref<12x8x120xbf16, #tpu.memory_space<vmem>>, vector<12x8x50xbf16>
    %c0_60 = arith.constant 0 : index
    %c0_61 = arith.constant 0 : index
    %c300 = arith.constant 300 : index
    %42 = vector.load %arg12[%c0_60, %c0_61, %c300] : memref<12x8x400xbf16, #tpu.memory_space<vmem>>, vector<12x8x50xbf16>
    tpu.vector_store %arg12[%c0_60, %c0_61, %c300], %41 {strides = array<i32>} : memref<12x8x400xbf16, #tpu.memory_space<vmem>>, vector<12x8x50xbf16>,
    %c0_62 = arith.constant 0 : index
    %c0_63 = arith.constant 0 : index
    %c60 = arith.constant 60 : index
    %43 = vector.load %arg11[%c0_62, %c0_63, %c60] : memref<12x8x120xbf16, #tpu.memory_space<vmem>>, vector<12x8x50xbf16>
    %c0_64 = arith.constant 0 : index
    %c0_65 = arith.constant 0 : index
    %c150 = arith.constant 150 : index
    %44 = vector.load %arg12[%c0_64, %c0_65, %c150] : memref<12x8x400xbf16, #tpu.memory_space<vmem>>, vector<12x8x50xbf16>
    tpu.vector_store %arg12[%c0_64, %c0_65, %c150], %43 {strides = array<i32>} : memref<12x8x400xbf16, #tpu.memory_space<vmem>>, vector<12x8x50xbf16>,
    %c0_66 = arith.constant 0 : index
    %c0_67 = arith.constant 0 : index
    %c70 = arith.constant 70 : index
    %45 = vector.load %arg11[%c0_66, %c0_67, %c70] : memref<12x8x120xbf16, #tpu.memory_space<vmem>>, vector<12x8x50xbf16>
    %c0_68 = arith.constant 0 : index
    %c0_69 = arith.constant 0 : index
    %c350 = arith.constant 350 : index
    %46 = vector.load %arg12[%c0_68, %c0_69, %c350] : memref<12x8x400xbf16, #tpu.memory_space<vmem>>, vector<12x8x50xbf16>
    tpu.vector_store %arg12[%c0_68, %c0_69, %c350], %45 {strides = array<i32>} : memref<12x8x400xbf16, #tpu.memory_space<vmem>>, vector<12x8x50xbf16>,
    %cst_70 = arith.constant 0.000000e+00 : f32
    %47 = vector.broadcast %cst_70 : f32 to vector<64x80xf32>
    %cst_71 = arith.constant 0.000000e+00 : f32
    %48 = vector.broadcast %cst_71 : f32 to vector<64x80xf32>
    %c0_72 = arith.constant 0 : index
    %c0_73 = arith.constant 0 : index
    %c0_74 = arith.constant 0 : index
    %49 = vector.load %arg4[%c0_72, %c0_73, %c0_74] : memref<5x200x80xbf16, #tpu.memory_space<vmem>>, vector<1x200x80xbf16>
    %50 = vector.shape_cast %49 : vector<1x200x80xbf16> to vector<200x80xbf16>
    %c0_75 = arith.constant 0 : index
    %c0_76 = arith.constant 0 : index
    %c0_77 = arith.constant 0 : index
    %51 = vector.load %arg12[%c0_75, %c0_76, %c0_77] : memref<12x8x400xbf16, #tpu.memory_space<vmem>>, vector<8x8x200xbf16>
    %52 = vector.shape_cast %51 : vector<8x8x200xbf16> to vector<64x200xbf16>
    %cst_78 = arith.constant dense<0.000000e+00> : vector<64x80xf32>
    %53 = tpu.matmul %52, %50, %cst_78 {dimension_numbers = #tpu.dot_dimension_numbers<[1], [0], [0], [1], [0, 0, 1, 1], [], []>} : vector<64x200xbf16>, vector<200x80xbf16>, vector<64x80xf32> -> vector<64x80xf32>
    %54 = arith.addf %47, %53 : vector<64x80xf32>
    %c0_79 = arith.constant 0 : index
    %c0_80 = arith.constant 0 : index
    %c200_81 = arith.constant 200 : index
    %55 = vector.load %arg12[%c0_79, %c0_80, %c200_81] : memref<12x8x400xbf16, #tpu.memory_space<vmem>>, vector<8x8x200xbf16>
    %56 = vector.shape_cast %55 : vector<8x8x200xbf16> to vector<64x200xbf16>
    %cst_82 = arith.constant dense<0.000000e+00> : vector<64x80xf32>
    %57 = tpu.matmul %56, %50, %cst_82 {dimension_numbers = #tpu.dot_dimension_numbers<[1], [0], [0], [1], [0, 0, 1, 1], [], []>} : vector<64x200xbf16>, vector<200x80xbf16>, vector<64x80xf32> -> vector<64x80xf32>
    %58 = arith.addf %48, %57 : vector<64x80xf32>
    %c1_83 = arith.constant 1 : index
    %c0_84 = arith.constant 0 : index
    %c0_85 = arith.constant 0 : index
    %59 = vector.load %arg4[%c1_83, %c0_84, %c0_85] : memref<5x200x80xbf16, #tpu.memory_space<vmem>>, vector<1x200x80xbf16>
    %60 = vector.shape_cast %59 : vector<1x200x80xbf16> to vector<200x80xbf16>
    %c1_86 = arith.constant 1 : index
    %c0_87 = arith.constant 0 : index
    %c0_88 = arith.constant 0 : index
    %61 = vector.load %arg12[%c1_86, %c0_87, %c0_88] : memref<12x8x400xbf16, #tpu.memory_space<vmem>>, vector<8x8x200xbf16>
    %62 = vector.shape_cast %61 : vector<8x8x200xbf16> to vector<64x200xbf16>
    %cst_89 = arith.constant dense<0.000000e+00> : vector<64x80xf32>
    %63 = tpu.matmul %62, %60, %cst_89 {dimension_numbers = #tpu.dot_dimension_numbers<[1], [0], [0], [1], [0, 0, 1, 1], [], []>} : vector<64x200xbf16>, vector<200x80xbf16>, vector<64x80xf32> -> vector<64x80xf32>
    %64 = arith.addf %54, %63 : vector<64x80xf32>
    %c1_90 = arith.constant 1 : index
    %c0_91 = arith.constant 0 : index
    %c200_92 = arith.constant 200 : index
    %65 = vector.load %arg12[%c1_90, %c0_91, %c200_92] : memref<12x8x400xbf16, #tpu.memory_space<vmem>>, vector<8x8x200xbf16>
    %66 = vector.shape_cast %65 : vector<8x8x200xbf16> to vector<64x200xbf16>
    %cst_93 = arith.constant dense<0.000000e+00> : vector<64x80xf32>
    %67 = tpu.matmul %66, %60, %cst_93 {dimension_numbers = #tpu.dot_dimension_numbers<[1], [0], [0], [1], [0, 0, 1, 1], [], []>} : vector<64x200xbf16>, vector<200x80xbf16>, vector<64x80xf32> -> vector<64x80xf32>
    %68 = arith.addf %58, %67 : vector<64x80xf32>
    %c2 = arith.constant 2 : index
    %c0_94 = arith.constant 0 : index
    %c0_95 = arith.constant 0 : index
    %69 = vector.load %arg4[%c2, %c0_94, %c0_95] : memref<5x200x80xbf16, #tpu.memory_space<vmem>>, vector<1x200x80xbf16>
    %70 = vector.shape_cast %69 : vector<1x200x80xbf16> to vector<200x80xbf16>
    %c2_96 = arith.constant 2 : index
    %c0_97 = arith.constant 0 : index
    %c0_98 = arith.constant 0 : index
    %71 = vector.load %arg12[%c2_96, %c0_97, %c0_98] : memref<12x8x400xbf16, #tpu.memory_space<vmem>>, vector<8x8x200xbf16>
    %72 = vector.shape_cast %71 : vector<8x8x200xbf16> to vector<64x200xbf16>
    %cst_99 = arith.constant dense<0.000000e+00> : vector<64x80xf32>
    %73 = tpu.matmul %72, %70, %cst_99 {dimension_numbers = #tpu.dot_dimension_numbers<[1], [0], [0], [1], [0, 0, 1, 1], [], []>} : vector<64x200xbf16>, vector<200x80xbf16>, vector<64x80xf32> -> vector<64x80xf32>
    %74 = arith.addf %64, %73 : vector<64x80xf32>
    %c2_100 = arith.constant 2 : index
    %c0_101 = arith.constant 0 : index
    %c200_102 = arith.constant 200 : index
    %75 = vector.load %arg12[%c2_100, %c0_101, %c200_102] : memref<12x8x400xbf16, #tpu.memory_space<vmem>>, vector<8x8x200xbf16>
    %76 = vector.shape_cast %75 : vector<8x8x200xbf16> to vector<64x200xbf16>
    %cst_103 = arith.constant dense<0.000000e+00> : vector<64x80xf32>
    %77 = tpu.matmul %76, %70, %cst_103 {dimension_numbers = #tpu.dot_dimension_numbers<[1], [0], [0], [1], [0, 0, 1, 1], [], []>} : vector<64x200xbf16>, vector<200x80xbf16>, vector<64x80xf32> -> vector<64x80xf32>
    %78 = arith.addf %68, %77 : vector<64x80xf32>
    %c3 = arith.constant 3 : index
    %c0_104 = arith.constant 0 : index
    %c0_105 = arith.constant 0 : index
    %79 = vector.load %arg4[%c3, %c0_104, %c0_105] : memref<5x200x80xbf16, #tpu.memory_space<vmem>>, vector<1x200x80xbf16>
    %80 = vector.shape_cast %79 : vector<1x200x80xbf16> to vector<200x80xbf16>
    %c3_106 = arith.constant 3 : index
    %c0_107 = arith.constant 0 : index
    %c0_108 = arith.constant 0 : index
    %81 = vector.load %arg12[%c3_106, %c0_107, %c0_108] : memref<12x8x400xbf16, #tpu.memory_space<vmem>>, vector<8x8x200xbf16>
    %82 = vector.shape_cast %81 : vector<8x8x200xbf16> to vector<64x200xbf16>
    %cst_109 = arith.constant dense<0.000000e+00> : vector<64x80xf32>
    %83 = tpu.matmul %82, %80, %cst_109 {dimension_numbers = #tpu.dot_dimension_numbers<[1], [0], [0], [1], [0, 0, 1, 1], [], []>} : vector<64x200xbf16>, vector<200x80xbf16>, vector<64x80xf32> -> vector<64x80xf32>
    %84 = arith.addf %74, %83 : vector<64x80xf32>
    %c3_110 = arith.constant 3 : index
    %c0_111 = arith.constant 0 : index
    %c200_112 = arith.constant 200 : index
    %85 = vector.load %arg12[%c3_110, %c0_111, %c200_112] : memref<12x8x400xbf16, #tpu.memory_space<vmem>>, vector<8x8x200xbf16>
    %86 = vector.shape_cast %85 : vector<8x8x200xbf16> to vector<64x200xbf16>
    %cst_113 = arith.constant dense<0.000000e+00> : vector<64x80xf32>
    %87 = tpu.matmul %86, %80, %cst_113 {dimension_numbers = #tpu.dot_dimension_numbers<[1], [0], [0], [1], [0, 0, 1, 1], [], []>} : vector<64x200xbf16>, vector<200x80xbf16>, vector<64x80xf32> -> vector<64x80xf32>
    %88 = arith.addf %78, %87 : vector<64x80xf32>
    %c4 = arith.constant 4 : index
    %c0_114 = arith.constant 0 : index
    %c0_115 = arith.constant 0 : index
    %89 = vector.load %arg4[%c4, %c0_114, %c0_115] : memref<5x200x80xbf16, #tpu.memory_space<vmem>>, vector<1x200x80xbf16>
    %90 = vector.shape_cast %89 : vector<1x200x80xbf16> to vector<200x80xbf16>
    %c4_116 = arith.constant 4 : index
    %c0_117 = arith.constant 0 : index
    %c0_118 = arith.constant 0 : index
    %91 = vector.load %arg12[%c4_116, %c0_117, %c0_118] : memref<12x8x400xbf16, #tpu.memory_space<vmem>>, vector<8x8x200xbf16>
    %92 = vector.shape_cast %91 : vector<8x8x200xbf16> to vector<64x200xbf16>
    %cst_119 = arith.constant dense<0.000000e+00> : vector<64x80xf32>
    %93 = tpu.matmul %92, %90, %cst_119 {dimension_numbers = #tpu.dot_dimension_numbers<[1], [0], [0], [1], [0, 0, 1, 1], [], []>} : vector<64x200xbf16>, vector<200x80xbf16>, vector<64x80xf32> -> vector<64x80xf32>
    %94 = arith.addf %84, %93 : vector<64x80xf32>
    %c4_120 = arith.constant 4 : index
    %c0_121 = arith.constant 0 : index
    %c200_122 = arith.constant 200 : index
    %95 = vector.load %arg12[%c4_120, %c0_121, %c200_122] : memref<12x8x400xbf16, #tpu.memory_space<vmem>>, vector<8x8x200xbf16>
    %96 = vector.shape_cast %95 : vector<8x8x200xbf16> to vector<64x200xbf16>
    %cst_123 = arith.constant dense<0.000000e+00> : vector<64x80xf32>
    %97 = tpu.matmul %96, %90, %cst_123 {dimension_numbers = #tpu.dot_dimension_numbers<[1], [0], [0], [1], [0, 0, 1, 1], [], []>} : vector<64x200xbf16>, vector<200x80xbf16>, vector<64x80xf32> -> vector<64x80xf32>
    %98 = arith.addf %88, %97 : vector<64x80xf32>
    %99 = arith.maximumf %94, %98 : vector<64x80xf32>
    %100 = vector.shape_cast %99 : vector<64x80xf32> to vector<8x8x80xf32>
    %cst_124 = arith.constant 0.000000e+00 : f32
    %101 = vector.broadcast %cst_124 : f32 to vector<8x50xf32>
    %c0_125 = arith.constant 0 : index
    %c0_126 = arith.constant 0 : index
    %102 = vector.load %arg7[%c0_125, %c0_126] : memref<1x50xf32, #tpu.memory_space<vmem>>, vector<1x50xf32>
    %103 = vector.broadcast %102 : vector<1x50xf32> to vector<8x50xf32>
    %104 = arith.addf %101, %103 : vector<8x50xf32>
    %105 = vector.extract_strided_slice %100 {offsets = [0, 0, 0], sizes = [1, 8, 80], strides = [1, 1, 1]} : vector<8x8x80xf32> to vector<1x8x80xf32>
    %106 = vector.shape_cast %105 : vector<1x8x80xf32> to vector<8x80xf32>
    %107 = vector.extract_strided_slice %100 {offsets = [1, 0, 0], sizes = [1, 8, 80], strides = [1, 1, 1]} : vector<8x8x80xf32> to vector<1x8x80xf32>
    %108 = vector.shape_cast %107 : vector<1x8x80xf32> to vector<8x80xf32>
    %109 = arith.maximumf %106, %108 : vector<8x80xf32>
    %c0_127 = arith.constant 0 : index
    %c0_128 = arith.constant 0 : index
    %110 = vector.load %arg5[%c0_127, %c0_128] : memref<1x80xf32, #tpu.memory_space<vmem>>, vector<1x80xf32>
    %111 = vector.broadcast %110 : vector<1x80xf32> to vector<8x80xf32>
    %112 = arith.addf %109, %111 : vector<8x80xf32>
    %cst_129 = arith.constant 0.000000e+00 : f32
    %113 = vector.broadcast %cst_129 : f32 to vector<8x80xf32>
    %114 = arith.maximumf %112, %113 : vector<8x80xf32>
    %115 = arith.truncf %114 : vector<8x80xf32> to vector<8x80xbf16>
    %c0_130 = arith.constant 0 : index
    %c0_131 = arith.constant 0 : index
    %c0_132 = arith.constant 0 : index
    %116 = vector.load %arg6[%c0_130, %c0_131, %c0_132] : memref<4x80x50xbf16, #tpu.memory_space<vmem>>, vector<1x80x50xbf16>
    %117 = vector.shape_cast %116 : vector<1x80x50xbf16> to vector<80x50xbf16>
    %cst_133 = arith.constant dense<0.000000e+00> : vector<8x50xf32>
    %118 = tpu.matmul %115, %117, %cst_133 {dimension_numbers = #tpu.dot_dimension_numbers<[1], [0], [0], [1], [0, 0, 1, 1], [], []>} : vector<8x80xbf16>, vector<80x50xbf16>, vector<8x50xf32> -> vector<8x50xf32>
    %119 = arith.addf %104, %118 : vector<8x50xf32>
    %120 = vector.extract_strided_slice %100 {offsets = [2, 0, 0], sizes = [1, 8, 80], strides = [1, 1, 1]} : vector<8x8x80xf32> to vector<1x8x80xf32>
    %121 = vector.shape_cast %120 : vector<1x8x80xf32> to vector<8x80xf32>
    %122 = vector.extract_strided_slice %100 {offsets = [3, 0, 0], sizes = [1, 8, 80], strides = [1, 1, 1]} : vector<8x8x80xf32> to vector<1x8x80xf32>
    %123 = vector.shape_cast %122 : vector<1x8x80xf32> to vector<8x80xf32>
    %124 = arith.maximumf %121, %123 : vector<8x80xf32>
    %c0_134 = arith.constant 0 : index
    %c0_135 = arith.constant 0 : index
    %125 = vector.load %arg5[%c0_134, %c0_135] : memref<1x80xf32, #tpu.memory_space<vmem>>, vector<1x80xf32>
    %126 = vector.broadcast %125 : vector<1x80xf32> to vector<8x80xf32>
    %127 = arith.addf %124, %126 : vector<8x80xf32>
    %cst_136 = arith.constant 0.000000e+00 : f32
    %128 = vector.broadcast %cst_136 : f32 to vector<8x80xf32>
    %129 = arith.maximumf %127, %128 : vector<8x80xf32>
    %130 = arith.truncf %129 : vector<8x80xf32> to vector<8x80xbf16>
    %c1_137 = arith.constant 1 : index
    %c0_138 = arith.constant 0 : index
    %c0_139 = arith.constant 0 : index
    %131 = vector.load %arg6[%c1_137, %c0_138, %c0_139] : memref<4x80x50xbf16, #tpu.memory_space<vmem>>, vector<1x80x50xbf16>
    %132 = vector.shape_cast %131 : vector<1x80x50xbf16> to vector<80x50xbf16>
    %cst_140 = arith.constant dense<0.000000e+00> : vector<8x50xf32>
    %133 = tpu.matmul %130, %132, %cst_140 {dimension_numbers = #tpu.dot_dimension_numbers<[1], [0], [0], [1], [0, 0, 1, 1], [], []>} : vector<8x80xbf16>, vector<80x50xbf16>, vector<8x50xf32> -> vector<8x50xf32>
    %134 = arith.addf %119, %133 : vector<8x50xf32>
    %135 = vector.extract_strided_slice %100 {offsets = [4, 0, 0], sizes = [1, 8, 80], strides = [1, 1, 1]} : vector<8x8x80xf32> to vector<1x8x80xf32>
    %136 = vector.shape_cast %135 : vector<1x8x80xf32> to vector<8x80xf32>
    %137 = vector.extract_strided_slice %100 {offsets = [5, 0, 0], sizes = [1, 8, 80], strides = [1, 1, 1]} : vector<8x8x80xf32> to vector<1x8x80xf32>
    %138 = vector.shape_cast %137 : vector<1x8x80xf32> to vector<8x80xf32>
    %139 = arith.maximumf %136, %138 : vector<8x80xf32>
    %c0_141 = arith.constant 0 : index
    %c0_142 = arith.constant 0 : index
    %140 = vector.load %arg5[%c0_141, %c0_142] : memref<1x80xf32, #tpu.memory_space<vmem>>, vector<1x80xf32>
    %141 = vector.broadcast %140 : vector<1x80xf32> to vector<8x80xf32>
    %142 = arith.addf %139, %141 : vector<8x80xf32>
    %cst_143 = arith.constant 0.000000e+00 : f32
    %143 = vector.broadcast %cst_143 : f32 to vector<8x80xf32>
    %144 = arith.maximumf %142, %143 : vector<8x80xf32>
    %145 = arith.truncf %144 : vector<8x80xf32> to vector<8x80xbf16>
    %c2_144 = arith.constant 2 : index
    %c0_145 = arith.constant 0 : index
    %c0_146 = arith.constant 0 : index
    %146 = vector.load %arg6[%c2_144, %c0_145, %c0_146] : memref<4x80x50xbf16, #tpu.memory_space<vmem>>, vector<1x80x50xbf16>
    %147 = vector.shape_cast %146 : vector<1x80x50xbf16> to vector<80x50xbf16>
    %cst_147 = arith.constant dense<0.000000e+00> : vector<8x50xf32>
    %148 = tpu.matmul %145, %147, %cst_147 {dimension_numbers = #tpu.dot_dimension_numbers<[1], [0], [0], [1], [0, 0, 1, 1], [], []>} : vector<8x80xbf16>, vector<80x50xbf16>, vector<8x50xf32> -> vector<8x50xf32>
    %149 = arith.addf %134, %148 : vector<8x50xf32>
    %150 = vector.extract_strided_slice %100 {offsets = [6, 0, 0], sizes = [1, 8, 80], strides = [1, 1, 1]} : vector<8x8x80xf32> to vector<1x8x80xf32>
    %151 = vector.shape_cast %150 : vector<1x8x80xf32> to vector<8x80xf32>
    %152 = vector.extract_strided_slice %100 {offsets = [7, 0, 0], sizes = [1, 8, 80], strides = [1, 1, 1]} : vector<8x8x80xf32> to vector<1x8x80xf32>
    %153 = vector.shape_cast %152 : vector<1x8x80xf32> to vector<8x80xf32>
    %154 = arith.maximumf %151, %153 : vector<8x80xf32>
    %c0_148 = arith.constant 0 : index
    %c0_149 = arith.constant 0 : index
    %155 = vector.load %arg5[%c0_148, %c0_149] : memref<1x80xf32, #tpu.memory_space<vmem>>, vector<1x80xf32>
    %156 = vector.broadcast %155 : vector<1x80xf32> to vector<8x80xf32>
    %157 = arith.addf %154, %156 : vector<8x80xf32>
    %cst_150 = arith.constant 0.000000e+00 : f32
    %158 = vector.broadcast %cst_150 : f32 to vector<8x80xf32>
    %159 = arith.maximumf %157, %158 : vector<8x80xf32>
    %160 = arith.truncf %159 : vector<8x80xf32> to vector<8x80xbf16>
    %c3_151 = arith.constant 3 : index
    %c0_152 = arith.constant 0 : index
    %c0_153 = arith.constant 0 : index
    %161 = vector.load %arg6[%c3_151, %c0_152, %c0_153] : memref<4x80x50xbf16, #tpu.memory_space<vmem>>, vector<1x80x50xbf16>
    %162 = vector.shape_cast %161 : vector<1x80x50xbf16> to vector<80x50xbf16>
    %cst_154 = arith.constant dense<0.000000e+00> : vector<8x50xf32>
    %163 = tpu.matmul %160, %162, %cst_154 {dimension_numbers = #tpu.dot_dimension_numbers<[1], [0], [0], [1], [0, 0, 1, 1], [], []>} : vector<8x80xbf16>, vector<80x50xbf16>, vector<8x50xf32> -> vector<8x50xf32>
    %164 = arith.addf %149, %163 : vector<8x50xf32>
    %cst_155 = arith.constant 0.000000e+00 : f32
    %165 = vector.broadcast %cst_155 : f32 to vector<8x50xf32>
    %166 = arith.maximumf %164, %165 : vector<8x50xf32>
    %167 = arith.truncf %166 : vector<8x50xf32> to vector<8x50xbf16>
    %c0_156 = arith.constant 0 : index
    %c0_157 = arith.constant 0 : index
    %168 = vector.load %arg8[%c0_156, %c0_157] : memref<50x128xbf16, #tpu.memory_space<vmem>>, vector<50x128xbf16>
    %cst_158 = arith.constant dense<0.000000e+00> : vector<8x128xf32>
    %169 = tpu.matmul %167, %168, %cst_158 {dimension_numbers = #tpu.dot_dimension_numbers<[1], [0], [0], [1], [0, 0, 1, 1], [], []>} : vector<8x50xbf16>, vector<50x128xbf16>, vector<8x128xf32> -> vector<8x128xf32>
    %c0_159 = arith.constant 0 : index
    %c0_160 = arith.constant 0 : index
    %170 = vector.load %arg9[%c0_159, %c0_160] : memref<1x128xf32, #tpu.memory_space<vmem>>, vector<1x128xf32>
    %171 = vector.broadcast %170 : vector<1x128xf32> to vector<8x128xf32>
    %172 = arith.addf %169, %171 : vector<8x128xf32>
    %cst_161 = arith.constant dense<0xFF800000> : vector<8xf32>
    %173 = vector.multi_reduction <maximumf>, %172, %cst_161 [1] : vector<8x128xf32> to vector<8xf32>
    %174 = vector.shape_cast %173 : vector<8xf32> to vector<8x1xf32>
    %175 = vector.broadcast %174 : vector<8x1xf32> to vector<8x128xf32>
    %176 = arith.subf %172, %175 : vector<8x128xf32>
    %177 = math.exp %176 : vector<8x128xf32>
    %cst_162 = arith.constant dense<0.000000e+00> : vector<8xf32>
    %178 = vector.multi_reduction <add>, %177, %cst_162 [1] : vector<8x128xf32> to vector<8xf32>
    %179 = vector.shape_cast %178 : vector<8xf32> to vector<8x1xf32>
    %180 = math.log %179 : vector<8x1xf32>
    %181 = vector.broadcast %180 : vector<8x1xf32> to vector<8x128xf32>
    %182 = arith.subf %176, %181 : vector<8x128xf32>
    %c0_163 = arith.constant 0 : index
    %c0_164 = arith.constant 0 : index
    %183 = vector.load %arg10[%c0_163, %c0_164] : memref<8x128xf32, #tpu.memory_space<vmem>>, vector<8x128xf32>
    tpu.vector_store %arg10[%c0_163, %c0_164], %182 {strides = array<i32>} : memref<8x128xf32, #tpu.memory_space<vmem>>, vector<8x128xf32>,
    return
  }
  func.func @transform_0(%arg0: i32) -> (i32, i32, i32, i32, i32) {
    %c0_i32 = arith.constant 0 : i32
    %c0_i32_0 = arith.constant 0 : i32
    %c0_i32_1 = arith.constant 0 : i32
    %c0_i32_2 = arith.constant 0 : i32
    %c0_i32_3 = arith.constant 0 : i32
    return %c0_i32, %c0_i32_0, %c0_i32_1, %arg0, %c0_i32_2 : i32, i32, i32, i32, i32
  }
  func.func @transform_1(%arg0: i32) -> (i32, i32) {
    %c0_i32 = arith.constant 0 : i32
    %c0_i32_0 = arith.constant 0 : i32
    %c0_i32_1 = arith.constant 0 : i32
    return %c0_i32, %c0_i32_0 : i32, i32
  }
  func.func @transform_2(%arg0: i32) -> (i32, i32) {
    %c0_i32 = arith.constant 0 : i32
    %c0_i32_0 = arith.constant 0 : i32
    %c0_i32_1 = arith.constant 0 : i32
    return %c0_i32, %c0_i32_0 : i32, i32
  }
  func.func @transform_3(%arg0: i32) -> (i32, i32, i32) {
    %c0_i32 = arith.constant 0 : i32
    %c0_i32_0 = arith.constant 0 : i32
    %c0_i32_1 = arith.constant 0 : i32
    %c0_i32_2 = arith.constant 0 : i32
    return %c0_i32, %c0_i32_0, %c0_i32_1 : i32, i32, i32
  }
  func.func @transform_4(%arg0: i32) -> (i32, i32) {
    %c0_i32 = arith.constant 0 : i32
    %c0_i32_0 = arith.constant 0 : i32
    %c0_i32_1 = arith.constant 0 : i32
    return %c0_i32, %c0_i32_0 : i32, i32
  }
  func.func @transform_5(%arg0: i32) -> (i32, i32, i32) {
    %c0_i32 = arith.constant 0 : i32
    %c0_i32_0 = arith.constant 0 : i32
    %c0_i32_1 = arith.constant 0 : i32
    %c0_i32_2 = arith.constant 0 : i32
    return %c0_i32, %c0_i32_0, %c0_i32_1 : i32, i32, i32
  }
  func.func @transform_6(%arg0: i32) -> (i32, i32) {
    %c0_i32 = arith.constant 0 : i32
    %c0_i32_0 = arith.constant 0 : i32
    %c0_i32_1 = arith.constant 0 : i32
    return %c0_i32, %c0_i32_0 : i32, i32
  }
  func.func @transform_7(%arg0: i32) -> (i32, i32) {
    %c0_i32 = arith.constant 0 : i32
    %c0_i32_0 = arith.constant 0 : i32
    %c0_i32_1 = arith.constant 0 : i32
    return %c0_i32, %c0_i32_0 : i32, i32
  }
  func.func @transform_8(%arg0: i32) -> (i32, i32) {
    %c0_i32 = arith.constant 0 : i32
    %c0_i32_0 = arith.constant 0 : i32
    %c0_i32_1 = arith.constant 0 : i32
    return %c0_i32, %c0_i32_0 : i32, i32
  }
  func.func @transform_9(%arg0: i32) -> (i32, i32) {
    %c0_i32 = arith.constant 0 : i32
    %c0_i32_0 = arith.constant 0 : i32
    return %arg0, %c0_i32 : i32, i32
  }
}

</mosaic_0001>

<llo_original>
// kernel: tile.10
$region0: #{tile.10}
  #allocation0 [shape = 's32[1]{0}', space=sflag, size = 0x4, scoped, tag = 'scoped memory for tile.10']
  %s0 = inlined_call_operand.vmem [shape: f32[10], index: 0, kind: input, shape index: {}]
  %s1 = inlined_call_operand.vmem [shape: f32[12,10], index: 1, kind: output, shape index: {}]
  // Predicated region
  $region2: #{tile.10} parent=0 // pred_check
    _
  $region3: #{tile.10} parent=0 // pred_check_branch
    %3 = sbr.rel (0) target = $region5
  $region4: #{tile.10} parent=0 // pred_region
    _
  $region5: #{tile.10} parent=0 // pred_fallthru
    _
  %v4 = vld [vmem:[%s0] ss:$0 sm:$0xff]
  %5 = vst [vmem:[%s1] sm:$0xff] %v4
  %s6 = scalar_lea.vmem %s1, 8
  %7 = vst [vmem:[%s6] sm:$0xff] %v4

// kernel: tile.11
$region0: #{tile.11}
  %s0 = inlined_call_operand.vmem [shape: f32[12,10], index: 0, kind: input, shape index: {}]
  %s1 = inlined_call_operand.vmem [shape: f32[1,120], index: 1, kind: output, shape index: {}]
  $region1: #{tile.11} parent=0
    #allocation0 [shape = 'u8[4096]{0}', space=vmem, size = 0x1000, scoped, tag = 'scoped mem for output reshape']
    %v2 = vld [vmem:[%s0] sm:$0x1]
    %vm3 = vcmask 80896
    %4 = vst.msk [vmem:[#allocation0] sm:$0x1] %vm3, %v2
    %s5 = scalar_lea.vmem %s0, 11
    %v6 = vld [vmem:[%s5] sm:$0x1]
    %7 = vrot.lane.b32.xlu0 %v6, 110
    %v8 = vpop.permute.xlu0 %7
    %vm9 = vcmask 982896
    %10 = vst.msk [vmem:[#allocation0] sm:$0x1] %vm9, %v8
    %s11 = scalar_lea.vmem %s0, 10
    %v12 = vld [vmem:[%s11] sm:$0x1]
    %13 = vrot.lane.b32.xlu0 %v12, 100
    %v14 = vpop.permute.xlu0 %13
    %vm15 = vcmask 900896
    %16 = vst.msk [vmem:[#allocation0] sm:$0x1] %vm15, %v14
    %s17 = scalar_lea.vmem %s0, 9
    %v18 = vld [vmem:[%s17] sm:$0x1]
    %19 = vrot.lane.b32.xlu0 %v18, 90
    %v20 = vpop.permute.xlu0 %19
    %vm21 = vcmask 818896
    %22 = vst.msk [vmem:[#allocation0] sm:$0x1] %vm21, %v20
    %s23 = scalar_lea.vmem %s0, 8
    %v24 = vld [vmem:[%s23] sm:$0x1]
    %25 = vrot.lane.b32.xlu0 %v24, 80
    %v26 = vpop.permute.xlu0 %25
    %vm27 = vcmask 736896
    %28 = vst.msk [vmem:[#allocation0] sm:$0x1] %vm27, %v26
    %s29 = scalar_lea.vmem %s0, 7
    %v30 = vld [vmem:[%s29] sm:$0x1]
    %31 = vrot.lane.b32.xlu0 %v30, 70
    %v32 = vpop.permute.xlu0 %31
    %vm33 = vcmask 654896
    %34 = vst.msk [vmem:[#allocation0] sm:$0x1] %vm33, %v32
    %s35 = scalar_lea.vmem %s0, 6
    %v36 = vld [vmem:[%s35] sm:$0x1]
    %37 = vrot.lane.b32.xlu0 %v36, 60
    %v38 = vpop.permute.xlu0 %37
    %vm39 = vcmask 572896
    %40 = vst.msk [vmem:[#allocation0] sm:$0x1] %vm39, %v38
    %s41 = scalar_lea.vmem %s0, 5
    %v42 = vld [vmem:[%s41] sm:$0x1]
    %43 = vrot.lane.b32.xlu0 %v42, 50
    %v44 = vpop.permute.xlu0 %43
    %vm45 = vcmask 490896
    %46 = vst.msk [vmem:[#allocation0] sm:$0x1] %vm45, %v44
    %s47 = scalar_lea.vmem %s0, 4
    %v48 = vld [vmem:[%s47] sm:$0x1]
    %49 = vrot.lane.b32.xlu0 %v48, 40
    %v50 = vpop.permute.xlu0 %49
    %vm51 = vcmask 408896
    %52 = vst.msk [vmem:[#allocation0] sm:$0x1] %vm51, %v50
    %s53 = scalar_lea.vmem %s0, 3
    %v54 = vld [vmem:[%s53] sm:$0x1]
    %55 = vrot.lane.b32.xlu0 %v54, 30
    %v56 = vpop.permute.xlu0 %55
    %vm57 = vcmask 326896
    %58 = vst.msk [vmem:[#allocation0] sm:$0x1] %vm57, %v56
    %s59 = scalar_lea.vmem %s0, 2
    %v60 = vld [vmem:[%s59] sm:$0x1]
    %61 = vrot.lane.b32.xlu0 %v60, 20
    %v62 = vpop.permute.xlu0 %61
    %vm63 = vcmask 244896
    %64 = vst.msk [vmem:[#allocation0] sm:$0x1] %vm63, %v62
    %s65 = scalar_lea.vmem %s0, 1
    %v66 = vld [vmem:[%s65] sm:$0x1]
    %67 = vrot.lane.b32.xlu0 %v66, 10
    %v68 = vpop.permute.xlu0 %67
    %vm69 = vcmask 162896
    %70 = vst.msk [vmem:[#allocation0] sm:$0x1] %vm69, %v68
    %s72 = sshllo.u32 0, 1
    %v74 = vld [vmem:[#allocation0] sm:%s72]
    %s75 = sshllo.u32 0, 1
    %76 = vst [vmem:[%s1] sm:%s75] %v74

// kernel: tile.14
$region0: #{tile.14}
  #allocation0 [shape = 's32[1]{0}', space=sflag, size = 0x4, scoped, tag = 'scoped memory for tile.14']
  %s0 = inlined_call_operand.vmem [shape: f32[20], index: 0, kind: input, shape index: {}]
  %s1 = inlined_call_operand.vmem [shape: f32[4,20], index: 1, kind: output, shape index: {}]
  // Predicated region
  $region2: #{tile.14} parent=0 // pred_check
    _
  $region3: #{tile.14} parent=0 // pred_check_branch
    %3 = sbr.rel (0) target = $region5
  $region4: #{tile.14} parent=0 // pred_region
    _
  $region5: #{tile.14} parent=0 // pred_fallthru
    _
  %v4 = vld [vmem:[%s0] ss:$0 sm:$0xff]
  %5 = vst [vmem:[%s1] sm:$0xf] %v4

// kernel: tile.15
$region0: #{tile.15}
  %s0 = inlined_call_operand.vmem [shape: f32[4,20], index: 0, kind: input, shape index: {}]
  %s1 = inlined_call_operand.vmem [shape: f32[1,80], index: 1, kind: output, shape index: {}]
  $region1: #{tile.15} parent=0
    #allocation0 [shape = 'u8[4096]{0}', space=vmem, size = 0x1000, scoped, tag = 'scoped mem for output reshape']
    #allocation1 [shape = 'u8[4096]{0}', space=vmem, size = 0x1000, scoped, tag = 'scoped mem for input reshape']
    %s3 = sshllo.u32 0, 4
    %v4 = vld [vmem:[%s0] sm:%s3]
    %5 = vst [vmem:[#allocation1] sm:%s3] %v4
    %v6 = vld [vmem:[#allocation1] sm:$0x1]
    %vm7 = vcmask 162816
    %8 = vst.msk [vmem:[#allocation0] sm:$0x1] %vm7, %v6
    %s9 = scalar_lea.vmem [#allocation1], 3
    %v10 = vld [vmem:[%s9] sm:$0x1]
    %11 = vrot.lane.b32.xlu0 %v10, 60
    %v12 = vpop.permute.xlu0 %11
    %vm13 = vcmask 654816
    %14 = vst.msk [vmem:[#allocation0] sm:$0x1] %vm13, %v12
    %s15 = scalar_lea.vmem [#allocation1], 2
    %v16 = vld [vmem:[%s15] sm:$0x1]
    %17 = vrot.lane.b32.xlu0 %v16, 40
    %v18 = vpop.permute.xlu0 %17
    %vm19 = vcmask 490816
    %20 = vst.msk [vmem:[#allocation0] sm:$0x1] %vm19, %v18
    %s21 = scalar_lea.vmem [#allocation1], 1
    %v22 = vld [vmem:[%s21] sm:$0x1]
    %23 = vrot.lane.b32.xlu0 %v22, 20
    %v24 = vpop.permute.xlu0 %23
    %vm25 = vcmask 326816
    %26 = vst.msk [vmem:[#allocation0] sm:$0x1] %vm25, %v24
    %s28 = sshllo.u32 0, 1
    %v30 = vld [vmem:[#allocation0] sm:%s28]
    %s31 = sshllo.u32 0, 1
    %32 = vst [vmem:[%s1] sm:%s31] %v30

// kernel: _lambda_.1
$region0: #{_lambda_.1}
  #allocation0 [shape = 'u32[]', space=smem, size = 0x4, offset = 0x4, fixed_abs, tag = 'smem constant byte address 0x4 - core index']
  #allocation1 [shape = 'u32[144,128]{1,0:T(1,128)}', space=vmem, size = 0x12000, scoped, tag = 'internal scratch']
  #allocation2 [shape = 'bf16[12,8,120]{2,1,0:T(8,128)(2,1)}', space=vmem, size = 0x6000, scoped, tag = 'scratch operand']
  #allocation3 [shape = 'bf16[12,8,400]{2,1,0:T(8,128)(2,1)}', space=vmem, size = 0x18000, scoped, tag = 'scratch operand']
  %s0 = inlined_call_operand.vmem [shape: bf16[2,2,12,8,300], index: 0, kind: input, shape index: {}]
  %s1 = inlined_call_operand.vmem [shape: bf16[300,120], index: 1, kind: input, shape index: {}]
  %s2 = inlined_call_operand.vmem [shape: f32[1,120], index: 2, kind: input, shape index: {}]
  %s3 = inlined_call_operand.vmem [shape: bf16[5,200,80], index: 3, kind: input, shape index: {}]
  %s4 = inlined_call_operand.vmem [shape: f32[1,80], index: 4, kind: input, shape index: {}]
  %s5 = inlined_call_operand.vmem [shape: bf16[4,80,50], index: 5, kind: input, shape index: {}]
  %s6 = inlined_call_operand.vmem [shape: f32[1,50], index: 6, kind: input, shape index: {}]
  %s7 = inlined_call_operand.vmem [shape: bf16[50,128], index: 7, kind: input, shape index: {}]
  %s8 = inlined_call_operand.vmem [shape: f32[1,128], index: 8, kind: input, shape index: {}]
  %s9 = inlined_call_operand.vmem [shape: f32[8,128], index: 9, kind: output, shape index: {}]
  %s10 = sld [smem:[#allocation0]]
  $region46: #{_lambda_.1} parent=0
    _
  %s12 = ssub.s32 1, %s10
  %s13 = scalar_select 0, %s12, %s10
  // Predicated region
  $region2: #{_lambda_.1} parent=0 // pred_check
    _
  $region3: #{_lambda_.1} parent=0 // pred_check_branch
    %15 = sbr.rel (0) target = $region5
  $region4: #{_lambda_.1} parent=0 // pred_region
    _
  $region5: #{_lambda_.1} parent=0 // pred_fallthru
    _
  // Predicated region
  $region6: #{_lambda_.1} parent=0 // pred_check
    _
  $region7: #{_lambda_.1} parent=0 // pred_check_branch
    %17 = sbr.rel (0) target = $region9
  $region8: #{_lambda_.1} parent=0 // pred_region
    _
  $region9: #{_lambda_.1} parent=0 // pred_fallthru
    _
  // Predicated region
  $region10: #{_lambda_.1} parent=0 // pred_check
    _
  $region11: #{_lambda_.1} parent=0 // pred_check_branch
    %19 = sbr.rel (0) target = $region13
  $region12: #{_lambda_.1} parent=0 // pred_region
    _
  $region13: #{_lambda_.1} parent=0 // pred_fallthru
    _
  // Predicated region
  $region14: #{_lambda_.1} parent=0 // pred_check
    _
  $region15: #{_lambda_.1} parent=0 // pred_check_branch
    %21 = sbr.rel (0) target = $region17
  $region16: #{_lambda_.1} parent=0 // pred_region
    _
  $region17: #{_lambda_.1} parent=0 // pred_fallthru
    _
  // Predicated region
  $region18: #{_lambda_.1} parent=0 // pred_check
    _
  $region19: #{_lambda_.1} parent=0 // pred_check_branch
    %23 = sbr.rel (0) target = $region21
  $region20: #{_lambda_.1} parent=0 // pred_region
    _
  $region21: #{_lambda_.1} parent=0 // pred_fallthru
    _
  // Predicated region
  $region22: #{_lambda_.1} parent=0 // pred_check
    _
  $region23: #{_lambda_.1} parent=0 // pred_check_branch
    %25 = sbr.rel (0) target = $region25
  $region24: #{_lambda_.1} parent=0 // pred_region
    _
  $region25: #{_lambda_.1} parent=0 // pred_fallthru
    _
  // Predicated region
  $region26: #{_lambda_.1} parent=0 // pred_check
    _
  $region27: #{_lambda_.1} parent=0 // pred_check_branch
    %27 = sbr.rel (0) target = $region29
  $region28: #{_lambda_.1} parent=0 // pred_region
    _
  $region29: #{_lambda_.1} parent=0 // pred_fallthru
    _
  // Predicated region
  $region30: #{_lambda_.1} parent=0 // pred_check
    _
  $region31: #{_lambda_.1} parent=0 // pred_check_branch
    %29 = sbr.rel (0) target = $region33
  $region32: #{_lambda_.1} parent=0 // pred_region
    _
  $region33: #{_lambda_.1} parent=0 // pred_fallthru
    _
  // Predicated region
  $region34: #{_lambda_.1} parent=0 // pred_check
    _
  $region35: #{_lambda_.1} parent=0 // pred_check_branch
    %31 = sbr.rel (0) target = $region37
  $region36: #{_lambda_.1} parent=0 // pred_region
    _
  $region37: #{_lambda_.1} parent=0 // pred_fallthru
    _
  %v33 = vld [vmem:[%s0] sm:$0xff]
  %v34 = vld [vmem:[%s0 + $0x8] sm:$0xf]
  %v35 = vld [vmem:[%s0 + $0xc] sm:$0xff]
  %v36 = vld [vmem:[%s0 + $0x14] sm:$0xf]
  %v37 = vld [vmem:[%s0 + $0x18] sm:$0xff]
  %v38 = vld [vmem:[%s0 + $0x20] sm:$0xf]
  %v39 = vld [vmem:[%s0 + $0x24] sm:$0xff]
  %v40 = vld [vmem:[%s0 + $0x2c] sm:$0xf]
  %v41 = vld [vmem:[%s0 + $0x30] sm:$0xff]
  %v42 = vld [vmem:[%s0 + $0x38] sm:$0xf]
  %v43 = vld [vmem:[%s0 + $0x3c] sm:$0xff]
  %v44 = vld [vmem:[%s0 + $0x44] sm:$0xf]
  %v45 = vld [vmem:[%s0 + $0x48] sm:$0xff]
  %v46 = vld [vmem:[%s0 + $0x50] sm:$0xf]
  %v47 = vld [vmem:[%s0 + $0x54] sm:$0xff]
  %v48 = vld [vmem:[%s0 + $0x5c] sm:$0xf]
  %v49 = vld [vmem:[%s0 + $0x60] sm:$0xff]
  %v50 = vld [vmem:[%s0 + $0x68] sm:$0xf]
  %v51 = vld [vmem:[%s0 + $0x6c] sm:$0xff]
  %v52 = vld [vmem:[%s0 + $0x74] sm:$0xf]
  %v53 = vld [vmem:[%s0 + $0x78] sm:$0xff]
  %v54 = vld [vmem:[%s0 + $0x80] sm:$0xf]
  %v55 = vld [vmem:[%s0 + $0x84] sm:$0xff]
  %v56 = vld [vmem:[%s0 + $0x8c] sm:$0xf]
  %v57 = vld [vmem:[%s1] sm:$0xf]
  %v58 = vld [vmem:[%s1 + $0x4] sm:$0xf]
  %v59 = vld [vmem:[%s1 + $0x8] sm:$0xf]
  %v60 = vld [vmem:[%s1 + $0xc] sm:$0xf]
  %v61 = vld [vmem:[%s1 + $0x10] sm:$0xf]
  %v62 = vld [vmem:[%s1 + $0x14] sm:$0xf]
  %v63 = vld [vmem:[%s1 + $0x18] sm:$0xf]
  %v64 = vld [vmem:[%s1 + $0x1c] sm:$0xf]
  %v65 = vld [vmem:[%s1 + $0x20] sm:$0xf]
  %v66 = vld [vmem:[%s1 + $0x24] sm:$0xf]
  %v67 = vld [vmem:[%s1 + $0x28] sm:$0xf]
  %v68 = vld [vmem:[%s1 + $0x2c] sm:$0xf]
  %v69 = vld [vmem:[%s1 + $0x30] sm:$0xf]
  %v70 = vld [vmem:[%s1 + $0x34] sm:$0xf]
  %v71 = vld [vmem:[%s1 + $0x38] sm:$0xf]
  %v72 = vld [vmem:[%s1 + $0x3c] sm:$0xf]
  %v73 = vld [vmem:[%s1 + $0x40] sm:$0xf]
  %v74 = vld [vmem:[%s1 + $0x44] sm:$0xf]
  %v75 = vld [vmem:[%s1 + $0x48] sm:$0xf]
  %v76 = vld [vmem:[%s1 + $0x4c] sm:$0xf]
  %v77 = vld [vmem:[%s1 + $0x50] sm:$0xf]
  %v78 = vld [vmem:[%s1 + $0x54] sm:$0xf]
  %v79 = vld [vmem:[%s1 + $0x58] sm:$0xf]
  %v80 = vld [vmem:[%s1 + $0x5c] sm:$0xf]
  %v81 = vld [vmem:[%s1 + $0x60] sm:$0xf]
  %v82 = vld [vmem:[%s1 + $0x64] sm:$0xf]
  %v83 = vld [vmem:[%s1 + $0x68] sm:$0xf]
  %v84 = vld [vmem:[%s1 + $0x6c] sm:$0xf]
  %v85 = vld [vmem:[%s1 + $0x70] sm:$0xf]
  %v86 = vld [vmem:[%s1 + $0x74] sm:$0xf]
  %v87 = vld [vmem:[%s1 + $0x78] sm:$0xf]
  %v88 = vld [vmem:[%s1 + $0x7c] sm:$0xf]
  %v89 = vld [vmem:[%s1 + $0x80] sm:$0xf]
  %v90 = vld [vmem:[%s1 + $0x84] sm:$0xf]
  %v91 = vld [vmem:[%s1 + $0x88] sm:$0xf]
  %v92 = vld [vmem:[%s1 + $0x8c] sm:$0xf]
  %v93 = vld [vmem:[%s1 + $0x90] sm:$0xf]
  %v94 = vld [vmem:[%s1 + $0x94] sm:$0x3]
  %v119 = vunpack.c.l.b16 %v33
  %v120 = vunpack.c.h.b16 %v33
  %v121 = vunpack.c.l.b16 %v34
  %v122 = vunpack.c.l.b16 %v35
  %v123 = vunpack.c.h.b16 %v35
  %v124 = vunpack.c.l.b16 %v36
  %v125 = vunpack.c.l.b16 %v37
  %v126 = vunpack.c.h.b16 %v37
  %v127 = vunpack.c.l.b16 %v38
  %v128 = vunpack.c.l.b16 %v39
  %v129 = vunpack.c.h.b16 %v39
  %v130 = vunpack.c.l.b16 %v40
  %v131 = vunpack.c.l.b16 %v41
  %v132 = vunpack.c.h.b16 %v41
  %v133 = vunpack.c.l.b16 %v42
  %v134 = vunpack.c.l.b16 %v43
  %v135 = vunpack.c.h.b16 %v43
  %v136 = vunpack.c.l.b16 %v44
  %v137 = vunpack.c.l.b16 %v45
  %v138 = vunpack.c.h.b16 %v45
  %v139 = vunpack.c.l.b16 %v46
  %v140 = vunpack.c.l.b16 %v47
  %v141 = vunpack.c.h.b16 %v47
  %v142 = vunpack.c.l.b16 %v48
  %v143 = vunpack.c.l.b16 %v49
  %v144 = vunpack.c.h.b16 %v49
  %v145 = vunpack.c.l.b16 %v50
  %v146 = vunpack.c.l.b16 %v51
  %v147 = vunpack.c.h.b16 %v51
  %v148 = vunpack.c.l.b16 %v52
  %v149 = vunpack.c.l.b16 %v53
  %v150 = vunpack.c.h.b16 %v53
  %v151 = vunpack.c.l.b16 %v54
  %v152 = vunpack.c.l.b16 %v55
  %v153 = vunpack.c.h.b16 %v55
  %v154 = vunpack.c.l.b16 %v56
  %v155 = vpack.c.b16 %v122, %v119
  %v156 = vpack.c.b16 %v123, %v120
  %v157 = vpack.c.b16 %v124, %v121
  %v158 = vpack.c.b16 %v128, %v125
  %v159 = vpack.c.b16 %v129, %v126
  %v160 = vpack.c.b16 %v130, %v127
  %v161 = vpack.c.b16 %v134, %v131
  %v162 = vpack.c.b16 %v135, %v132
  %v163 = vpack.c.b16 %v136, %v133
  %v164 = vpack.c.b16 %v140, %v137
  %v165 = vpack.c.b16 %v141, %v138
  %v166 = vpack.c.b16 %v142, %v139
  %v167 = vpack.c.b16 %v146, %v143
  %v168 = vpack.c.b16 %v147, %v144
  %v169 = vpack.c.b16 %v148, %v145
  %v170 = vpack.c.b16 %v152, %v149
  %v171 = vpack.c.b16 %v153, %v150
  %v172 = vpack.c.b16 %v154, %v151
  %v223 = vunpack.c.l.b16 %v57
  %v224 = vunpack.c.l.b16 %v58
  %v225 = vunpack.c.l.b16 %v59
  %v226 = vunpack.c.l.b16 %v60
  %v227 = vunpack.c.l.b16 %v61
  %v228 = vunpack.c.l.b16 %v62
  %v229 = vunpack.c.l.b16 %v63
  %v230 = vunpack.c.l.b16 %v64
  %v231 = vunpack.c.l.b16 %v65
  %v232 = vunpack.c.l.b16 %v66
  %v233 = vunpack.c.l.b16 %v67
  %v234 = vunpack.c.l.b16 %v68
  %v235 = vunpack.c.l.b16 %v69
  %v236 = vunpack.c.l.b16 %v70
  %v237 = vunpack.c.l.b16 %v71
  %v238 = vunpack.c.l.b16 %v72
  %v239 = vunpack.c.l.b16 %v73
  %v240 = vunpack.c.l.b16 %v74
  %v241 = vunpack.c.l.b16 %v75
  %v242 = vunpack.c.l.b16 %v76
  %v243 = vunpack.c.l.b16 %v77
  %v244 = vunpack.c.l.b16 %v78
  %v245 = vunpack.c.l.b16 %v79
  %v246 = vunpack.c.l.b16 %v80
  %v247 = vunpack.c.l.b16 %v81
  %v248 = vunpack.c.l.b16 %v82
  %v249 = vunpack.c.l.b16 %v83
  %v250 = vunpack.c.l.b16 %v84
  %v251 = vunpack.c.l.b16 %v85
  %v252 = vunpack.c.l.b16 %v86
  %v253 = vunpack.c.l.b16 %v87
  %v254 = vunpack.c.l.b16 %v88
  %v255 = vunpack.c.l.b16 %v89
  %v256 = vunpack.c.l.b16 %v90
  %v257 = vunpack.c.l.b16 %v91
  %v258 = vunpack.c.l.b16 %v92
  %v259 = vunpack.c.l.b16 %v93
  %v260 = vunpack.c.l.b16 %v94
  %v261 = vpack.c.b16 %v224, %v223
  %v262 = vpack.c.b16 %v226, %v225
  %v263 = vpack.c.b16 %v228, %v227
  %v264 = vpack.c.b16 %v230, %v229
  %v265 = vpack.c.b16 %v232, %v231
  %v266 = vpack.c.b16 %v234, %v233
  %v267 = vpack.c.b16 %v236, %v235
  %v268 = vpack.c.b16 %v238, %v237
  %v269 = vpack.c.b16 %v240, %v239
  %v270 = vpack.c.b16 %v242, %v241
  %v271 = vpack.c.b16 %v244, %v243
  %v272 = vpack.c.b16 %v246, %v245
  %v273 = vpack.c.b16 %v248, %v247
  %v274 = vpack.c.b16 %v250, %v249
  %v275 = vpack.c.b16 %v252, %v251
  %v276 = vpack.c.b16 %v254, %v253
  %v277 = vpack.c.b16 %v256, %v255
  %v278 = vpack.c.b16 %v258, %v257
  %v279 = vpack.c.b16 %v260, %v259
  %vm298 = vcmask 359424
  %v300 = vsel %vm298, %v157, 0
  %v303 = vsel %vm298, %v160, 0
  %v306 = vsel %vm298, %v163, 0
  %v309 = vsel %vm298, %v166, 0
  %v312 = vsel %vm298, %v169, 0
  %v315 = vsel %vm298, %v172, 0
  %vm317 = vcmask 1045504
  %v319 = vsel %vm317, %v279, 0
  %321 = vmatprep.subr.bf16.mxu0 0
  %322 = vmatpush1.bf16.msra.mxu0 %v261
  %323 = vmatprep.subr.bf16.mxu0 0
  %324 = vmatpush1.bf16.msra.mxu0 %v262
  %325 = vmatprep.subr.bf16.mxu0 0
  %326 = vmatpush1.bf16.msra.mxu0 %v263
  %327 = vmatprep.subr.bf16.mxu0 0
  %328 = vmatpush1.bf16.msra.mxu0 %v264
  %329 = vmatprep.subr.bf16.mxu0 0
  %330 = vmatpush1.bf16.msra.mxu0 %v265
  %331 = vmatprep.subr.bf16.mxu0 0
  %332 = vmatpush1.bf16.msra.mxu0 %v266
  %333 = vmatprep.subr.bf16.mxu0 0
  %334 = vmatpush1.bf16.msra.mxu0 %v267
  %335 = vmatprep.subr.bf16.mxu0 0
  %336 = vmatpush1.bf16.msra.mxu0 %v268
  %337 = vmatprep.subr.bf16.mxu0 0
  %338 = vmatpush1.bf16.msra.mxu0 %v269
  %339 = vmatprep.subr.bf16.mxu0 0
  %340 = vmatpush1.bf16.msra.mxu0 %v270
  %341 = vmatprep.subr.bf16.mxu0 0
  %342 = vmatpush1.bf16.msra.mxu0 %v271
  %343 = vmatprep.subr.bf16.mxu0 0
  %344 = vmatpush1.bf16.msra.mxu0 %v272
  %345 = vmatprep.subr.bf16.mxu0 0
  %346 = vmatpush1.bf16.msra.mxu0 %v273
  %347 = vmatprep.subr.bf16.mxu0 0
  %348 = vmatpush1.bf16.msra.mxu0 %v274
  %349 = vmatprep.subr.bf16.mxu0 0
  %350 = vmatpush1.bf16.msra.mxu0 %v275
  %351 = vmatprep.subr.bf16.mxu0 0
  %352 = vmatpush1.bf16.msra.mxu0 %v276
  %353 = vmatprep.mubr.bf16.mxu0 %v156
  %354 = vmatmul.mubr.bf16.gmra.mrb[0].mxu0 %v155
  %v355 = vpop.f32.mrb[0].mxu0
  %v356 = vadd.f32 0.0, %v355
  %v357 = vpop.f32.mrb[0].mxu0
  %v358 = vpop.f32.mrb[0].mxu0
  %v359 = vadd.f32 0.0, %v358
  %v360 = vpop.f32.mrb[0].mxu0
  %361 = vmatprep.mubr.bf16.mxu0 %v159
  %362 = vmatmul.mubr.bf16.gmra.mrb[0].mxu0 %v158
  %v363 = vpop.f32.mrb[0].mxu0
  %v364 = vadd.f32 0.0, %v363
  %v365 = vpop.f32.mrb[0].mxu0
  %v366 = vpop.f32.mrb[0].mxu0
  %v367 = vadd.f32 0.0, %v366
  %v368 = vpop.f32.mrb[0].mxu0
  %369 = vmatprep.mubr.bf16.mxu0 %v162
  %370 = vmatmul.mubr.bf16.gmra.mrb[0].mxu0 %v161
  %v371 = vpop.f32.mrb[0].mxu0
  %v372 = vadd.f32 0.0, %v371
  %v373 = vpop.f32.mrb[0].mxu0
  %v374 = vpop.f32.mrb[0].mxu0
  %v375 = vadd.f32 0.0, %v374
  %v376 = vpop.f32.mrb[0].mxu0
  %377 = vmatprep.mubr.bf16.mxu0 %v165
  %378 = vmatmul.mubr.bf16.gmra.mrb[0].mxu0 %v164
  %v379 = vpop.f32.mrb[0].mxu0
  %v380 = vadd.f32 0.0, %v379
  %v381 = vpop.f32.mrb[0].mxu0
  %v382 = vpop.f32.mrb[0].mxu0
  %v383 = vadd.f32 0.0, %v382
  %v384 = vpop.f32.mrb[0].mxu0
  %385 = vmatprep.mubr.bf16.mxu0 %v168
  %386 = vmatmul.mubr.bf16.gmra.mrb[0].mxu0 %v167
  %v387 = vpop.f32.mrb[0].mxu0
  %v388 = vadd.f32 0.0, %v387
  %v389 = vpop.f32.mrb[0].mxu0
  %v390 = vpop.f32.mrb[0].mxu0
  %v391 = vadd.f32 0.0, %v390
  %v392 = vpop.f32.mrb[0].mxu0
  %393 = vmatprep.mubr.bf16.mxu0 %v171
  %394 = vmatmul.mubr.bf16.gmra.mrb[0].mxu0 %v170
  %v395 = vpop.f32.mrb[0].mxu0
  %v396 = vadd.f32 0.0, %v395
  %v397 = vpop.f32.mrb[0].mxu0
  %v398 = vpop.f32.mrb[0].mxu0
  %v399 = vadd.f32 0.0, %v398
  %v400 = vpop.f32.mrb[0].mxu0
  %401 = vdwg.mxu0
  %402 = vmatprep.subr.bf16.mxu0 0
  %403 = vmatpush1.bf16.msra.mxu0 %v277
  %404 = vmatprep.subr.bf16.mxu0 0
  %405 = vmatpush1.bf16.msra.mxu0 %v278
  %406 = vmatprep.subr.bf16.mxu0 0
  %407 = vmatpush1.bf16.msra.mxu0 %v319
  %408 = vmatprep.subr.bf16.mxu0 0
  %409 = vmatpush1.bf16.msra.mxu0 0
  %410 = vmatprep.subr.bf16.mxu0 0
  %411 = vmatpush1.bf16.msra.mxu0 0
  %412 = vmatprep.subr.bf16.mxu0 0
  %413 = vmatpush1.bf16.msra.mxu0 0
  %414 = vmatprep.subr.bf16.mxu0 0
  %415 = vmatpush1.bf16.msra.mxu0 0
  %416 = vmatprep.subr.bf16.mxu0 0
  %417 = vmatpush1.bf16.msra.mxu0 0
  %418 = vmatprep.subr.bf16.mxu0 0
  %419 = vmatpush1.bf16.msra.mxu0 0
  %420 = vmatprep.subr.bf16.mxu0 0
  %421 = vmatpush1.bf16.msra.mxu0 0
  %422 = vmatprep.subr.bf16.mxu0 0
  %423 = vmatpush1.bf16.msra.mxu0 0
  %424 = vmatprep.subr.bf16.mxu0 0
  %425 = vmatpush1.bf16.msra.mxu0 0
  %426 = vmatprep.subr.bf16.mxu0 0
  %427 = vmatpush1.bf16.msra.mxu0 0
  %428 = vmatprep.subr.bf16.mxu0 0
  %429 = vmatpush1.bf16.msra.mxu0 0
  %430 = vmatprep.subr.bf16.mxu0 0
  %431 = vmatpush1.bf16.msra.mxu0 0
  %432 = vmatprep.subr.bf16.mxu0 0
  %433 = vmatpush1.bf16.msra.mxu0 0
  %434 = vmatprep.mubr.bf16.mxu0 0
  %435 = vmatmul.mubr.bf16.gmra.mrb[0].mxu0 %v300
  %v436 = vpop.f32.mrb[0].mxu0
  %v437 = vadd.f32 %v356, %v436
  %v438 = vpop.f32.mrb[0].mxu0
  %v439 = vpop.f32.mrb[0].mxu0
  %v440 = vadd.f32 %v359, %v439
  %v441 = vpop.f32.mrb[0].mxu0
  %442 = vmatprep.mubr.bf16.mxu0 0
  %443 = vmatmul.mubr.bf16.gmra.mrb[0].mxu0 %v303
  %v444 = vpop.f32.mrb[0].mxu0
  %v445 = vadd.f32 %v364, %v444
  %v446 = vpop.f32.mrb[0].mxu0
  %v447 = vpop.f32.mrb[0].mxu0
  %v448 = vadd.f32 %v367, %v447
  %v449 = vpop.f32.mrb[0].mxu0
  %450 = vmatprep.mubr.bf16.mxu0 0
  %451 = vmatmul.mubr.bf16.gmra.mrb[0].mxu0 %v306
  %v452 = vpop.f32.mrb[0].mxu0
  %v453 = vadd.f32 %v372, %v452
  %v454 = vpop.f32.mrb[0].mxu0
  %v455 = vpop.f32.mrb[0].mxu0
  %v456 = vadd.f32 %v375, %v455
  %v457 = vpop.f32.mrb[0].mxu0
  %458 = vmatprep.mubr.bf16.mxu0 0
  %459 = vmatmul.mubr.bf16.gmra.mrb[0].mxu0 %v309
  %v460 = vpop.f32.mrb[0].mxu0
  %v461 = vadd.f32 %v380, %v460
  %v462 = vpop.f32.mrb[0].mxu0
  %v463 = vpop.f32.mrb[0].mxu0
  %v464 = vadd.f32 %v383, %v463
  %v465 = vpop.f32.mrb[0].mxu0
  %466 = vmatprep.mubr.bf16.mxu0 0
  %467 = vmatmul.mubr.bf16.gmra.mrb[0].mxu0 %v312
  %v468 = vpop.f32.mrb[0].mxu0
  %v469 = vadd.f32 %v388, %v468
  %v470 = vpop.f32.mrb[0].mxu0
  %v471 = vpop.f32.mrb[0].mxu0
  %v472 = vadd.f32 %v391, %v471
  %v473 = vpop.f32.mrb[0].mxu0
  %474 = vmatprep.mubr.bf16.mxu0 0
  %475 = vmatmul.mubr.bf16.gmra.mrb[0].mxu0 %v315
  %v476 = vpop.f32.mrb[0].mxu0
  %v477 = vadd.f32 %v396, %v476
  %v478 = vpop.f32.mrb[0].mxu0
  %v479 = vpop.f32.mrb[0].mxu0
  %v480 = vadd.f32 %v399, %v479
  %v481 = vpop.f32.mrb[0].mxu0
  %482 = vdwg.mxu0
  %s483 = scalar_lea.vmem %s0, 144
  %v484 = vld [vmem:[%s483] sm:$0xff]
  %v485 = vld [vmem:[%s483 + $0x8] sm:$0xf]
  %v486 = vld [vmem:[%s483 + $0xc] sm:$0xff]
  %v487 = vld [vmem:[%s483 + $0x14] sm:$0xf]
  %v488 = vld [vmem:[%s483 + $0x18] sm:$0xff]
  %v489 = vld [vmem:[%s483 + $0x20] sm:$0xf]
  %v490 = vld [vmem:[%s483 + $0x24] sm:$0xff]
  %v491 = vld [vmem:[%s483 + $0x2c] sm:$0xf]
  %v492 = vld [vmem:[%s483 + $0x30] sm:$0xff]
  %v493 = vld [vmem:[%s483 + $0x38] sm:$0xf]
  %v494 = vld [vmem:[%s483 + $0x3c] sm:$0xff]
  %v495 = vld [vmem:[%s483 + $0x44] sm:$0xf]
  %v496 = vld [vmem:[%s483 + $0x48] sm:$0xff]
  %v497 = vld [vmem:[%s483 + $0x50] sm:$0xf]
  %v498 = vld [vmem:[%s483 + $0x54] sm:$0xff]
  %v499 = vld [vmem:[%s483 + $0x5c] sm:$0xf]
  %v500 = vld [vmem:[%s483 + $0x60] sm:$0xff]
  %v501 = vld [vmem:[%s483 + $0x68] sm:$0xf]
  %v502 = vld [vmem:[%s483 + $0x6c] sm:$0xff]
  %v503 = vld [vmem:[%s483 + $0x74] sm:$0xf]
  %v504 = vld [vmem:[%s483 + $0x78] sm:$0xff]
  %v505 = vld [vmem:[%s483 + $0x80] sm:$0xf]
  %v506 = vld [vmem:[%s483 + $0x84] sm:$0xff]
  %v507 = vld [vmem:[%s483 + $0x8c] sm:$0xf]
  %v532 = vunpack.c.l.b16 %v484
  %v533 = vunpack.c.h.b16 %v484
  %v534 = vunpack.c.l.b16 %v485
  %v535 = vunpack.c.l.b16 %v486
  %v536 = vunpack.c.h.b16 %v486
  %v537 = vunpack.c.l.b16 %v487
  %v538 = vunpack.c.l.b16 %v488
  %v539 = vunpack.c.h.b16 %v488
  %v540 = vunpack.c.l.b16 %v489
  %v541 = vunpack.c.l.b16 %v490
  %v542 = vunpack.c.h.b16 %v490
  %v543 = vunpack.c.l.b16 %v491
  %v544 = vunpack.c.l.b16 %v492
  %v545 = vunpack.c.h.b16 %v492
  %v546 = vunpack.c.l.b16 %v493
  %v547 = vunpack.c.l.b16 %v494
  %v548 = vunpack.c.h.b16 %v494
  %v549 = vunpack.c.l.b16 %v495
  %v550 = vunpack.c.l.b16 %v496
  %v551 = vunpack.c.h.b16 %v496
  %v552 = vunpack.c.l.b16 %v497
  %v553 = vunpack.c.l.b16 %v498
  %v554 = vunpack.c.h.b16 %v498
  %v555 = vunpack.c.l.b16 %v499
  %v556 = vunpack.c.l.b16 %v500
  %v557 = vunpack.c.h.b16 %v500
  %v558 = vunpack.c.l.b16 %v501
  %v559 = vunpack.c.l.b16 %v502
  %v560 = vunpack.c.h.b16 %v502
  %v561 = vunpack.c.l.b16 %v503
  %v562 = vunpack.c.l.b16 %v504
  %v563 = vunpack.c.h.b16 %v504
  %v564 = vunpack.c.l.b16 %v505
  %v565 = vunpack.c.l.b16 %v506
  %v566 = vunpack.c.h.b16 %v506
  %v567 = vunpack.c.l.b16 %v507
  %v568 = vpack.c.b16 %v535, %v532
  %v569 = vpack.c.b16 %v536, %v533
  %v570 = vpack.c.b16 %v537, %v534
  %v571 = vpack.c.b16 %v541, %v538
  %v572 = vpack.c.b16 %v542, %v539
  %v573 = vpack.c.b16 %v543, %v540
  %v574 = vpack.c.b16 %v547, %v544
  %v575 = vpack.c.b16 %v548, %v545
  %v576 = vpack.c.b16 %v549, %v546
  %v577 = vpack.c.b16 %v553, %v550
  %v578 = vpack.c.b16 %v554, %v551
  %v579 = vpack.c.b16 %v555, %v552
  %v580 = vpack.c.b16 %v559, %v556
  %v581 = vpack.c.b16 %v560, %v557
  %v582 = vpack.c.b16 %v561, %v558
  %v583 = vpack.c.b16 %v565, %v562
  %v584 = vpack.c.b16 %v566, %v563
  %v585 = vpack.c.b16 %v567, %v564
  %v599 = vsel %vm298, %v570, 0
  %v602 = vsel %vm298, %v573, 0
  %v605 = vsel %vm298, %v576, 0
  %v608 = vsel %vm298, %v579, 0
  %v611 = vsel %vm298, %v582, 0
  %v614 = vsel %vm298, %v585, 0
  %616 = vmatprep.subr.bf16.mxu0 0
  %617 = vmatpush1.bf16.msra.mxu0 %v261
  %618 = vmatprep.subr.bf16.mxu0 0
  %619 = vmatpush1.bf16.msra.mxu0 %v262
  %620 = vmatprep.subr.bf16.mxu0 0
  %621 = vmatpush1.bf16.msra.mxu0 %v263
  %622 = vmatprep.subr.bf16.mxu0 0
  %623 = vmatpush1.bf16.msra.mxu0 %v264
  %624 = vmatprep.subr.bf16.mxu0 0
  %625 = vmatpush1.bf16.msra.mxu0 %v265
  %626 = vmatprep.subr.bf16.mxu0 0
  %627 = vmatpush1.bf16.msra.mxu0 %v266
  %628 = vmatprep.subr.bf16.mxu0 0
  %629 = vmatpush1.bf16.msra.mxu0 %v267
  %630 = vmatprep.subr.bf16.mxu0 0
  %631 = vmatpush1.bf16.msra.mxu0 %v268
  %632 = vmatprep.subr.bf16.mxu0 0
  %633 = vmatpush1.bf16.msra.mxu0 %v269
  %634 = vmatprep.subr.bf16.mxu0 0
  %635 = vmatpush1.bf16.msra.mxu0 %v270
  %636 = vmatprep.subr.bf16.mxu0 0
  %637 = vmatpush1.bf16.msra.mxu0 %v271
  %638 = vmatprep.subr.bf16.mxu0 0
  %639 = vmatpush1.bf16.msra.mxu0 %v272
  %640 = vmatprep.subr.bf16.mxu0 0
  %641 = vmatpush1.bf16.msra.mxu0 %v273
  %642 = vmatprep.subr.bf16.mxu0 0
  %643 = vmatpush1.bf16.msra.mxu0 %v274
  %644 = vmatprep.subr.bf16.mxu0 0
  %645 = vmatpush1.bf16.msra.mxu0 %v275
  %646 = vmatprep.subr.bf16.mxu0 0
  %647 = vmatpush1.bf16.msra.mxu0 %v276
  %648 = vmatprep.mubr.bf16.mxu0 %v569
  %649 = vmatmul.mubr.bf16.gmra.mrb[0].mxu0 %v568
  %v650 = vpop.f32.mrb[0].mxu0
  %v651 = vadd.f32 0.0, %v650
  %v652 = vpop.f32.mrb[0].mxu0
  %v653 = vpop.f32.mrb[0].mxu0
  %v654 = vadd.f32 0.0, %v653
  %v655 = vpop.f32.mrb[0].mxu0
  %656 = vmatprep.mubr.bf16.mxu0 %v572
  %657 = vmatmul.mubr.bf16.gmra.mrb[0].mxu0 %v571
  %v658 = vpop.f32.mrb[0].mxu0
  %v659 = vadd.f32 0.0, %v658
  %v660 = vpop.f32.mrb[0].mxu0
  %v661 = vpop.f32.mrb[0].mxu0
  %v662 = vadd.f32 0.0, %v661
  %v663 = vpop.f32.mrb[0].mxu0
  %664 = vmatprep.mubr.bf16.mxu0 %v575
  %665 = vmatmul.mubr.bf16.gmra.mrb[0].mxu0 %v574
  %v666 = vpop.f32.mrb[0].mxu0
  %v667 = vadd.f32 0.0, %v666
  %v668 = vpop.f32.mrb[0].mxu0
  %v669 = vpop.f32.mrb[0].mxu0
  %v670 = vadd.f32 0.0, %v669
  %v671 = vpop.f32.mrb[0].mxu0
  %672 = vmatprep.mubr.bf16.mxu0 %v578
  %673 = vmatmul.mubr.bf16.gmra.mrb[0].mxu0 %v577
  %v674 = vpop.f32.mrb[0].mxu0
  %v675 = vadd.f32 0.0, %v674
  %v676 = vpop.f32.mrb[0].mxu0
  %v677 = vpop.f32.mrb[0].mxu0
  %v678 = vadd.f32 0.0, %v677
  %v679 = vpop.f32.mrb[0].mxu0
  %680 = vmatprep.mubr.bf16.mxu0 %v581
  %681 = vmatmul.mubr.bf16.gmra.mrb[0].mxu0 %v580
  %v682 = vpop.f32.mrb[0].mxu0
  %v683 = vadd.f32 0.0, %v682
  %v684 = vpop.f32.mrb[0].mxu0
  %v685 = vpop.f32.mrb[0].mxu0
  %v686 = vadd.f32 0.0, %v685
  %v687 = vpop.f32.mrb[0].mxu0
  %688 = vmatprep.mubr.bf16.mxu0 %v584
  %689 = vmatmul.mubr.bf16.gmra.mrb[0].mxu0 %v583
  %v690 = vpop.f32.mrb[0].mxu0
  %v691 = vadd.f32 0.0, %v690
  %v692 = vpop.f32.mrb[0].mxu0
  %v693 = vpop.f32.mrb[0].mxu0
  %v694 = vadd.f32 0.0, %v693
  %v695 = vpop.f32.mrb[0].mxu0
  %696 = vdwg.mxu0
  %697 = vmatprep.subr.bf16.mxu0 0
  %698 = vmatpush1.bf16.msra.mxu0 %v277
  %699 = vmatprep.subr.bf16.mxu0 0
  %700 = vmatpush1.bf16.msra.mxu0 %v278
  %701 = vmatprep.subr.bf16.mxu0 0
  %702 = vmatpush1.bf16.msra.mxu0 %v319
  %703 = vmatprep.subr.bf16.mxu0 0
  %704 = vmatpush1.bf16.msra.mxu0 0
  %705 = vmatprep.subr.bf16.mxu0 0
  %706 = vmatpush1.bf16.msra.mxu0 0
  %707 = vmatprep.subr.bf16.mxu0 0
  %708 = vmatpush1.bf16.msra.mxu0 0
  %709 = vmatprep.subr.bf16.mxu0 0
  %710 = vmatpush1.bf16.msra.mxu0 0
  %711 = vmatprep.subr.bf16.mxu0 0
  %712 = vmatpush1.bf16.msra.mxu0 0
  %713 = vmatprep.subr.bf16.mxu0 0
  %714 = vmatpush1.bf16.msra.mxu0 0
  %715 = vmatprep.subr.bf16.mxu0 0
  %716 = vmatpush1.bf16.msra.mxu0 0
  %717 = vmatprep.subr.bf16.mxu0 0
  %718 = vmatpush1.bf16.msra.mxu0 0
  %719 = vmatprep.subr.bf16.mxu0 0
  %720 = vmatpush1.bf16.msra.mxu0 0
  %721 = vmatprep.subr.bf16.mxu0 0
  %722 = vmatpush1.bf16.msra.mxu0 0
  %723 = vmatprep.subr.bf16.mxu0 0
  %724 = vmatpush1.bf16.msra.mxu0 0
  %725 = vmatprep.subr.bf16.mxu0 0
  %726 = vmatpush1.bf16.msra.mxu0 0
  %727 = vmatprep.subr.bf16.mxu0 0
  %728 = vmatpush1.bf16.msra.mxu0 0
  %729 = vmatprep.mubr.bf16.mxu0 0
  %730 = vmatmul.mubr.bf16.gmra.mrb[0].mxu0 %v599
  %v731 = vpop.f32.mrb[0].mxu0
  %v732 = vadd.f32 %v651, %v731
  %v733 = vpop.f32.mrb[0].mxu0
  %v734 = vpop.f32.mrb[0].mxu0
  %v735 = vadd.f32 %v654, %v734
  %v736 = vpop.f32.mrb[0].mxu0
  %737 = vmatprep.mubr.bf16.mxu0 0
  %738 = vmatmul.mubr.bf16.gmra.mrb[0].mxu0 %v602
  %v739 = vpop.f32.mrb[0].mxu0
  %v740 = vadd.f32 %v659, %v739
  %v741 = vpop.f32.mrb[0].mxu0
  %v742 = vpop.f32.mrb[0].mxu0
  %v743 = vadd.f32 %v662, %v742
  %v744 = vpop.f32.mrb[0].mxu0
  %745 = vmatprep.mubr.bf16.mxu0 0
  %746 = vmatmul.mubr.bf16.gmra.mrb[0].mxu0 %v605
  %v747 = vpop.f32.mrb[0].mxu0
  %v748 = vadd.f32 %v667, %v747
  %v749 = vpop.f32.mrb[0].mxu0
  %v750 = vpop.f32.mrb[0].mxu0
  %v751 = vadd.f32 %v670, %v750
  %v752 = vpop.f32.mrb[0].mxu0
  %753 = vmatprep.mubr.bf16.mxu0 0
  %754 = vmatmul.mubr.bf16.gmra.mrb[0].mxu0 %v608
  %v755 = vpop.f32.mrb[0].mxu0
  %v756 = vadd.f32 %v675, %v755
  %v757 = vpop.f32.mrb[0].mxu0
  %v758 = vpop.f32.mrb[0].mxu0
  %v759 = vadd.f32 %v678, %v758
  %v760 = vpop.f32.mrb[0].mxu0
  %761 = vmatprep.mubr.bf16.mxu0 0
  %762 = vmatmul.mubr.bf16.gmra.mrb[0].mxu0 %v611
  %v763 = vpop.f32.mrb[0].mxu0
  %v764 = vadd.f32 %v683, %v763
  %v765 = vpop.f32.mrb[0].mxu0
  %v766 = vpop.f32.mrb[0].mxu0
  %v767 = vadd.f32 %v686, %v766
  %v768 = vpop.f32.mrb[0].mxu0
  %769 = vmatprep.mubr.bf16.mxu0 0
  %770 = vmatmul.mubr.bf16.gmra.mrb[0].mxu0 %v614
  %v771 = vpop.f32.mrb[0].mxu0
  %v772 = vadd.f32 %v691, %v771
  %v773 = vpop.f32.mrb[0].mxu0
  %v774 = vpop.f32.mrb[0].mxu0
  %v775 = vadd.f32 %v694, %v774
  %v776 = vpop.f32.mrb[0].mxu0
  %777 = vdwg.mxu0
  %v778 = vmax.f32 %v437, %v732
  %v779 = vmax.f32 %v440, %v735
  %v780 = vmax.f32 %v445, %v740
  %v781 = vmax.f32 %v448, %v743
  %v782 = vmax.f32 %v453, %v748
  %v783 = vmax.f32 %v456, %v751
  %v784 = vmax.f32 %v461, %v756
  %v785 = vmax.f32 %v464, %v759
  %v786 = vmax.f32 %v469, %v764
  %v787 = vmax.f32 %v472, %v767
  %v788 = vmax.f32 %v477, %v772
  %v789 = vmax.f32 %v480, %v775
  %s790 = scalar_lea.vmem %s0, 288
  %v791 = vld [vmem:[%s790] sm:$0xff]
  %v792 = vld [vmem:[%s790 + $0x8] sm:$0xf]
  %v793 = vld [vmem:[%s790 + $0xc] sm:$0xff]
  %v794 = vld [vmem:[%s790 + $0x14] sm:$0xf]
  %v795 = vld [vmem:[%s790 + $0x18] sm:$0xff]
  %v796 = vld [vmem:[%s790 + $0x20] sm:$0xf]
  %v797 = vld [vmem:[%s790 + $0x24] sm:$0xff]
  %v798 = vld [vmem:[%s790 + $0x2c] sm:$0xf]
  %v799 = vld [vmem:[%s790 + $0x30] sm:$0xff]
  %v800 = vld [vmem:[%s790 + $0x38] sm:$0xf]
  %v801 = vld [vmem:[%s790 + $0x3c] sm:$0xff]
  %v802 = vld [vmem:[%s790 + $0x44] sm:$0xf]
  %v803 = vld [vmem:[%s790 + $0x48] sm:$0xff]
  %v804 = vld [vmem:[%s790 + $0x50] sm:$0xf]
  %v805 = vld [vmem:[%s790 + $0x54] sm:$0xff]
  %v806 = vld [vmem:[%s790 + $0x5c] sm:$0xf]
  %v807 = vld [vmem:[%s790 + $0x60] sm:$0xff]
  %v808 = vld [vmem:[%s790 + $0x68] sm:$0xf]
  %v809 = vld [vmem:[%s790 + $0x6c] sm:$0xff]
  %v810 = vld [vmem:[%s790 + $0x74] sm:$0xf]
  %v811 = vld [vmem:[%s790 + $0x78] sm:$0xff]
  %v812 = vld [vmem:[%s790 + $0x80] sm:$0xf]
  %v813 = vld [vmem:[%s790 + $0x84] sm:$0xff]
  %v814 = vld [vmem:[%s790 + $0x8c] sm:$0xf]
  %v839 = vunpack.c.l.b16 %v791
  %v840 = vunpack.c.h.b16 %v791
  %v841 = vunpack.c.l.b16 %v792
  %v842 = vunpack.c.l.b16 %v793
  %v843 = vunpack.c.h.b16 %v793
  %v844 = vunpack.c.l.b16 %v794
  %v845 = vunpack.c.l.b16 %v795
  %v846 = vunpack.c.h.b16 %v795
  %v847 = vunpack.c.l.b16 %v796
  %v848 = vunpack.c.l.b16 %v797
  %v849 = vunpack.c.h.b16 %v797
  %v850 = vunpack.c.l.b16 %v798
  %v851 = vunpack.c.l.b16 %v799
  %v852 = vunpack.c.h.b16 %v799
  %v853 = vunpack.c.l.b16 %v800
  %v854 = vunpack.c.l.b16 %v801
  %v855 = vunpack.c.h.b16 %v801
  %v856 = vunpack.c.l.b16 %v802
  %v857 = vunpack.c.l.b16 %v803
  %v858 = vunpack.c.h.b16 %v803
  %v859 = vunpack.c.l.b16 %v804
  %v860 = vunpack.c.l.b16 %v805
  %v861 = vunpack.c.h.b16 %v805
  %v862 = vunpack.c.l.b16 %v806
  %v863 = vunpack.c.l.b16 %v807
  %v864 = vunpack.c.h.b16 %v807
  %v865 = vunpack.c.l.b16 %v808
  %v866 = vunpack.c.l.b16 %v809
  %v867 = vunpack.c.h.b16 %v809
  %v868 = vunpack.c.l.b16 %v810
  %v869 = vunpack.c.l.b16 %v811
  %v870 = vunpack.c.h.b16 %v811
  %v871 = vunpack.c.l.b16 %v812
  %v872 = vunpack.c.l.b16 %v813
  %v873 = vunpack.c.h.b16 %v813
  %v874 = vunpack.c.l.b16 %v814
  %v875 = vpack.c.b16 %v842, %v839
  %v876 = vpack.c.b16 %v843, %v840
  %v877 = vpack.c.b16 %v844, %v841
  %v878 = vpack.c.b16 %v848, %v845
  %v879 = vpack.c.b16 %v849, %v846
  %v880 = vpack.c.b16 %v850, %v847
  %v881 = vpack.c.b16 %v854, %v851
  %v882 = vpack.c.b16 %v855, %v852
  %v883 = vpack.c.b16 %v856, %v853
  %v884 = vpack.c.b16 %v860, %v857
  %v885 = vpack.c.b16 %v861, %v858
  %v886 = vpack.c.b16 %v862, %v859
  %v887 = vpack.c.b16 %v866, %v863
  %v888 = vpack.c.b16 %v867, %v864
  %v889 = vpack.c.b16 %v868, %v865
  %v890 = vpack.c.b16 %v872, %v869
  %v891 = vpack.c.b16 %v873, %v870
  %v892 = vpack.c.b16 %v874, %v871
  %v906 = vsel %vm298, %v877, 0
  %v909 = vsel %vm298, %v880, 0
  %v912 = vsel %vm298, %v883, 0
  %v915 = vsel %vm298, %v886, 0
  %v918 = vsel %vm298, %v889, 0
  %v921 = vsel %vm298, %v892, 0
  %923 = vmatprep.subr.bf16.mxu0 0
  %924 = vmatpush1.bf16.msra.mxu0 %v261
  %925 = vmatprep.subr.bf16.mxu0 0
  %926 = vmatpush1.bf16.msra.mxu0 %v262
  %927 = vmatprep.subr.bf16.mxu0 0
  %928 = vmatpush1.bf16.msra.mxu0 %v263
  %929 = vmatprep.subr.bf16.mxu0 0
  %930 = vmatpush1.bf16.msra.mxu0 %v264
  %931 = vmatprep.subr.bf16.mxu0 0
  %932 = vmatpush1.bf16.msra.mxu0 %v265
  %933 = vmatprep.subr.bf16.mxu0 0
  %934 = vmatpush1.bf16.msra.mxu0 %v266
  %935 = vmatprep.subr.bf16.mxu0 0
  %936 = vmatpush1.bf16.msra.mxu0 %v267
  %937 = vmatprep.subr.bf16.mxu0 0
  %938 = vmatpush1.bf16.msra.mxu0 %v268
  %939 = vmatprep.subr.bf16.mxu0 0
  %940 = vmatpush1.bf16.msra.mxu0 %v269
  %941 = vmatprep.subr.bf16.mxu0 0
  %942 = vmatpush1.bf16.msra.mxu0 %v270
  %943 = vmatprep.subr.bf16.mxu0 0
  %944 = vmatpush1.bf16.msra.mxu0 %v271
  %945 = vmatprep.subr.bf16.mxu0 0
  %946 = vmatpush1.bf16.msra.mxu0 %v272
  %947 = vmatprep.subr.bf16.mxu0 0
  %948 = vmatpush1.bf16.msra.mxu0 %v273
  %949 = vmatprep.subr.bf16.mxu0 0
  %950 = vmatpush1.bf16.msra.mxu0 %v274
  %951 = vmatprep.subr.bf16.mxu0 0
  %952 = vmatpush1.bf16.msra.mxu0 %v275
  %953 = vmatprep.subr.bf16.mxu0 0
  %954 = vmatpush1.bf16.msra.mxu0 %v276
  %955 = vmatprep.mubr.bf16.mxu0 %v876
  %956 = vmatmul.mubr.bf16.gmra.mrb[0].mxu0 %v875
  %v957 = vpop.f32.mrb[0].mxu0
  %v958 = vadd.f32 0.0, %v957
  %v959 = vpop.f32.mrb[0].mxu0
  %v960 = vpop.f32.mrb[0].mxu0
  %v961 = vadd.f32 0.0, %v960
  %v962 = vpop.f32.mrb[0].mxu0
  %963 = vmatprep.mubr.bf16.mxu0 %v879
  %964 = vmatmul.mubr.bf16.gmra.mrb[0].mxu0 %v878
  %v965 = vpop.f32.mrb[0].mxu0
  %v966 = vadd.f32 0.0, %v965
  %v967 = vpop.f32.mrb[0].mxu0
  %v968 = vpop.f32.mrb[0].mxu0
  %v969 = vadd.f32 0.0, %v968
  %v970 = vpop.f32.mrb[0].mxu0
  %971 = vmatprep.mubr.bf16.mxu0 %v882
  %972 = vmatmul.mubr.bf16.gmra.mrb[0].mxu0 %v881
  %v973 = vpop.f32.mrb[0].mxu0
  %v974 = vadd.f32 0.0, %v973
  %v975 = vpop.f32.mrb[0].mxu0
  %v976 = vpop.f32.mrb[0].mxu0
  %v977 = vadd.f32 0.0, %v976
  %v978 = vpop.f32.mrb[0].mxu0
  %979 = vmatprep.mubr.bf16.mxu0 %v885
  %980 = vmatmul.mubr.bf16.gmra.mrb[0].mxu0 %v884
  %v981 = vpop.f32.mrb[0].mxu0
  %v982 = vadd.f32 0.0, %v981
  %v983 = vpop.f32.mrb[0].mxu0
  %v984 = vpop.f32.mrb[0].mxu0
  %v985 = vadd.f32 0.0, %v984
  %v986 = vpop.f32.mrb[0].mxu0
  %987 = vmatprep.mubr.bf16.mxu0 %v888
  %988 = vmatmul.mubr.bf16.gmra.mrb[0].mxu0 %v887
  %v989 = vpop.f32.mrb[0].mxu0
  %v990 = vadd.f32 0.0, %v989
  %v991 = vpop.f32.mrb[0].mxu0
  %v992 = vpop.f32.mrb[0].mxu0
  %v993 = vadd.f32 0.0, %v992
  %v994 = vpop.f32.mrb[0].mxu0
  %995 = vmatprep.mubr.bf16.mxu0 %v891
  %996 = vmatmul.mubr.bf16.gmra.mrb[0].mxu0 %v890
  %v997 = vpop.f32.mrb[0].mxu0
  %v998 = vadd.f32 0.0, %v997
  %v999 = vpop.f32.mrb[0].mxu0
  %v1000 = vpop.f32.mrb[0].mxu0
  %v1001 = vadd.f32 0.0, %v1000
  %v1002 = vpop.f32.mrb[0].mxu0
  %1003 = vdwg.mxu0
  %1004 = vmatprep.subr.bf16.mxu0 0
  %1005 = vmatpush1.bf16.msra.mxu0 %v277
  %1006 = vmatprep.subr.bf16.mxu0 0
  %1007 = vmatpush1.bf16.msra.mxu0 %v278
  %1008 = vmatprep.subr.bf16.mxu0 0
  %1009 = vmatpush1.bf16.msra.mxu0 %v319
  %1010 = vmatprep.subr.bf16.mxu0 0
  %1011 = vmatpush1.bf16.msra.mxu0 0
  %1012 = vmatprep.subr.bf16.mxu0 0
  %1013 = vmatpush1.bf16.msra.mxu0 0
  %1014 = vmatprep.subr.bf16.mxu0 0
  %1015 = vmatpush1.bf16.msra.mxu0 0
  %1016 = vmatprep.subr.bf16.mxu0 0
  %1017 = vmatpush1.bf16.msra.mxu0 0
  %1018 = vmatprep.subr.bf16.mxu0 0
  %1019 = vmatpush1.bf16.msra.mxu0 0
  %1020 = vmatprep.subr.bf16.mxu0 0
  %1021 = vmatpush1.bf16.msra.mxu0 0
  %1022 = vmatprep.subr.bf16.mxu0 0
  %1023 = vmatpush1.bf16.msra.mxu0 0
  %1024 = vmatprep.subr.bf16.mxu0 0
  %1025 = vmatpush1.bf16.msra.mxu0 0
  %1026 = vmatprep.subr.bf16.mxu0 0
  %1027 = vmatpush1.bf16.msra.mxu0 0
  %1028 = vmatprep.subr.bf16.mxu0 0
  %1029 = vmatpush1.bf16.msra.mxu0 0
  %1030 = vmatprep.subr.bf16.mxu0 0
  %1031 = vmatpush1.bf16.msra.mxu0 0
  %1032 = vmatprep.subr.bf16.mxu0 0
  %1033 = vmatpush1.bf16.msra.mxu0 0
  %1034 = vmatprep.subr.bf16.mxu0 0
  %1035 = vmatpush1.bf16.msra.mxu0 0
  %1036 = vmatprep.mubr.bf16.mxu0 0
  %1037 = vmatmul.mubr.bf16.gmra.mrb[0].mxu0 %v906
  %v1038 = vpop.f32.mrb[0].mxu0
  %v1039 = vadd.f32 %v958, %v1038
  %v1040 = vpop.f32.mrb[0].mxu0
  %v1041 = vpop.f32.mrb[0].mxu0
  %v1042 = vadd.f32 %v961, %v1041
  %v1043 = vpop.f32.mrb[0].mxu0
  %1044 = vmatprep.mubr.bf16.mxu0 0
  %1045 = vmatmul.mubr.bf16.gmra.mrb[0].mxu0 %v909
  %v1046 = vpop.f32.mrb[0].mxu0
  %v1047 = vadd.f32 %v966, %v1046
  %v1048 = vpop.f32.mrb[0].mxu0
  %v1049 = vpop.f32.mrb[0].mxu0
  %v1050 = vadd.f32 %v969, %v1049
  %v1051 = vpop.f32.mrb[0].mxu0
  %1052 = vmatprep.mubr.bf16.mxu0 0
  %1053 = vmatmul.mubr.bf16.gmra.mrb[0].mxu0 %v912
  %v1054 = vpop.f32.mrb[0].mxu0
  %v1055 = vadd.f32 %v974, %v1054
  %v1056 = vpop.f32.mrb[0].mxu0
  %v1057 = vpop.f32.mrb[0].mxu0
  %v1058 = vadd.f32 %v977, %v1057
  %v1059 = vpop.f32.mrb[0].mxu0
  %1060 = vmatprep.mubr.bf16.mxu0 0
  %1061 = vmatmul.mubr.bf16.gmra.mrb[0].mxu0 %v915
  %v1062 = vpop.f32.mrb[0].mxu0
  %v1063 = vadd.f32 %v982, %v1062
  %v1064 = vpop.f32.mrb[0].mxu0
  %v1065 = vpop.f32.mrb[0].mxu0
  %v1066 = vadd.f32 %v985, %v1065
  %v1067 = vpop.f32.mrb[0].mxu0
  %1068 = vmatprep.mubr.bf16.mxu0 0
  %1069 = vmatmul.mubr.bf16.gmra.mrb[0].mxu0 %v918
  %v1070 = vpop.f32.mrb[0].mxu0
  %v1071 = vadd.f32 %v990, %v1070
  %v1072 = vpop.f32.mrb[0].mxu0
  %v1073 = vpop.f32.mrb[0].mxu0
  %v1074 = vadd.f32 %v993, %v1073
  %v1075 = vpop.f32.mrb[0].mxu0
  %1076 = vmatprep.mubr.bf16.mxu0 0
  %1077 = vmatmul.mubr.bf16.gmra.mrb[0].mxu0 %v921
  %v1078 = vpop.f32.mrb[0].mxu0
  %v1079 = vadd.f32 %v998, %v1078
  %v1080 = vpop.f32.mrb[0].mxu0
  %v1081 = vpop.f32.mrb[0].mxu0
  %v1082 = vadd.f32 %v1001, %v1081
  %v1083 = vpop.f32.mrb[0].mxu0
  %1084 = vdwg.mxu0
  %s1085 = scalar_lea.vmem %s0, 432
  %v1086 = vld [vmem:[%s1085] sm:$0xff]
  %v1087 = vld [vmem:[%s1085 + $0x8] sm:$0xf]
  %v1088 = vld [vmem:[%s1085 + $0xc] sm:$0xff]
  %v1089 = vld [vmem:[%s1085 + $0x14] sm:$0xf]
  %v1090 = vld [vmem:[%s1085 + $0x18] sm:$0xff]
  %v1091 = vld [vmem:[%s1085 + $0x20] sm:$0xf]
  %v1092 = vld [vmem:[%s1085 + $0x24] sm:$0xff]
  %v1093 = vld [vmem:[%s1085 + $0x2c] sm:$0xf]
  %v1094 = vld [vmem:[%s1085 + $0x30] sm:$0xff]
  %v1095 = vld [vmem:[%s1085 + $0x38] sm:$0xf]
  %v1096 = vld [vmem:[%s1085 + $0x3c] sm:$0xff]
  %v1097 = vld [vmem:[%s1085 + $0x44] sm:$0xf]
  %v1098 = vld [vmem:[%s1085 + $0x48] sm:$0xff]
  %v1099 = vld [vmem:[%s1085 + $0x50] sm:$0xf]
  %v1100 = vld [vmem:[%s1085 + $0x54] sm:$0xff]
  %v1101 = vld [vmem:[%s1085 + $0x5c] sm:$0xf]
  %v1102 = vld [vmem:[%s1085 + $0x60] sm:$0xff]
  %v1103 = vld [vmem:[%s1085 + $0x68] sm:$0xf]
  %v1104 = vld [vmem:[%s1085 + $0x6c] sm:$0xff]
  %v1105 = vld [vmem:[%s1085 + $0x74] sm:$0xf]
  %v1106 = vld [vmem:[%s1085 + $0x78] sm:$0xff]
  %v1107 = vld [vmem:[%s1085 + $0x80] sm:$0xf]
  %v1108 = vld [vmem:[%s1085 + $0x84] sm:$0xff]
  %v1109 = vld [vmem:[%s1085 + $0x8c] sm:$0xf]
  %v1134 = vunpack.c.l.b16 %v1086
  %v1135 = vunpack.c.h.b16 %v1086
  %v1136 = vunpack.c.l.b16 %v1087
  %v1137 = vunpack.c.l.b16 %v1088
  %v1138 = vunpack.c.h.b16 %v1088
  %v1139 = vunpack.c.l.b16 %v1089
  %v1140 = vunpack.c.l.b16 %v1090
  %v1141 = vunpack.c.h.b16 %v1090
  %v1142 = vunpack.c.l.b16 %v1091
  %v1143 = vunpack.c.l.b16 %v1092
  %v1144 = vunpack.c.h.b16 %v1092
  %v1145 = vunpack.c.l.b16 %v1093
  %v1146 = vunpack.c.l.b16 %v1094
  %v1147 = vunpack.c.h.b16 %v1094
  %v1148 = vunpack.c.l.b16 %v1095
  %v1149 = vunpack.c.l.b16 %v1096
  %v1150 = vunpack.c.h.b16 %v1096
  %v1151 = vunpack.c.l.b16 %v1097
  %v1152 = vunpack.c.l.b16 %v1098
  %v1153 = vunpack.c.h.b16 %v1098
  %v1154 = vunpack.c.l.b16 %v1099
  %v1155 = vunpack.c.l.b16 %v1100
  %v1156 = vunpack.c.h.b16 %v1100
  %v1157 = vunpack.c.l.b16 %v1101
  %v1158 = vunpack.c.l.b16 %v1102
  %v1159 = vunpack.c.h.b16 %v1102
  %v1160 = vunpack.c.l.b16 %v1103
  %v1161 = vunpack.c.l.b16 %v1104
  %v1162 = vunpack.c.h.b16 %v1104
  %v1163 = vunpack.c.l.b16 %v1105
  %v1164 = vunpack.c.l.b16 %v1106
  %v1165 = vunpack.c.h.b16 %v1106
  %v1166 = vunpack.c.l.b16 %v1107
  %v1167 = vunpack.c.l.b16 %v1108
  %v1168 = vunpack.c.h.b16 %v1108
  %v1169 = vunpack.c.l.b16 %v1109
  %v1170 = vpack.c.b16 %v1137, %v1134
  %v1171 = vpack.c.b16 %v1138, %v1135
  %v1172 = vpack.c.b16 %v1139, %v1136
  %v1173 = vpack.c.b16 %v1143, %v1140
  %v1174 = vpack.c.b16 %v1144, %v1141
  %v1175 = vpack.c.b16 %v1145, %v1142
  %v1176 = vpack.c.b16 %v1149, %v1146
  %v1177 = vpack.c.b16 %v1150, %v1147
  %v1178 = vpack.c.b16 %v1151, %v1148
  %v1179 = vpack.c.b16 %v1155, %v1152
  %v1180 = vpack.c.b16 %v1156, %v1153
  %v1181 = vpack.c.b16 %v1157, %v1154
  %v1182 = vpack.c.b16 %v1161, %v1158
  %v1183 = vpack.c.b16 %v1162, %v1159
  %v1184 = vpack.c.b16 %v1163, %v1160
  %v1185 = vpack.c.b16 %v1167, %v1164
  %v1186 = vpack.c.b16 %v1168, %v1165
  %v1187 = vpack.c.b16 %v1169, %v1166
  %v1201 = vsel %vm298, %v1172, 0
  %v1204 = vsel %vm298, %v1175, 0
  %v1207 = vsel %vm298, %v1178, 0
  %v1210 = vsel %vm298, %v1181, 0
  %v1213 = vsel %vm298, %v1184, 0
  %v1216 = vsel %vm298, %v1187, 0
  %1218 = vmatprep.subr.bf16.mxu0 0
  %1219 = vmatpush1.bf16.msra.mxu0 %v261
  %1220 = vmatprep.subr.bf16.mxu0 0
  %1221 = vmatpush1.bf16.msra.mxu0 %v262
  %1222 = vmatprep.subr.bf16.mxu0 0
  %1223 = vmatpush1.bf16.msra.mxu0 %v263
  %1224 = vmatprep.subr.bf16.mxu0 0
  %1225 = vmatpush1.bf16.msra.mxu0 %v264
  %1226 = vmatprep.subr.bf16.mxu0 0
  %1227 = vmatpush1.bf16.msra.mxu0 %v265
  %1228 = vmatprep.subr.bf16.mxu0 0
  %1229 = vmatpush1.bf16.msra.mxu0 %v266
  %1230 = vmatprep.subr.bf16.mxu0 0
  %1231 = vmatpush1.bf16.msra.mxu0 %v267
  %1232 = vmatprep.subr.bf16.mxu0 0
  %1233 = vmatpush1.bf16.msra.mxu0 %v268
  %1234 = vmatprep.subr.bf16.mxu0 0
  %1235 = vmatpush1.bf16.msra.mxu0 %v269
  %1236 = vmatprep.subr.bf16.mxu0 0
  %1237 = vmatpush1.bf16.msra.mxu0 %v270
  %1238 = vmatprep.subr.bf16.mxu0 0
  %1239 = vmatpush1.bf16.msra.mxu0 %v271
  %1240 = vmatprep.subr.bf16.mxu0 0
  %1241 = vmatpush1.bf16.msra.mxu0 %v272
  %1242 = vmatprep.subr.bf16.mxu0 0
  %1243 = vmatpush1.bf16.msra.mxu0 %v273
  %1244 = vmatprep.subr.bf16.mxu0 0
  %1245 = vmatpush1.bf16.msra.mxu0 %v274
  %1246 = vmatprep.subr.bf16.mxu0 0
  %1247 = vmatpush1.bf16.msra.mxu0 %v275
  %1248 = vmatprep.subr.bf16.mxu0 0
  %1249 = vmatpush1.bf16.msra.mxu0 %v276
  %1250 = vmatprep.mubr.bf16.mxu0 %v1171
  %1251 = vmatmul.mubr.bf16.gmra.mrb[0].mxu0 %v1170
  %v1252 = vpop.f32.mrb[0].mxu0
  %v1253 = vadd.f32 0.0, %v1252
  %v1254 = vpop.f32.mrb[0].mxu0
  %v1255 = vpop.f32.mrb[0].mxu0
  %v1256 = vadd.f32 0.0, %v1255
  %v1257 = vpop.f32.mrb[0].mxu0
  %1258 = vmatprep.mubr.bf16.mxu0 %v1174
  %1259 = vmatmul.mubr.bf16.gmra.mrb[0].mxu0 %v1173
  %v1260 = vpop.f32.mrb[0].mxu0
  %v1261 = vadd.f32 0.0, %v1260
  %v1262 = vpop.f32.mrb[0].mxu0
  %v1263 = vpop.f32.mrb[0].mxu0
  %v1264 = vadd.f32 0.0, %v1263
  %v1265 = vpop.f32.mrb[0].mxu0
  %1266 = vmatprep.mubr.bf16.mxu0 %v1177
  %1267 = vmatmul.mubr.bf16.gmra.mrb[0].mxu0 %v1176
  %v1268 = vpop.f32.mrb[0].mxu0
  %v1269 = vadd.f32 0.0, %v1268
  %v1270 = vpop.f32.mrb[0].mxu0
  %v1271 = vpop.f32.mrb[0].mxu0
  %v1272 = vadd.f32 0.0, %v1271
  %v1273 = vpop.f32.mrb[0].mxu0
  %1274 = vmatprep.mubr.bf16.mxu0 %v1180
  %1275 = vmatmul.mubr.bf16.gmra.mrb[0].mxu0 %v1179
  %v1276 = vpop.f32.mrb[0].mxu0
  %v1277 = vadd.f32 0.0, %v1276
  %v1278 = vpop.f32.mrb[0].mxu0
  %v1279 = vpop.f32.mrb[0].mxu0
  %v1280 = vadd.f32 0.0, %v1279
  %v1281 = vpop.f32.mrb[0].mxu0
  %1282 = vmatprep.mubr.bf16.mxu0 %v1183
  %1283 = vmatmul.mubr.bf16.gmra.mrb[0].mxu0 %v1182
  %v1284 = vpop.f32.mrb[0].mxu0
  %v1285 = vadd.f32 0.0, %v1284
  %v1286 = vpop.f32.mrb[0].mxu0
  %v1287 = vpop.f32.mrb[0].mxu0
  %v1288 = vadd.f32 0.0, %v1287
  %v1289 = vpop.f32.mrb[0].mxu0
  %1290 = vmatprep.mubr.bf16.mxu0 %v1186
  %1291 = vmatmul.mubr.bf16.gmra.mrb[0].mxu0 %v1185
  %v1292 = vpop.f32.mrb[0].mxu0
  %v1293 = vadd.f32 0.0, %v1292
  %v1294 = vpop.f32.mrb[0].mxu0
  %v1295 = vpop.f32.mrb[0].mxu0
  %v1296 = vadd.f32 0.0, %v1295
  %v1297 = vpop.f32.mrb[0].mxu0
  %1298 = vdwg.mxu0
  %1299 = vmatprep.subr.bf16.mxu0 0
  %1300 = vmatpush1.bf16.msra.mxu0 %v277
  %1301 = vmatprep.subr.bf16.mxu0 0
  %1302 = vmatpush1.bf16.msra.mxu0 %v278
  %1303 = vmatprep.subr.bf16.mxu0 0
  %1304 = vmatpush1.bf16.msra.mxu0 %v319
  %1305 = vmatprep.subr.bf16.mxu0 0
  %1306 = vmatpush1.bf16.msra.mxu0 0
  %1307 = vmatprep.subr.bf16.mxu0 0
  %1308 = vmatpush1.bf16.msra.mxu0 0
  %1309 = vmatprep.subr.bf16.mxu0 0
  %1310 = vmatpush1.bf16.msra.mxu0 0
  %1311 = vmatprep.subr.bf16.mxu0 0
  %1312 = vmatpush1.bf16.msra.mxu0 0
  %1313 = vmatprep.subr.bf16.mxu0 0
  %1314 = vmatpush1.bf16.msra.mxu0 0
  %1315 = vmatprep.subr.bf16.mxu0 0
  %1316 = vmatpush1.bf16.msra.mxu0 0
  %1317 = vmatprep.subr.bf16.mxu0 0
  %1318 = vmatpush1.bf16.msra.mxu0 0
  %1319 = vmatprep.subr.bf16.mxu0 0
  %1320 = vmatpush1.bf16.msra.mxu0 0
  %1321 = vmatprep.subr.bf16.mxu0 0
  %1322 = vmatpush1.bf16.msra.mxu0 0
  %1323 = vmatprep.subr.bf16.mxu0 0
  %1324 = vmatpush1.bf16.msra.mxu0 0
  %1325 = vmatprep.subr.bf16.mxu0 0
  %1326 = vmatpush1.bf16.msra.mxu0 0
  %1327 = vmatprep.subr.bf16.mxu0 0
  %1328 = vmatpush1.bf16.msra.mxu0 0
  %1329 = vmatprep.subr.bf16.mxu0 0
  %1330 = vmatpush1.bf16.msra.mxu0 0
  %1331 = vmatprep.mubr.bf16.mxu0 0
  %1332 = vmatmul.mubr.bf16.gmra.mrb[0].mxu0 %v1201
  %v1333 = vpop.f32.mrb[0].mxu0
  %v1334 = vadd.f32 %v1253, %v1333
  %v1335 = vpop.f32.mrb[0].mxu0
  %v1336 = vpop.f32.mrb[0].mxu0
  %v1337 = vadd.f32 %v1256, %v1336
  %v1338 = vpop.f32.mrb[0].mxu0
  %1339 = vmatprep.mubr.bf16.mxu0 0
  %1340 = vmatmul.mubr.bf16.gmra.mrb[0].mxu0 %v1204
  %v1341 = vpop.f32.mrb[0].mxu0
  %v1342 = vadd.f32 %v1261, %v1341
  %v1343 = vpop.f32.mrb[0].mxu0
  %v1344 = vpop.f32.mrb[0].mxu0
  %v1345 = vadd.f32 %v1264, %v1344
  %v1346 = vpop.f32.mrb[0].mxu0
  %1347 = vmatprep.mubr.bf16.mxu0 0
  %1348 = vmatmul.mubr.bf16.gmra.mrb[0].mxu0 %v1207
  %v1349 = vpop.f32.mrb[0].mxu0
  %v1350 = vadd.f32 %v1269, %v1349
  %v1351 = vpop.f32.mrb[0].mxu0
  %v1352 = vpop.f32.mrb[0].mxu0
  %v1353 = vadd.f32 %v1272, %v1352
  %v1354 = vpop.f32.mrb[0].mxu0
  %1355 = vmatprep.mubr.bf16.mxu0 0
  %1356 = vmatmul.mubr.bf16.gmra.mrb[0].mxu0 %v1210
  %v1357 = vpop.f32.mrb[0].mxu0
  %v1358 = vadd.f32 %v1277, %v1357
  %v1359 = vpop.f32.mrb[0].mxu0
  %v1360 = vpop.f32.mrb[0].mxu0
  %v1361 = vadd.f32 %v1280, %v1360
  %v1362 = vpop.f32.mrb[0].mxu0
  %1363 = vmatprep.mubr.bf16.mxu0 0
  %1364 = vmatmul.mubr.bf16.gmra.mrb[0].mxu0 %v1213
  %v1365 = vpop.f32.mrb[0].mxu0
  %v1366 = vadd.f32 %v1285, %v1365
  %v1367 = vpop.f32.mrb[0].mxu0
  %v1368 = vpop.f32.mrb[0].mxu0
  %v1369 = vadd.f32 %v1288, %v1368
  %v1370 = vpop.f32.mrb[0].mxu0
  %1371 = vmatprep.mubr.bf16.mxu0 0
  %1372 = vmatmul.mubr.bf16.gmra.mrb[0].mxu0 %v1216
  %v1373 = vpop.f32.mrb[0].mxu0
  %v1374 = vadd.f32 %v1293, %v1373
  %v1375 = vpop.f32.mrb[0].mxu0
  %v1376 = vpop.f32.mrb[0].mxu0
  %v1377 = vadd.f32 %v1296, %v1376
  %v1378 = vpop.f32.mrb[0].mxu0
  %1379 = vdwg.mxu0
  %v1380 = vmax.f32 %v1039, %v1334
  %v1381 = vmax.f32 %v1042, %v1337
  %v1382 = vmax.f32 %v1047, %v1342
  %v1383 = vmax.f32 %v1050, %v1345
  %v1384 = vmax.f32 %v1055, %v1350
  %v1385 = vmax.f32 %v1058, %v1353
  %v1386 = vmax.f32 %v1063, %v1358
  %v1387 = vmax.f32 %v1066, %v1361
  %v1388 = vmax.f32 %v1071, %v1366
  %v1389 = vmax.f32 %v1074, %v1369
  %v1390 = vmax.f32 %v1079, %v1374
  %v1391 = vmax.f32 %v1082, %v1377
  %v1392 = vmax.f32 %v778, %v1380
  %v1393 = vmax.f32 %v779, %v1381
  %v1394 = vmax.f32 %v780, %v1382
  %v1395 = vmax.f32 %v781, %v1383
  %v1396 = vmax.f32 %v782, %v1384
  %v1397 = vmax.f32 %v783, %v1385
  %v1398 = vmax.f32 %v784, %v1386
  %v1399 = vmax.f32 %v785, %v1387
  %v1400 = vmax.f32 %v786, %v1388
  %v1401 = vmax.f32 %v787, %v1389
  %v1402 = vmax.f32 %v788, %v1390
  %v1403 = vmax.f32 %v789, %v1391
  %v1404 = vld [vmem:[%s2] sm:$0x1]
  %v1406 = vlaneseq
  %v1407 = vshrl.u32 %v1406, 7
  %v1408 = vsub.s32 0, %v1407
  %v1409 = vrot.slane %v1404, %v1408
  %v1411 = vadd.f32 %v1392, %v1409
  %v1412 = vadd.f32 %v1393, %v1409
  %v1413 = vadd.f32 %v1394, %v1409
  %v1414 = vadd.f32 %v1395, %v1409
  %v1415 = vadd.f32 %v1396, %v1409
  %v1416 = vadd.f32 %v1397, %v1409
  %v1417 = vadd.f32 %v1398, %v1409
  %v1418 = vadd.f32 %v1399, %v1409
  %v1419 = vadd.f32 %v1400, %v1409
  %v1420 = vadd.f32 %v1401, %v1409
  %v1421 = vadd.f32 %v1402, %v1409
  %v1422 = vadd.f32 %v1403, %v1409
  %v1423 = vmax.f32 %v1411, 0.0
  %v1424 = vmax.f32 %v1412, 0.0
  %v1425 = vmax.f32 %v1413, 0.0
  %v1426 = vmax.f32 %v1414, 0.0
  %v1427 = vmax.f32 %v1415, 0.0
  %v1428 = vmax.f32 %v1416, 0.0
  %v1429 = vmax.f32 %v1417, 0.0
  %v1430 = vmax.f32 %v1418, 0.0
  %v1431 = vmax.f32 %v1419, 0.0
  %v1432 = vmax.f32 %v1420, 0.0
  %v1433 = vmax.f32 %v1421, 0.0
  %v1434 = vmax.f32 %v1422, 0.0
  %v1435 = vpack.c.bf16 %v1423, %v1423
  %v1436 = vpack.c.bf16 %v1424, %v1424
  %v1437 = vpack.c.bf16 %v1425, %v1425
  %v1438 = vpack.c.bf16 %v1426, %v1426
  %v1439 = vpack.c.bf16 %v1427, %v1427
  %v1440 = vpack.c.bf16 %v1428, %v1428
  %v1441 = vpack.c.bf16 %v1429, %v1429
  %v1442 = vpack.c.bf16 %v1430, %v1430
  %v1443 = vpack.c.bf16 %v1431, %v1431
  %v1444 = vpack.c.bf16 %v1432, %v1432
  %v1445 = vpack.c.bf16 %v1433, %v1433
  %v1446 = vpack.c.bf16 %v1434, %v1434
  %vm1447 = vcmask 977920
  %1448 = vst.msk [vmem:[#allocation2] sm:$0xf] %vm1447, %v1435
  %1449 = vst.msk [vmem:[#allocation2 + $0x4] sm:$0xf] %vm1447, %v1436
  %1450 = vst.msk [vmem:[#allocation2 + $0x8] sm:$0xf] %vm1447, %v1437
  %1451 = vst.msk [vmem:[#allocation2 + $0xc] sm:$0xf] %vm1447, %v1438
  %1452 = vst.msk [vmem:[#allocation2 + $0x10] sm:$0xf] %vm1447, %v1439
  %1453 = vst.msk [vmem:[#allocation2 + $0x14] sm:$0xf] %vm1447, %v1440
  %1454 = vst.msk [vmem:[#allocation2 + $0x18] sm:$0xf] %vm1447, %v1441
  %1455 = vst.msk [vmem:[#allocation2 + $0x1c] sm:$0xf] %vm1447, %v1442
  %1456 = vst.msk [vmem:[#allocation2 + $0x20] sm:$0xf] %vm1447, %v1443
  %1457 = vst.msk [vmem:[#allocation2 + $0x24] sm:$0xf] %vm1447, %v1444
  %1458 = vst.msk [vmem:[#allocation2 + $0x28] sm:$0xf] %vm1447, %v1445
  %1459 = vst.msk [vmem:[#allocation2 + $0x2c] sm:$0xf] %vm1447, %v1446
  %v1460 = vld [vmem:[#allocation2] sm:$0xf]
  %v1461 = vld [vmem:[#allocation2 + $0x4] sm:$0xf]
  %v1462 = vld [vmem:[#allocation2 + $0x8] sm:$0xf]
  %v1463 = vld [vmem:[#allocation2 + $0xc] sm:$0xf]
  %v1464 = vld [vmem:[#allocation2 + $0x10] sm:$0xf]
  %v1465 = vld [vmem:[#allocation2 + $0x14] sm:$0xf]
  %v1466 = vld [vmem:[#allocation2 + $0x18] sm:$0xf]
  %v1467 = vld [vmem:[#allocation2 + $0x1c] sm:$0xf]
  %v1468 = vld [vmem:[#allocation2 + $0x20] sm:$0xf]
  %v1469 = vld [vmem:[#allocation2 + $0x24] sm:$0xf]
  %v1470 = vld [vmem:[#allocation2 + $0x28] sm:$0xf]
  %v1471 = vld [vmem:[#allocation2 + $0x2c] sm:$0xf]
  %vm1472 = vcmask 404480
  %1473 = vst.msk [vmem:[#allocation3] sm:$0xf] %vm1472, %v1460
  %1474 = vst.msk [vmem:[#allocation3 + $0x10] sm:$0xf] %vm1472, %v1461
  %1475 = vst.msk [vmem:[#allocation3 + $0x20] sm:$0xf] %vm1472, %v1462
  %1476 = vst.msk [vmem:[#allocation3 + $0x30] sm:$0xf] %vm1472, %v1463
  %1477 = vst.msk [vmem:[#allocation3 + $0x40] sm:$0xf] %vm1472, %v1464
  %1478 = vst.msk [vmem:[#allocation3 + $0x50] sm:$0xf] %vm1472, %v1465
  %1479 = vst.msk [vmem:[#allocation3 + $0x60] sm:$0xf] %vm1472, %v1466
  %1480 = vst.msk [vmem:[#allocation3 + $0x70] sm:$0xf] %vm1472, %v1467
  %1481 = vst.msk [vmem:[#allocation3 + $0x80] sm:$0xf] %vm1472, %v1468
  %1482 = vst.msk [vmem:[#allocation3 + $0x90] sm:$0xf] %vm1472, %v1469
  %1483 = vst.msk [vmem:[#allocation3 + $0xa0] sm:$0xf] %vm1472, %v1470
  %1484 = vst.msk [vmem:[#allocation3 + $0xb0] sm:$0xf] %vm1472, %v1471
  %v1485 = vld [vmem:[#allocation2] sm:$0xf]
  %v1486 = vld [vmem:[#allocation2 + $0x4] sm:$0xf]
  %v1487 = vld [vmem:[#allocation2 + $0x8] sm:$0xf]
  %v1488 = vld [vmem:[#allocation2 + $0xc] sm:$0xf]
  %v1489 = vld [vmem:[#allocation2 + $0x10] sm:$0xf]
  %v1490 = vld [vmem:[#allocation2 + $0x14] sm:$0xf]
  %v1491 = vld [vmem:[#allocation2 + $0x18] sm:$0xf]
  %v1492 = vld [vmem:[#allocation2 + $0x1c] sm:$0xf]
  %v1493 = vld [vmem:[#allocation2 + $0x20] sm:$0xf]
  %v1494 = vld [vmem:[#allocation2 + $0x24] sm:$0xf]
  %v1495 = vld [vmem:[#allocation2 + $0x28] sm:$0xf]
  %v1496 = vld [vmem:[#allocation2 + $0x2c] sm:$0xf]
  %1509 = vrot.lane.b32.xlu0 %v1485, 62
  %v1510 = vpop.permute.xlu0 %1509
  %1511 = vrot.lane.b32.xlu0 %v1486, 62
  %v1512 = vpop.permute.xlu0 %1511
  %1513 = vrot.lane.b32.xlu0 %v1487, 62
  %v1514 = vpop.permute.xlu0 %1513
  %1515 = vrot.lane.b32.xlu0 %v1488, 62
  %v1516 = vpop.permute.xlu0 %1515
  %1517 = vrot.lane.b32.xlu0 %v1489, 62
  %v1518 = vpop.permute.xlu0 %1517
  %1519 = vrot.lane.b32.xlu0 %v1490, 62
  %v1520 = vpop.permute.xlu0 %1519
  %1521 = vrot.lane.b32.xlu0 %v1491, 62
  %v1522 = vpop.permute.xlu0 %1521
  %1523 = vrot.lane.b32.xlu0 %v1492, 62
  %v1524 = vpop.permute.xlu0 %1523
  %1525 = vrot.lane.b32.xlu0 %v1493, 62
  %v1526 = vpop.permute.xlu0 %1525
  %1527 = vrot.lane.b32.xlu0 %v1494, 62
  %v1528 = vpop.permute.xlu0 %1527
  %1529 = vrot.lane.b32.xlu0 %v1495, 62
  %v1530 = vpop.permute.xlu0 %1529
  %1531 = vrot.lane.b32.xlu0 %v1496, 62
  %v1532 = vpop.permute.xlu0 %1531
  %vm1545 = vcmask 994880
  %1546 = vst.msk [vmem:[#allocation3 + $0x4] sm:$0xf] %vm1545, %v1510
  %1547 = vst.msk [vmem:[#allocation3 + $0x14] sm:$0xf] %vm1545, %v1512
  %1548 = vst.msk [vmem:[#allocation3 + $0x24] sm:$0xf] %vm1545, %v1514
  %1549 = vst.msk [vmem:[#allocation3 + $0x34] sm:$0xf] %vm1545, %v1516
  %1550 = vst.msk [vmem:[#allocation3 + $0x44] sm:$0xf] %vm1545, %v1518
  %1551 = vst.msk [vmem:[#allocation3 + $0x54] sm:$0xf] %vm1545, %v1520
  %1552 = vst.msk [vmem:[#allocation3 + $0x64] sm:$0xf] %vm1545, %v1522
  %1553 = vst.msk [vmem:[#allocation3 + $0x74] sm:$0xf] %vm1545, %v1524
  %1554 = vst.msk [vmem:[#allocation3 + $0x84] sm:$0xf] %vm1545, %v1526
  %1555 = vst.msk [vmem:[#allocation3 + $0x94] sm:$0xf] %vm1545, %v1528
  %1556 = vst.msk [vmem:[#allocation3 + $0xa4] sm:$0xf] %vm1545, %v1530
  %1557 = vst.msk [vmem:[#allocation3 + $0xb4] sm:$0xf] %vm1545, %v1532
  %v1558 = vld [vmem:[#allocation2] sm:$0xf]
  %v1559 = vld [vmem:[#allocation2 + $0x4] sm:$0xf]
  %v1560 = vld [vmem:[#allocation2 + $0x8] sm:$0xf]
  %v1561 = vld [vmem:[#allocation2 + $0xc] sm:$0xf]
  %v1562 = vld [vmem:[#allocation2 + $0x10] sm:$0xf]
  %v1563 = vld [vmem:[#allocation2 + $0x14] sm:$0xf]
  %v1564 = vld [vmem:[#allocation2 + $0x18] sm:$0xf]
  %v1565 = vld [vmem:[#allocation2 + $0x1c] sm:$0xf]
  %v1566 = vld [vmem:[#allocation2 + $0x20] sm:$0xf]
  %v1567 = vld [vmem:[#allocation2 + $0x24] sm:$0xf]
  %v1568 = vld [vmem:[#allocation2 + $0x28] sm:$0xf]
  %v1569 = vld [vmem:[#allocation2 + $0x2c] sm:$0xf]
  %1582 = vrot.lane.b32.xlu0 %v1558, 30
  %v1583 = vpop.permute.xlu0 %1582
  %1584 = vrot.lane.b32.xlu0 %v1559, 30
  %v1585 = vpop.permute.xlu0 %1584
  %1586 = vrot.lane.b32.xlu0 %v1560, 30
  %v1587 = vpop.permute.xlu0 %1586
  %1588 = vrot.lane.b32.xlu0 %v1561, 30
  %v1589 = vpop.permute.xlu0 %1588
  %1590 = vrot.lane.b32.xlu0 %v1562, 30
  %v1591 = vpop.permute.xlu0 %1590
  %1592 = vrot.lane.b32.xlu0 %v1563, 30
  %v1593 = vpop.permute.xlu0 %1592
  %1594 = vrot.lane.b32.xlu0 %v1564, 30
  %v1595 = vpop.permute.xlu0 %1594
  %1596 = vrot.lane.b32.xlu0 %v1565, 30
  %v1597 = vpop.permute.xlu0 %1596
  %1598 = vrot.lane.b32.xlu0 %v1566, 30
  %v1599 = vpop.permute.xlu0 %1598
  %1600 = vrot.lane.b32.xlu0 %v1567, 30
  %v1601 = vpop.permute.xlu0 %1600
  %1602 = vrot.lane.b32.xlu0 %v1568, 30
  %v1603 = vpop.permute.xlu0 %1602
  %1604 = vrot.lane.b32.xlu0 %v1569, 30
  %v1605 = vpop.permute.xlu0 %1604
  %vm1618 = vcmask 814480
  %1619 = vst.msk [vmem:[#allocation3] sm:$0xf] %vm1618, %v1583
  %1620 = vst.msk [vmem:[#allocation3 + $0x10] sm:$0xf] %vm1618, %v1585
  %1621 = vst.msk [vmem:[#allocation3 + $0x20] sm:$0xf] %vm1618, %v1587
  %1622 = vst.msk [vmem:[#allocation3 + $0x30] sm:$0xf] %vm1618, %v1589
  %1623 = vst.msk [vmem:[#allocation3 + $0x40] sm:$0xf] %vm1618, %v1591
  %1624 = vst.msk [vmem:[#allocation3 + $0x50] sm:$0xf] %vm1618, %v1593
  %1625 = vst.msk [vmem:[#allocation3 + $0x60] sm:$0xf] %vm1618, %v1595
  %1626 = vst.msk [vmem:[#allocation3 + $0x70] sm:$0xf] %vm1618, %v1597
  %1627 = vst.msk [vmem:[#allocation3 + $0x80] sm:$0xf] %vm1618, %v1599
  %1628 = vst.msk [vmem:[#allocation3 + $0x90] sm:$0xf] %vm1618, %v1601
  %1629 = vst.msk [vmem:[#allocation3 + $0xa0] sm:$0xf] %vm1618, %v1603
  %1630 = vst.msk [vmem:[#allocation3 + $0xb0] sm:$0xf] %vm1618, %v1605
  %v1631 = vld [vmem:[#allocation2] sm:$0xf]
  %v1632 = vld [vmem:[#allocation2 + $0x4] sm:$0xf]
  %v1633 = vld [vmem:[#allocation2 + $0x8] sm:$0xf]
  %v1634 = vld [vmem:[#allocation2 + $0xc] sm:$0xf]
  %v1635 = vld [vmem:[#allocation2 + $0x10] sm:$0xf]
  %v1636 = vld [vmem:[#allocation2 + $0x14] sm:$0xf]
  %v1637 = vld [vmem:[#allocation2 + $0x18] sm:$0xf]
  %v1638 = vld [vmem:[#allocation2 + $0x1c] sm:$0xf]
  %v1639 = vld [vmem:[#allocation2 + $0x20] sm:$0xf]
  %v1640 = vld [vmem:[#allocation2 + $0x24] sm:$0xf]
  %v1641 = vld [vmem:[#allocation2 + $0x28] sm:$0xf]
  %v1642 = vld [vmem:[#allocation2 + $0x2c] sm:$0xf]
  %1655 = vrot.lane.b32.xlu0 %v1631, 92
  %v1656 = vpop.permute.xlu0 %1655
  %1657 = vrot.lane.b32.xlu0 %v1632, 92
  %v1658 = vpop.permute.xlu0 %1657
  %1659 = vrot.lane.b32.xlu0 %v1633, 92
  %v1660 = vpop.permute.xlu0 %1659
  %1661 = vrot.lane.b32.xlu0 %v1634, 92
  %v1662 = vpop.permute.xlu0 %1661
  %1663 = vrot.lane.b32.xlu0 %v1635, 92
  %v1664 = vpop.permute.xlu0 %1663
  %1665 = vrot.lane.b32.xlu0 %v1636, 92
  %v1666 = vpop.permute.xlu0 %1665
  %1667 = vrot.lane.b32.xlu0 %v1637, 92
  %v1668 = vpop.permute.xlu0 %1667
  %1669 = vrot.lane.b32.xlu0 %v1638, 92
  %v1670 = vpop.permute.xlu0 %1669
  %1671 = vrot.lane.b32.xlu0 %v1639, 92
  %v1672 = vpop.permute.xlu0 %1671
  %1673 = vrot.lane.b32.xlu0 %v1640, 92
  %v1674 = vpop.permute.xlu0 %1673
  %1675 = vrot.lane.b32.xlu0 %v1641, 92
  %v1676 = vpop.permute.xlu0 %1675
  %1677 = vrot.lane.b32.xlu0 %v1642, 92
  %v1678 = vpop.permute.xlu0 %1677
  %v1679 = vrot.slane %v1656, 4
  %v1680 = vrot.slane %v1658, 4
  %v1681 = vrot.slane %v1660, 4
  %v1682 = vrot.slane %v1662, 4
  %v1683 = vrot.slane %v1664, 4
  %v1684 = vrot.slane %v1666, 4
  %v1685 = vrot.slane %v1668, 4
  %v1686 = vrot.slane %v1670, 4
  %v1687 = vrot.slane %v1672, 4
  %v1688 = vrot.slane %v1674, 4
  %v1689 = vrot.slane %v1676, 4
  %v1690 = vrot.slane %v1678, 4
  %vm1691 = vcmask 752640
  %v1692 = vsel %vm1691, %v1679, %v1656
  %v1693 = vsel %vm1691, %v1680, %v1658
  %v1694 = vsel %vm1691, %v1681, %v1660
  %v1695 = vsel %vm1691, %v1682, %v1662
  %v1696 = vsel %vm1691, %v1683, %v1664
  %v1697 = vsel %vm1691, %v1684, %v1666
  %v1698 = vsel %vm1691, %v1685, %v1668
  %v1699 = vsel %vm1691, %v1686, %v1670
  %v1700 = vsel %vm1691, %v1687, %v1672
  %v1701 = vsel %vm1691, %v1688, %v1674
  %v1702 = vsel %vm1691, %v1689, %v1676
  %v1703 = vsel %vm1691, %v1690, %v1678
  %vm1716 = vcmask 1044432
  %vm1717 = vcmask 359428
  %vm1718 = vmor %vm1717, %vm1716
  %1719 = vst.msk [vmem:[#allocation3 + $0x4] sm:$0xff] %vm1718, %v1692
  %1720 = vst.msk [vmem:[#allocation3 + $0x14] sm:$0xff] %vm1718, %v1693
  %1721 = vst.msk [vmem:[#allocation3 + $0x24] sm:$0xff] %vm1718, %v1694
  %1722 = vst.msk [vmem:[#allocation3 + $0x34] sm:$0xff] %vm1718, %v1695
  %1723 = vst.msk [vmem:[#allocation3 + $0x44] sm:$0xff] %vm1718, %v1696
  %1724 = vst.msk [vmem:[#allocation3 + $0x54] sm:$0xff] %vm1718, %v1697
  %1725 = vst.msk [vmem:[#allocation3 + $0x64] sm:$0xff] %vm1718, %v1698
  %1726 = vst.msk [vmem:[#allocation3 + $0x74] sm:$0xff] %vm1718, %v1699
  %1727 = vst.msk [vmem:[#allocation3 + $0x84] sm:$0xff] %vm1718, %v1700
  %1728 = vst.msk [vmem:[#allocation3 + $0x94] sm:$0xff] %vm1718, %v1701
  %1729 = vst.msk [vmem:[#allocation3 + $0xa4] sm:$0xff] %vm1718, %v1702
  %1730 = vst.msk [vmem:[#allocation3 + $0xb4] sm:$0xff] %vm1718, %v1703
  %v1731 = vld [vmem:[#allocation2] sm:$0xf]
  %v1732 = vld [vmem:[#allocation2 + $0x4] sm:$0xf]
  %v1733 = vld [vmem:[#allocation2 + $0x8] sm:$0xf]
  %v1734 = vld [vmem:[#allocation2 + $0xc] sm:$0xf]
  %v1735 = vld [vmem:[#allocation2 + $0x10] sm:$0xf]
  %v1736 = vld [vmem:[#allocation2 + $0x14] sm:$0xf]
  %v1737 = vld [vmem:[#allocation2 + $0x18] sm:$0xf]
  %v1738 = vld [vmem:[#allocation2 + $0x1c] sm:$0xf]
  %v1739 = vld [vmem:[#allocation2 + $0x20] sm:$0xf]
  %v1740 = vld [vmem:[#allocation2 + $0x24] sm:$0xf]
  %v1741 = vld [vmem:[#allocation2 + $0x28] sm:$0xf]
  %v1742 = vld [vmem:[#allocation2 + $0x2c] sm:$0xf]
  %1755 = vrot.lane.b32.xlu0 %v1731, 60
  %v1756 = vpop.permute.xlu0 %1755
  %1757 = vrot.lane.b32.xlu0 %v1732, 60
  %v1758 = vpop.permute.xlu0 %1757
  %1759 = vrot.lane.b32.xlu0 %v1733, 60
  %v1760 = vpop.permute.xlu0 %1759
  %1761 = vrot.lane.b32.xlu0 %v1734, 60
  %v1762 = vpop.permute.xlu0 %1761
  %1763 = vrot.lane.b32.xlu0 %v1735, 60
  %v1764 = vpop.permute.xlu0 %1763
  %1765 = vrot.lane.b32.xlu0 %v1736, 60
  %v1766 = vpop.permute.xlu0 %1765
  %1767 = vrot.lane.b32.xlu0 %v1737, 60
  %v1768 = vpop.permute.xlu0 %1767
  %1769 = vrot.lane.b32.xlu0 %v1738, 60
  %v1770 = vpop.permute.xlu0 %1769
  %1771 = vrot.lane.b32.xlu0 %v1739, 60
  %v1772 = vpop.permute.xlu0 %1771
  %1773 = vrot.lane.b32.xlu0 %v1740, 60
  %v1774 = vpop.permute.xlu0 %1773
  %1775 = vrot.lane.b32.xlu0 %v1741, 60
  %v1776 = vpop.permute.xlu0 %1775
  %1777 = vrot.lane.b32.xlu0 %v1742, 60
  %v1778 = vpop.permute.xlu0 %1777
  %v1779 = vrot.slane %v1756, 4
  %v1780 = vrot.slane %v1758, 4
  %v1781 = vrot.slane %v1760, 4
  %v1782 = vrot.slane %v1762, 4
  %v1783 = vrot.slane %v1764, 4
  %v1784 = vrot.slane %v1766, 4
  %v1785 = vrot.slane %v1768, 4
  %v1786 = vrot.slane %v1770, 4
  %v1787 = vrot.slane %v1772, 4
  %v1788 = vrot.slane %v1774, 4
  %v1789 = vrot.slane %v1776, 4
  %v1790 = vrot.slane %v1778, 4
  %vm1791 = vcmask 490496
  %v1792 = vsel %vm1791, %v1779, %v1756
  %v1793 = vsel %vm1791, %v1780, %v1758
  %v1794 = vsel %vm1791, %v1781, %v1760
  %v1795 = vsel %vm1791, %v1782, %v1762
  %v1796 = vsel %vm1791, %v1783, %v1764
  %v1797 = vsel %vm1791, %v1784, %v1766
  %v1798 = vsel %vm1791, %v1785, %v1768
  %v1799 = vsel %vm1791, %v1786, %v1770
  %v1800 = vsel %vm1791, %v1787, %v1772
  %v1801 = vsel %vm1791, %v1788, %v1774
  %v1802 = vsel %vm1791, %v1789, %v1776
  %v1803 = vsel %vm1791, %v1790, %v1778
  %vm1816 = vcmask 1044256
  %vm1817 = vcmask 179204
  %vm1818 = vmor %vm1817, %vm1816
  %1819 = vst.msk [vmem:[#allocation3] sm:$0xff] %vm1818, %v1792
  %1820 = vst.msk [vmem:[#allocation3 + $0x10] sm:$0xff] %vm1818, %v1793
  %1821 = vst.msk [vmem:[#allocation3 + $0x20] sm:$0xff] %vm1818, %v1794
  %1822 = vst.msk [vmem:[#allocation3 + $0x30] sm:$0xff] %vm1818, %v1795
  %1823 = vst.msk [vmem:[#allocation3 + $0x40] sm:$0xff] %vm1818, %v1796
  %1824 = vst.msk [vmem:[#allocation3 + $0x50] sm:$0xff] %vm1818, %v1797
  %1825 = vst.msk [vmem:[#allocation3 + $0x60] sm:$0xff] %vm1818, %v1798
  %1826 = vst.msk [vmem:[#allocation3 + $0x70] sm:$0xff] %vm1818, %v1799
  %1827 = vst.msk [vmem:[#allocation3 + $0x80] sm:$0xff] %vm1818, %v1800
  %1828 = vst.msk [vmem:[#allocation3 + $0x90] sm:$0xff] %vm1818, %v1801
  %1829 = vst.msk [vmem:[#allocation3 + $0xa0] sm:$0xff] %vm1818, %v1802
  %1830 = vst.msk [vmem:[#allocation3 + $0xb0] sm:$0xff] %vm1818, %v1803
  %v1831 = vld [vmem:[#allocation2] sm:$0xf]
  %v1832 = vld [vmem:[#allocation2 + $0x4] sm:$0xf]
  %v1833 = vld [vmem:[#allocation2 + $0x8] sm:$0xf]
  %v1834 = vld [vmem:[#allocation2 + $0xc] sm:$0xf]
  %v1835 = vld [vmem:[#allocation2 + $0x10] sm:$0xf]
  %v1836 = vld [vmem:[#allocation2 + $0x14] sm:$0xf]
  %v1837 = vld [vmem:[#allocation2 + $0x18] sm:$0xf]
  %v1838 = vld [vmem:[#allocation2 + $0x1c] sm:$0xf]
  %v1839 = vld [vmem:[#allocation2 + $0x20] sm:$0xf]
  %v1840 = vld [vmem:[#allocation2 + $0x24] sm:$0xf]
  %v1841 = vld [vmem:[#allocation2 + $0x28] sm:$0xf]
  %v1842 = vld [vmem:[#allocation2 + $0x2c] sm:$0xf]
  %1855 = vrot.lane.b32.xlu0 %v1831, 122
  %v1856 = vpop.permute.xlu0 %1855
  %1857 = vrot.lane.b32.xlu0 %v1832, 122
  %v1858 = vpop.permute.xlu0 %1857
  %1859 = vrot.lane.b32.xlu0 %v1833, 122
  %v1860 = vpop.permute.xlu0 %1859
  %1861 = vrot.lane.b32.xlu0 %v1834, 122
  %v1862 = vpop.permute.xlu0 %1861
  %1863 = vrot.lane.b32.xlu0 %v1835, 122
  %v1864 = vpop.permute.xlu0 %1863
  %1865 = vrot.lane.b32.xlu0 %v1836, 122
  %v1866 = vpop.permute.xlu0 %1865
  %1867 = vrot.lane.b32.xlu0 %v1837, 122
  %v1868 = vpop.permute.xlu0 %1867
  %1869 = vrot.lane.b32.xlu0 %v1838, 122
  %v1870 = vpop.permute.xlu0 %1869
  %1871 = vrot.lane.b32.xlu0 %v1839, 122
  %v1872 = vpop.permute.xlu0 %1871
  %1873 = vrot.lane.b32.xlu0 %v1840, 122
  %v1874 = vpop.permute.xlu0 %1873
  %1875 = vrot.lane.b32.xlu0 %v1841, 122
  %v1876 = vpop.permute.xlu0 %1875
  %1877 = vrot.lane.b32.xlu0 %v1842, 122
  %v1878 = vpop.permute.xlu0 %1877
  %vm1891 = vcmask 765280
  %1892 = vst.msk [vmem:[#allocation3 + $0x8] sm:$0xf] %vm1891, %v1856
  %1893 = vst.msk [vmem:[#allocation3 + $0x18] sm:$0xf] %vm1891, %v1858
  %1894 = vst.msk [vmem:[#allocation3 + $0x28] sm:$0xf] %vm1891, %v1860
  %1895 = vst.msk [vmem:[#allocation3 + $0x38] sm:$0xf] %vm1891, %v1862
  %1896 = vst.msk [vmem:[#allocation3 + $0x48] sm:$0xf] %vm1891, %v1864
  %1897 = vst.msk [vmem:[#allocation3 + $0x58] sm:$0xf] %vm1891, %v1866
  %1898 = vst.msk [vmem:[#allocation3 + $0x68] sm:$0xf] %vm1891, %v1868
  %1899 = vst.msk [vmem:[#allocation3 + $0x78] sm:$0xf] %vm1891, %v1870
  %1900 = vst.msk [vmem:[#allocation3 + $0x88] sm:$0xf] %vm1891, %v1872
  %1901 = vst.msk [vmem:[#allocation3 + $0x98] sm:$0xf] %vm1891, %v1874
  %1902 = vst.msk [vmem:[#allocation3 + $0xa8] sm:$0xf] %vm1891, %v1876
  %1903 = vst.msk [vmem:[#allocation3 + $0xb8] sm:$0xf] %vm1891, %v1878
  %v1904 = vld [vmem:[#allocation2] sm:$0xf]
  %v1905 = vld [vmem:[#allocation2 + $0x4] sm:$0xf]
  %v1906 = vld [vmem:[#allocation2 + $0x8] sm:$0xf]
  %v1907 = vld [vmem:[#allocation2 + $0xc] sm:$0xf]
  %v1908 = vld [vmem:[#allocation2 + $0x10] sm:$0xf]
  %v1909 = vld [vmem:[#allocation2 + $0x14] sm:$0xf]
  %v1910 = vld [vmem:[#allocation2 + $0x18] sm:$0xf]
  %v1911 = vld [vmem:[#allocation2 + $0x1c] sm:$0xf]
  %v1912 = vld [vmem:[#allocation2 + $0x20] sm:$0xf]
  %v1913 = vld [vmem:[#allocation2 + $0x24] sm:$0xf]
  %v1914 = vld [vmem:[#allocation2 + $0x28] sm:$0xf]
  %v1915 = vld [vmem:[#allocation2 + $0x2c] sm:$0xf]
  %1928 = vrot.lane.b32.xlu0 %v1904, 90
  %v1929 = vpop.permute.xlu0 %1928
  %1930 = vrot.lane.b32.xlu0 %v1905, 90
  %v1931 = vpop.permute.xlu0 %1930
  %1932 = vrot.lane.b32.xlu0 %v1906, 90
  %v1933 = vpop.permute.xlu0 %1932
  %1934 = vrot.lane.b32.xlu0 %v1907, 90
  %v1935 = vpop.permute.xlu0 %1934
  %1936 = vrot.lane.b32.xlu0 %v1908, 90
  %v1937 = vpop.permute.xlu0 %1936
  %1938 = vrot.lane.b32.xlu0 %v1909, 90
  %v1939 = vpop.permute.xlu0 %1938
  %1940 = vrot.lane.b32.xlu0 %v1910, 90
  %v1941 = vpop.permute.xlu0 %1940
  %1942 = vrot.lane.b32.xlu0 %v1911, 90
  %v1943 = vpop.permute.xlu0 %1942
  %1944 = vrot.lane.b32.xlu0 %v1912, 90
  %v1945 = vpop.permute.xlu0 %1944
  %1946 = vrot.lane.b32.xlu0 %v1913, 90
  %v1947 = vpop.permute.xlu0 %1946
  %1948 = vrot.lane.b32.xlu0 %v1914, 90
  %v1949 = vpop.permute.xlu0 %1948
  %1950 = vrot.lane.b32.xlu0 %v1915, 90
  %v1951 = vpop.permute.xlu0 %1950
  %vm1964 = vcmask 584880
  %1965 = vst.msk [vmem:[#allocation3 + $0x4] sm:$0xf] %vm1964, %v1929
  %1966 = vst.msk [vmem:[#allocation3 + $0x14] sm:$0xf] %vm1964, %v1931
  %1967 = vst.msk [vmem:[#allocation3 + $0x24] sm:$0xf] %vm1964, %v1933
  %1968 = vst.msk [vmem:[#allocation3 + $0x34] sm:$0xf] %vm1964, %v1935
  %1969 = vst.msk [vmem:[#allocation3 + $0x44] sm:$0xf] %vm1964, %v1937
  %1970 = vst.msk [vmem:[#allocation3 + $0x54] sm:$0xf] %vm1964, %v1939
  %1971 = vst.msk [vmem:[#allocation3 + $0x64] sm:$0xf] %vm1964, %v1941
  %1972 = vst.msk [vmem:[#allocation3 + $0x74] sm:$0xf] %vm1964, %v1943
  %1973 = vst.msk [vmem:[#allocation3 + $0x84] sm:$0xf] %vm1964, %v1945
  %1974 = vst.msk [vmem:[#allocation3 + $0x94] sm:$0xf] %vm1964, %v1947
  %1975 = vst.msk [vmem:[#allocation3 + $0xa4] sm:$0xf] %vm1964, %v1949
  %1976 = vst.msk [vmem:[#allocation3 + $0xb4] sm:$0xf] %vm1964, %v1951
  %v1977 = vld [vmem:[#allocation2] sm:$0xf]
  %v1978 = vld [vmem:[#allocation2 + $0x4] sm:$0xf]
  %v1979 = vld [vmem:[#allocation2 + $0x8] sm:$0xf]
  %v1980 = vld [vmem:[#allocation2 + $0xc] sm:$0xf]
  %v1981 = vld [vmem:[#allocation2 + $0x10] sm:$0xf]
  %v1982 = vld [vmem:[#allocation2 + $0x14] sm:$0xf]
  %v1983 = vld [vmem:[#allocation2 + $0x18] sm:$0xf]
  %v1984 = vld [vmem:[#allocation2 + $0x1c] sm:$0xf]
  %v1985 = vld [vmem:[#allocation2 + $0x20] sm:$0xf]
  %v1986 = vld [vmem:[#allocation2 + $0x24] sm:$0xf]
  %v1987 = vld [vmem:[#allocation2 + $0x28] sm:$0xf]
  %v1988 = vld [vmem:[#allocation2 + $0x2c] sm:$0xf]
  %2001 = vrot.lane.b32.xlu0 %v1977, 24
  %v2002 = vpop.permute.xlu0 %2001
  %2003 = vrot.lane.b32.xlu0 %v1978, 24
  %v2004 = vpop.permute.xlu0 %2003
  %2005 = vrot.lane.b32.xlu0 %v1979, 24
  %v2006 = vpop.permute.xlu0 %2005
  %2007 = vrot.lane.b32.xlu0 %v1980, 24
  %v2008 = vpop.permute.xlu0 %2007
  %2009 = vrot.lane.b32.xlu0 %v1981, 24
  %v2010 = vpop.permute.xlu0 %2009
  %2011 = vrot.lane.b32.xlu0 %v1982, 24
  %v2012 = vpop.permute.xlu0 %2011
  %2013 = vrot.lane.b32.xlu0 %v1983, 24
  %v2014 = vpop.permute.xlu0 %2013
  %2015 = vrot.lane.b32.xlu0 %v1984, 24
  %v2016 = vpop.permute.xlu0 %2015
  %2017 = vrot.lane.b32.xlu0 %v1985, 24
  %v2018 = vpop.permute.xlu0 %2017
  %2019 = vrot.lane.b32.xlu0 %v1986, 24
  %v2020 = vpop.permute.xlu0 %2019
  %2021 = vrot.lane.b32.xlu0 %v1987, 24
  %v2022 = vpop.permute.xlu0 %2021
  %2023 = vrot.lane.b32.xlu0 %v1988, 24
  %v2024 = vpop.permute.xlu0 %2023
  %v2025 = vrot.slane %v2002, 4
  %v2026 = vrot.slane %v2004, 4
  %v2027 = vrot.slane %v2006, 4
  %v2028 = vrot.slane %v2008, 4
  %v2029 = vrot.slane %v2010, 4
  %v2030 = vrot.slane %v2012, 4
  %v2031 = vrot.slane %v2014, 4
  %v2032 = vrot.slane %v2016, 4
  %v2033 = vrot.slane %v2018, 4
  %v2034 = vrot.slane %v2020, 4
  %v2035 = vrot.slane %v2022, 4
  %v2036 = vrot.slane %v2024, 4
  %vm2037 = vcmask 195584
  %v2038 = vsel %vm2037, %v2025, %v2002
  %v2039 = vsel %vm2037, %v2026, %v2004
  %v2040 = vsel %vm2037, %v2027, %v2006
  %v2041 = vsel %vm2037, %v2028, %v2008
  %v2042 = vsel %vm2037, %v2029, %v2010
  %v2043 = vsel %vm2037, %v2030, %v2012
  %v2044 = vsel %vm2037, %v2031, %v2014
  %v2045 = vsel %vm2037, %v2032, %v2016
  %v2046 = vsel %vm2037, %v2033, %v2018
  %v2047 = vsel %vm2037, %v2034, %v2020
  %v2048 = vsel %vm2037, %v2035, %v2022
  %v2049 = vsel %vm2037, %v2036, %v2024
  %vm2062 = vcmask 1044208
  %vm2063 = vcmask 130052
  %vm2064 = vmor %vm2063, %vm2062
  %2065 = vst.msk [vmem:[#allocation3 + $0x8] sm:$0xff] %vm2064, %v2038
  %2066 = vst.msk [vmem:[#allocation3 + $0x18] sm:$0xff] %vm2064, %v2039
  %2067 = vst.msk [vmem:[#allocation3 + $0x28] sm:$0xff] %vm2064, %v2040
  %2068 = vst.msk [vmem:[#allocation3 + $0x38] sm:$0xff] %vm2064, %v2041
  %2069 = vst.msk [vmem:[#allocation3 + $0x48] sm:$0xff] %vm2064, %v2042
  %2070 = vst.msk [vmem:[#allocation3 + $0x58] sm:$0xff] %vm2064, %v2043
  %2071 = vst.msk [vmem:[#allocation3 + $0x68] sm:$0xff] %vm2064, %v2044
  %2072 = vst.msk [vmem:[#allocation3 + $0x78] sm:$0xff] %vm2064, %v2045
  %2073 = vst.msk [vmem:[#allocation3 + $0x88] sm:$0xff] %vm2064, %v2046
  %2074 = vst.msk [vmem:[#allocation3 + $0x98] sm:$0xff] %vm2064, %v2047
  %2075 = vst.msk [vmem:[#allocation3 + $0xa8] sm:$0xff] %vm2064, %v2048
  %2076 = vst.msk [vmem:[#allocation3 + $0xb8] sm:$0xff] %vm2064, %v2049
  %v2077 = vld [vmem:[%s3] sm:$0xf]
  %v2078 = vld [vmem:[%s3 + $0x4] sm:$0xf]
  %v2079 = vld [vmem:[%s3 + $0x8] sm:$0xf]
  %v2080 = vld [vmem:[%s3 + $0xc] sm:$0xf]
  %v2081 = vld [vmem:[%s3 + $0x10] sm:$0xf]
  %v2082 = vld [vmem:[%s3 + $0x14] sm:$0xf]
  %v2083 = vld [vmem:[%s3 + $0x18] sm:$0xf]
  %v2084 = vld [vmem:[%s3 + $0x1c] sm:$0xf]
  %v2085 = vld [vmem:[%s3 + $0x20] sm:$0xf]
  %v2086 = vld [vmem:[%s3 + $0x24] sm:$0xf]
  %v2087 = vld [vmem:[%s3 + $0x28] sm:$0xf]
  %v2088 = vld [vmem:[%s3 + $0x2c] sm:$0xf]
  %v2089 = vld [vmem:[%s3 + $0x30] sm:$0xf]
  %v2090 = vld [vmem:[%s3 + $0x34] sm:$0xf]
  %v2091 = vld [vmem:[%s3 + $0x38] sm:$0xf]
  %v2092 = vld [vmem:[%s3 + $0x3c] sm:$0xf]
  %v2093 = vld [vmem:[%s3 + $0x40] sm:$0xf]
  %v2094 = vld [vmem:[%s3 + $0x44] sm:$0xf]
  %v2095 = vld [vmem:[%s3 + $0x48] sm:$0xf]
  %v2096 = vld [vmem:[%s3 + $0x4c] sm:$0xf]
  %v2097 = vld [vmem:[%s3 + $0x50] sm:$0xf]
  %v2098 = vld [vmem:[%s3 + $0x54] sm:$0xf]
  %v2099 = vld [vmem:[%s3 + $0x58] sm:$0xf]
  %v2100 = vld [vmem:[%s3 + $0x5c] sm:$0xf]
  %v2101 = vld [vmem:[%s3 + $0x60] sm:$0xf]
  %v2102 = vld [vmem:[#allocation3] sm:$0xff]
  %v2103 = vld [vmem:[#allocation3 + $0x10] sm:$0xff]
  %v2104 = vld [vmem:[#allocation3 + $0x20] sm:$0xff]
  %v2105 = vld [vmem:[#allocation3 + $0x30] sm:$0xff]
  %v2106 = vld [vmem:[#allocation3 + $0x40] sm:$0xff]
  %v2107 = vld [vmem:[#allocation3 + $0x50] sm:$0xff]
  %v2108 = vld [vmem:[#allocation3 + $0x60] sm:$0xff]
  %v2109 = vld [vmem:[#allocation3 + $0x70] sm:$0xff]
  %v2110 = vld [vmem:[#allocation3 + $0x4] sm:$0xff]
  %v2111 = vld [vmem:[#allocation3 + $0xc] sm:$0xf]
  %v2112 = vld [vmem:[#allocation3 + $0x14] sm:$0xff]
  %v2113 = vld [vmem:[#allocation3 + $0x1c] sm:$0xf]
  %v2114 = vld [vmem:[#allocation3 + $0x24] sm:$0xff]
  %v2115 = vld [vmem:[#allocation3 + $0x2c] sm:$0xf]
  %v2116 = vld [vmem:[#allocation3 + $0x34] sm:$0xff]
  %v2117 = vld [vmem:[#allocation3 + $0x3c] sm:$0xf]
  %v2118 = vld [vmem:[#allocation3 + $0x44] sm:$0xff]
  %v2119 = vld [vmem:[#allocation3 + $0x4c] sm:$0xf]
  %v2120 = vld [vmem:[#allocation3 + $0x54] sm:$0xff]
  %v2121 = vld [vmem:[#allocation3 + $0x5c] sm:$0xf]
  %v2122 = vld [vmem:[#allocation3 + $0x64] sm:$0xff]
  %v2123 = vld [vmem:[#allocation3 + $0x6c] sm:$0xf]
  %v2124 = vld [vmem:[#allocation3 + $0x74] sm:$0xff]
  %v2125 = vld [vmem:[#allocation3 + $0x7c] sm:$0xf]
  %s2126 = scalar_lea.vmem %s3, 100
  %v2127 = vld [vmem:[%s2126] sm:$0xf]
  %v2128 = vld [vmem:[%s2126 + $0x4] sm:$0xf]
  %v2129 = vld [vmem:[%s2126 + $0x8] sm:$0xf]
  %v2130 = vld [vmem:[%s2126 + $0xc] sm:$0xf]
  %v2131 = vld [vmem:[%s2126 + $0x10] sm:$0xf]
  %v2132 = vld [vmem:[%s2126 + $0x14] sm:$0xf]
  %v2133 = vld [vmem:[%s2126 + $0x18] sm:$0xf]
  %v2134 = vld [vmem:[%s2126 + $0x1c] sm:$0xf]
  %v2135 = vld [vmem:[%s2126 + $0x20] sm:$0xf]
  %v2136 = vld [vmem:[%s2126 + $0x24] sm:$0xf]
  %v2137 = vld [vmem:[%s2126 + $0x28] sm:$0xf]
  %v2138 = vld [vmem:[%s2126 + $0x2c] sm:$0xf]
  %v2139 = vld [vmem:[%s2126 + $0x30] sm:$0xf]
  %v2140 = vld [vmem:[%s2126 + $0x34] sm:$0xf]
  %v2141 = vld [vmem:[%s2126 + $0x38] sm:$0xf]
  %v2142 = vld [vmem:[%s2126 + $0x3c] sm:$0xf]
  %v2143 = vld [vmem:[%s2126 + $0x40] sm:$0xf]
  %v2144 = vld [vmem:[%s2126 + $0x44] sm:$0xf]
  %v2145 = vld [vmem:[%s2126 + $0x48] sm:$0xf]
  %v2146 = vld [vmem:[%s2126 + $0x4c] sm:$0xf]
  %v2147 = vld [vmem:[%s2126 + $0x50] sm:$0xf]
  %v2148 = vld [vmem:[%s2126 + $0x54] sm:$0xf]
  %v2149 = vld [vmem:[%s2126 + $0x58] sm:$0xf]
  %v2150 = vld [vmem:[%s2126 + $0x5c] sm:$0xf]
  %v2151 = vld [vmem:[%s2126 + $0x60] sm:$0xf]
  %s2152 = scalar_lea.vmem [#allocation3], 16
  %v2153 = vld [vmem:[%s2152] sm:$0xff]
  %v2154 = vld [vmem:[%s2152 + $0x10] sm:$0xff]
  %v2155 = vld [vmem:[%s2152 + $0x20] sm:$0xff]
  %v2156 = vld [vmem:[%s2152 + $0x30] sm:$0xff]
  %v2157 = vld [vmem:[%s2152 + $0x40] sm:$0xff]
  %v2158 = vld [vmem:[%s2152 + $0x50] sm:$0xff]
  %v2159 = vld [vmem:[%s2152 + $0x60] sm:$0xff]
  %v2160 = vld [vmem:[%s2152 + $0x70] sm:$0xff]
  %v2169 = vunpack.c.l.b16 %v2153
  %v2170 = vunpack.c.h.b16 %v2153
  %v2171 = vunpack.c.l.b16 %v2154
  %v2172 = vunpack.c.h.b16 %v2154
  %v2173 = vunpack.c.l.b16 %v2155
  %v2174 = vunpack.c.h.b16 %v2155
  %v2175 = vunpack.c.l.b16 %v2156
  %v2176 = vunpack.c.h.b16 %v2156
  %v2177 = vunpack.c.l.b16 %v2157
  %v2178 = vunpack.c.h.b16 %v2157
  %v2179 = vunpack.c.l.b16 %v2158
  %v2180 = vunpack.c.h.b16 %v2158
  %v2181 = vunpack.c.l.b16 %v2159
  %v2182 = vunpack.c.h.b16 %v2159
  %v2183 = vunpack.c.l.b16 %v2160
  %v2184 = vunpack.c.h.b16 %v2160
  %v2185 = vpack.c.b16 %v2171, %v2169
  %v2186 = vpack.c.b16 %v2172, %v2170
  %v2187 = vpack.c.b16 %v2175, %v2173
  %v2188 = vpack.c.b16 %v2176, %v2174
  %v2189 = vpack.c.b16 %v2179, %v2177
  %v2190 = vpack.c.b16 %v2180, %v2178
  %v2191 = vpack.c.b16 %v2183, %v2181
  %v2192 = vpack.c.b16 %v2184, %v2182
  %v2222 = vunpack.c.l.b16 %v2127
  %v2223 = vunpack.c.l.b16 %v2128
  %v2224 = vunpack.c.l.b16 %v2129
  %v2225 = vunpack.c.l.b16 %v2130
  %v2226 = vunpack.c.l.b16 %v2131
  %v2227 = vunpack.c.l.b16 %v2132
  %v2228 = vunpack.c.l.b16 %v2133
  %v2229 = vunpack.c.l.b16 %v2134
  %v2230 = vunpack.c.l.b16 %v2135
  %v2231 = vunpack.c.l.b16 %v2136
  %v2232 = vunpack.c.l.b16 %v2137
  %v2233 = vunpack.c.l.b16 %v2138
  %v2234 = vunpack.c.l.b16 %v2139
  %v2235 = vunpack.c.l.b16 %v2140
  %v2236 = vunpack.c.l.b16 %v2141
  %v2237 = vunpack.c.l.b16 %v2142
  %v2238 = vunpack.c.l.b16 %v2143
  %v2239 = vunpack.c.l.b16 %v2144
  %v2240 = vunpack.c.l.b16 %v2145
  %v2241 = vunpack.c.l.b16 %v2146
  %v2242 = vunpack.c.l.b16 %v2147
  %v2243 = vunpack.c.l.b16 %v2148
  %v2244 = vunpack.c.l.b16 %v2149
  %v2245 = vunpack.c.l.b16 %v2150
  %v2246 = vunpack.c.l.b16 %v2151
  %v2247 = vpack.c.b16 %v2223, %v2222
  %v2248 = vpack.c.b16 %v2225, %v2224
  %v2249 = vpack.c.b16 %v2227, %v2226
  %v2250 = vpack.c.b16 %v2229, %v2228
  %v2251 = vpack.c.b16 %v2231, %v2230
  %v2252 = vpack.c.b16 %v2233, %v2232
  %v2253 = vpack.c.b16 %v2235, %v2234
  %v2254 = vpack.c.b16 %v2237, %v2236
  %v2255 = vpack.c.b16 %v2239, %v2238
  %v2256 = vpack.c.b16 %v2241, %v2240
  %v2257 = vpack.c.b16 %v2243, %v2242
  %v2258 = vpack.c.b16 %v2245, %v2244
  %v2259 = vpack.c.b16 %v2246, %v2246
  %vm2272 = vcmask 588800
  %v2274 = vsel %vm2272, %v2186, 0
  %v2277 = vsel %vm2272, %v2188, 0
  %v2280 = vsel %vm2272, %v2190, 0
  %v2283 = vsel %vm2272, %v2192, 0
  %vm2285 = vcmask 1043456
  %v2287 = vsel %vm2285, %v2259, 0
  %2289 = vmatprep.subr.bf16.mxu0 0
  %2290 = vmatpush1.bf16.msra.mxu0 %v2247
  %2291 = vmatprep.subr.bf16.mxu0 0
  %2292 = vmatpush1.bf16.msra.mxu0 %v2248
  %2293 = vmatprep.subr.bf16.mxu0 0
  %2294 = vmatpush1.bf16.msra.mxu0 %v2249
  %2295 = vmatprep.subr.bf16.mxu0 0
  %2296 = vmatpush1.bf16.msra.mxu0 %v2250
  %2297 = vmatprep.subr.bf16.mxu0 0
  %2298 = vmatpush1.bf16.msra.mxu0 %v2251
  %2299 = vmatprep.subr.bf16.mxu0 0
  %2300 = vmatpush1.bf16.msra.mxu0 %v2252
  %2301 = vmatprep.subr.bf16.mxu0 0
  %2302 = vmatpush1.bf16.msra.mxu0 %v2253
  %2303 = vmatprep.subr.bf16.mxu0 0
  %2304 = vmatpush1.bf16.msra.mxu0 %v2254
  %2305 = vmatprep.subr.bf16.mxu0 0
  %2306 = vmatpush1.bf16.msra.mxu0 %v2255
  %2307 = vmatprep.subr.bf16.mxu0 0
  %2308 = vmatpush1.bf16.msra.mxu0 %v2256
  %2309 = vmatprep.subr.bf16.mxu0 0
  %2310 = vmatpush1.bf16.msra.mxu0 %v2257
  %2311 = vmatprep.subr.bf16.mxu0 0
  %2312 = vmatpush1.bf16.msra.mxu0 %v2258
  %2313 = vmatprep.subr.bf16.mxu0 0
  %2314 = vmatpush1.bf16.msra.mxu0 %v2287
  %2315 = vmatprep.subr.bf16.mxu0 0
  %2316 = vmatpush1.bf16.msra.mxu0 0
  %2317 = vmatprep.subr.bf16.mxu0 0
  %2318 = vmatpush1.bf16.msra.mxu0 0
  %2319 = vmatprep.subr.bf16.mxu0 0
  %2320 = vmatpush1.bf16.msra.mxu0 0
  %2321 = vmatprep.mubr.bf16.mxu0 %v2274
  %2322 = vmatmul.mubr.bf16.gmra.mrb[0].mxu0 %v2185
  %v2323 = vpop.f32.mrb[0].mxu0
  %v2324 = vadd.f32 0.0, %v2323
  %v2325 = vpop.f32.mrb[0].mxu0
  %v2326 = vpop.f32.mrb[0].mxu0
  %v2327 = vadd.f32 0.0, %v2326
  %v2328 = vpop.f32.mrb[0].mxu0
  %2329 = vmatprep.mubr.bf16.mxu0 %v2277
  %2330 = vmatmul.mubr.bf16.gmra.mrb[0].mxu0 %v2187
  %v2331 = vpop.f32.mrb[0].mxu0
  %v2332 = vadd.f32 0.0, %v2331
  %v2333 = vpop.f32.mrb[0].mxu0
  %v2334 = vpop.f32.mrb[0].mxu0
  %v2335 = vadd.f32 0.0, %v2334
  %v2336 = vpop.f32.mrb[0].mxu0
  %2337 = vmatprep.mubr.bf16.mxu0 %v2280
  %2338 = vmatmul.mubr.bf16.gmra.mrb[0].mxu0 %v2189
  %v2339 = vpop.f32.mrb[0].mxu0
  %v2340 = vadd.f32 0.0, %v2339
  %v2341 = vpop.f32.mrb[0].mxu0
  %v2342 = vpop.f32.mrb[0].mxu0
  %v2343 = vadd.f32 0.0, %v2342
  %v2344 = vpop.f32.mrb[0].mxu0
  %2345 = vmatprep.mubr.bf16.mxu0 %v2283
  %2346 = vmatmul.mubr.bf16.gmra.mrb[0].mxu0 %v2191
  %v2347 = vpop.f32.mrb[0].mxu0
  %v2348 = vadd.f32 0.0, %v2347
  %v2349 = vpop.f32.mrb[0].mxu0
  %v2350 = vpop.f32.mrb[0].mxu0
  %v2351 = vadd.f32 0.0, %v2350
  %v2352 = vpop.f32.mrb[0].mxu0
  %2353 = vdwg.mxu0
  %v2362 = vunpack.c.l.b16 %v2102
  %v2363 = vunpack.c.h.b16 %v2102
  %v2364 = vunpack.c.l.b16 %v2103
  %v2365 = vunpack.c.h.b16 %v2103
  %v2366 = vunpack.c.l.b16 %v2104
  %v2367 = vunpack.c.h.b16 %v2104
  %v2368 = vunpack.c.l.b16 %v2105
  %v2369 = vunpack.c.h.b16 %v2105
  %v2370 = vunpack.c.l.b16 %v2106
  %v2371 = vunpack.c.h.b16 %v2106
  %v2372 = vunpack.c.l.b16 %v2107
  %v2373 = vunpack.c.h.b16 %v2107
  %v2374 = vunpack.c.l.b16 %v2108
  %v2375 = vunpack.c.h.b16 %v2108
  %v2376 = vunpack.c.l.b16 %v2109
  %v2377 = vunpack.c.h.b16 %v2109
  %v2378 = vpack.c.b16 %v2364, %v2362
  %v2379 = vpack.c.b16 %v2365, %v2363
  %v2380 = vpack.c.b16 %v2368, %v2366
  %v2381 = vpack.c.b16 %v2369, %v2367
  %v2382 = vpack.c.b16 %v2372, %v2370
  %v2383 = vpack.c.b16 %v2373, %v2371
  %v2384 = vpack.c.b16 %v2376, %v2374
  %v2385 = vpack.c.b16 %v2377, %v2375
  %v2415 = vunpack.c.l.b16 %v2077
  %v2416 = vunpack.c.l.b16 %v2078
  %v2417 = vunpack.c.l.b16 %v2079
  %v2418 = vunpack.c.l.b16 %v2080
  %v2419 = vunpack.c.l.b16 %v2081
  %v2420 = vunpack.c.l.b16 %v2082
  %v2421 = vunpack.c.l.b16 %v2083
  %v2422 = vunpack.c.l.b16 %v2084
  %v2423 = vunpack.c.l.b16 %v2085
  %v2424 = vunpack.c.l.b16 %v2086
  %v2425 = vunpack.c.l.b16 %v2087
  %v2426 = vunpack.c.l.b16 %v2088
  %v2427 = vunpack.c.l.b16 %v2089
  %v2428 = vunpack.c.l.b16 %v2090
  %v2429 = vunpack.c.l.b16 %v2091
  %v2430 = vunpack.c.l.b16 %v2092
  %v2431 = vunpack.c.l.b16 %v2093
  %v2432 = vunpack.c.l.b16 %v2094
  %v2433 = vunpack.c.l.b16 %v2095
  %v2434 = vunpack.c.l.b16 %v2096
  %v2435 = vunpack.c.l.b16 %v2097
  %v2436 = vunpack.c.l.b16 %v2098
  %v2437 = vunpack.c.l.b16 %v2099
  %v2438 = vunpack.c.l.b16 %v2100
  %v2439 = vunpack.c.l.b16 %v2101
  %v2440 = vpack.c.b16 %v2416, %v2415
  %v2441 = vpack.c.b16 %v2418, %v2417
  %v2442 = vpack.c.b16 %v2420, %v2419
  %v2443 = vpack.c.b16 %v2422, %v2421
  %v2444 = vpack.c.b16 %v2424, %v2423
  %v2445 = vpack.c.b16 %v2426, %v2425
  %v2446 = vpack.c.b16 %v2428, %v2427
  %v2447 = vpack.c.b16 %v2430, %v2429
  %v2448 = vpack.c.b16 %v2432, %v2431
  %v2449 = vpack.c.b16 %v2434, %v2433
  %v2450 = vpack.c.b16 %v2436, %v2435
  %v2451 = vpack.c.b16 %v2438, %v2437
  %v2452 = vpack.c.b16 %v2439, %v2439
  %v2466 = vsel %vm2272, %v2379, 0
  %v2469 = vsel %vm2272, %v2381, 0
  %v2472 = vsel %vm2272, %v2383, 0
  %v2475 = vsel %vm2272, %v2385, 0
  %v2478 = vsel %vm2285, %v2452, 0
  %2480 = vmatprep.subr.bf16.mxu0 0
  %2481 = vmatpush1.bf16.msra.mxu0 %v2440
  %2482 = vmatprep.subr.bf16.mxu0 0
  %2483 = vmatpush1.bf16.msra.mxu0 %v2441
  %2484 = vmatprep.subr.bf16.mxu0 0
  %2485 = vmatpush1.bf16.msra.mxu0 %v2442
  %2486 = vmatprep.subr.bf16.mxu0 0
  %2487 = vmatpush1.bf16.msra.mxu0 %v2443
  %2488 = vmatprep.subr.bf16.mxu0 0
  %2489 = vmatpush1.bf16.msra.mxu0 %v2444
  %2490 = vmatprep.subr.bf16.mxu0 0
  %2491 = vmatpush1.bf16.msra.mxu0 %v2445
  %2492 = vmatprep.subr.bf16.mxu0 0
  %2493 = vmatpush1.bf16.msra.mxu0 %v2446
  %2494 = vmatprep.subr.bf16.mxu0 0
  %2495 = vmatpush1.bf16.msra.mxu0 %v2447
  %2496 = vmatprep.subr.bf16.mxu0 0
  %2497 = vmatpush1.bf16.msra.mxu0 %v2448
  %2498 = vmatprep.subr.bf16.mxu0 0
  %2499 = vmatpush1.bf16.msra.mxu0 %v2449
  %2500 = vmatprep.subr.bf16.mxu0 0
  %2501 = vmatpush1.bf16.msra.mxu0 %v2450
  %2502 = vmatprep.subr.bf16.mxu0 0
  %2503 = vmatpush1.bf16.msra.mxu0 %v2451
  %2504 = vmatprep.subr.bf16.mxu0 0
  %2505 = vmatpush1.bf16.msra.mxu0 %v2478
  %2506 = vmatprep.subr.bf16.mxu0 0
  %2507 = vmatpush1.bf16.msra.mxu0 0
  %2508 = vmatprep.subr.bf16.mxu0 0
  %2509 = vmatpush1.bf16.msra.mxu0 0
  %2510 = vmatprep.subr.bf16.mxu0 0
  %2511 = vmatpush1.bf16.msra.mxu0 0
  %2512 = vmatprep.mubr.bf16.mxu0 %v2466
  %2513 = vmatmul.mubr.bf16.gmra.mrb[0].mxu0 %v2378
  %v2514 = vpop.f32.mrb[0].mxu0
  %v2515 = vadd.f32 %v2324, %v2514
  %v2516 = vpop.f32.mrb[0].mxu0
  %v2517 = vpop.f32.mrb[0].mxu0
  %v2518 = vadd.f32 %v2327, %v2517
  %v2519 = vpop.f32.mrb[0].mxu0
  %2520 = vmatprep.mubr.bf16.mxu0 %v2469
  %2521 = vmatmul.mubr.bf16.gmra.mrb[0].mxu0 %v2380
  %v2522 = vpop.f32.mrb[0].mxu0
  %v2523 = vadd.f32 %v2332, %v2522
  %v2524 = vpop.f32.mrb[0].mxu0
  %v2525 = vpop.f32.mrb[0].mxu0
  %v2526 = vadd.f32 %v2335, %v2525
  %v2527 = vpop.f32.mrb[0].mxu0
  %2528 = vmatprep.mubr.bf16.mxu0 %v2472
  %2529 = vmatmul.mubr.bf16.gmra.mrb[0].mxu0 %v2382
  %v2530 = vpop.f32.mrb[0].mxu0
  %v2531 = vadd.f32 %v2340, %v2530
  %v2532 = vpop.f32.mrb[0].mxu0
  %v2533 = vpop.f32.mrb[0].mxu0
  %v2534 = vadd.f32 %v2343, %v2533
  %v2535 = vpop.f32.mrb[0].mxu0
  %2536 = vmatprep.mubr.bf16.mxu0 %v2475
  %2537 = vmatmul.mubr.bf16.gmra.mrb[0].mxu0 %v2384
  %v2538 = vpop.f32.mrb[0].mxu0
  %v2539 = vadd.f32 %v2348, %v2538
  %v2540 = vpop.f32.mrb[0].mxu0
  %v2541 = vpop.f32.mrb[0].mxu0
  %v2542 = vadd.f32 %v2351, %v2541
  %v2543 = vpop.f32.mrb[0].mxu0
  %2544 = vdwg.mxu0
  %v2545 = vld [vmem:[%s2152 + $0x4] sm:$0xff]
  %v2546 = vld [vmem:[%s2152 + $0xc] sm:$0xf]
  %v2547 = vld [vmem:[%s2152 + $0x14] sm:$0xff]
  %v2548 = vld [vmem:[%s2152 + $0x1c] sm:$0xf]
  %v2549 = vld [vmem:[%s2152 + $0x24] sm:$0xff]
  %v2550 = vld [vmem:[%s2152 + $0x2c] sm:$0xf]
  %v2551 = vld [vmem:[%s2152 + $0x34] sm:$0xff]
  %v2552 = vld [vmem:[%s2152 + $0x3c] sm:$0xf]
  %v2553 = vld [vmem:[%s2152 + $0x44] sm:$0xff]
  %v2554 = vld [vmem:[%s2152 + $0x4c] sm:$0xf]
  %v2555 = vld [vmem:[%s2152 + $0x54] sm:$0xff]
  %v2556 = vld [vmem:[%s2152 + $0x5c] sm:$0xf]
  %v2557 = vld [vmem:[%s2152 + $0x64] sm:$0xff]
  %v2558 = vld [vmem:[%s2152 + $0x6c] sm:$0xf]
  %v2559 = vld [vmem:[%s2152 + $0x74] sm:$0xff]
  %v2560 = vld [vmem:[%s2152 + $0x7c] sm:$0xf]
  %v2577 = vunpack.c.l.b16 %v2545
  %v2578 = vunpack.c.h.b16 %v2545
  %v2579 = vunpack.c.l.b16 %v2546
  %v2580 = vunpack.c.l.b16 %v2547
  %v2581 = vunpack.c.h.b16 %v2547
  %v2582 = vunpack.c.l.b16 %v2548
  %v2583 = vunpack.c.l.b16 %v2549
  %v2584 = vunpack.c.h.b16 %v2549
  %v2585 = vunpack.c.l.b16 %v2550
  %v2586 = vunpack.c.l.b16 %v2551
  %v2587 = vunpack.c.h.b16 %v2551
  %v2588 = vunpack.c.l.b16 %v2552
  %v2589 = vunpack.c.l.b16 %v2553
  %v2590 = vunpack.c.h.b16 %v2553
  %v2591 = vunpack.c.l.b16 %v2554
  %v2592 = vunpack.c.l.b16 %v2555
  %v2593 = vunpack.c.h.b16 %v2555
  %v2594 = vunpack.c.l.b16 %v2556
  %v2595 = vunpack.c.l.b16 %v2557
  %v2596 = vunpack.c.h.b16 %v2557
  %v2597 = vunpack.c.l.b16 %v2558
  %v2598 = vunpack.c.l.b16 %v2559
  %v2599 = vunpack.c.h.b16 %v2559
  %v2600 = vunpack.c.l.b16 %v2560
  %v2601 = vpack.c.b16 %v2580, %v2577
  %v2602 = vpack.c.b16 %v2581, %v2578
  %v2603 = vpack.c.b16 %v2582, %v2579
  %v2604 = vpack.c.b16 %v2586, %v2583
  %v2605 = vpack.c.b16 %v2587, %v2584
  %v2606 = vpack.c.b16 %v2588, %v2585
  %v2607 = vpack.c.b16 %v2592, %v2589
  %v2608 = vpack.c.b16 %v2593, %v2590
  %v2609 = vpack.c.b16 %v2594, %v2591
  %v2610 = vpack.c.b16 %v2598, %v2595
  %v2611 = vpack.c.b16 %v2599, %v2596
  %v2612 = vpack.c.b16 %v2600, %v2597
  %2613 = vrot.lane.b32.xlu0 %v2601, 56
  %v2614 = vpop.permute.xlu0 %2613
  %2615 = vrot.lane.b32.xlu0 %v2602, 56
  %v2616 = vpop.permute.xlu0 %2615
  %2617 = vrot.lane.b32.xlu0 %v2603, 56
  %v2618 = vpop.permute.xlu0 %2617
  %2619 = vrot.lane.b32.xlu0 %v2604, 56
  %v2620 = vpop.permute.xlu0 %2619
  %2621 = vrot.lane.b32.xlu0 %v2605, 56
  %v2622 = vpop.permute.xlu0 %2621
  %2623 = vrot.lane.b32.xlu0 %v2606, 56
  %v2624 = vpop.permute.xlu0 %2623
  %2625 = vrot.lane.b32.xlu0 %v2607, 56
  %v2626 = vpop.permute.xlu0 %2625
  %2627 = vrot.lane.b32.xlu0 %v2608, 56
  %v2628 = vpop.permute.xlu0 %2627
  %2629 = vrot.lane.b32.xlu0 %v2609, 56
  %v2630 = vpop.permute.xlu0 %2629
  %2631 = vrot.lane.b32.xlu0 %v2610, 56
  %v2632 = vpop.permute.xlu0 %2631
  %2633 = vrot.lane.b32.xlu0 %v2611, 56
  %v2634 = vpop.permute.xlu0 %2633
  %2635 = vrot.lane.b32.xlu0 %v2612, 56
  %v2636 = vpop.permute.xlu0 %2635
  %vm2637 = vcmask 457728
  %v2638 = vsel %vm2637, %v2614, %v2616
  %v2639 = vsel %vm2637, %v2616, %v2618
  %v2640 = vsel %vm2637, %v2620, %v2622
  %v2641 = vsel %vm2637, %v2622, %v2624
  %v2642 = vsel %vm2637, %v2626, %v2628
  %v2643 = vsel %vm2637, %v2628, %v2630
  %v2644 = vsel %vm2637, %v2632, %v2634
  %v2645 = vsel %vm2637, %v2634, %v2636
  %v2651 = vsel %vm2272, %v2639, 0
  %v2654 = vsel %vm2272, %v2641, 0
  %v2657 = vsel %vm2272, %v2643, 0
  %v2660 = vsel %vm2272, %v2645, 0
  %2662 = vmatprep.subr.bf16.mxu0 0
  %2663 = vmatpush1.bf16.msra.mxu0 %v2247
  %2664 = vmatprep.subr.bf16.mxu0 0
  %2665 = vmatpush1.bf16.msra.mxu0 %v2248
  %2666 = vmatprep.subr.bf16.mxu0 0
  %2667 = vmatpush1.bf16.msra.mxu0 %v2249
  %2668 = vmatprep.subr.bf16.mxu0 0
  %2669 = vmatpush1.bf16.msra.mxu0 %v2250
  %2670 = vmatprep.subr.bf16.mxu0 0
  %2671 = vmatpush1.bf16.msra.mxu0 %v2251
  %2672 = vmatprep.subr.bf16.mxu0 0
  %2673 = vmatpush1.bf16.msra.mxu0 %v2252
  %2674 = vmatprep.subr.bf16.mxu0 0
  %2675 = vmatpush1.bf16.msra.mxu0 %v2253
  %2676 = vmatprep.subr.bf16.mxu0 0
  %2677 = vmatpush1.bf16.msra.mxu0 %v2254
  %2678 = vmatprep.subr.bf16.mxu0 0
  %2679 = vmatpush1.bf16.msra.mxu0 %v2255
  %2680 = vmatprep.subr.bf16.mxu0 0
  %2681 = vmatpush1.bf16.msra.mxu0 %v2256
  %2682 = vmatprep.subr.bf16.mxu0 0
  %2683 = vmatpush1.bf16.msra.mxu0 %v2257
  %2684 = vmatprep.subr.bf16.mxu0 0
  %2685 = vmatpush1.bf16.msra.mxu0 %v2258
  %2686 = vmatprep.subr.bf16.mxu0 0
  %2687 = vmatpush1.bf16.msra.mxu0 %v2287
  %2688 = vmatprep.subr.bf16.mxu0 0
  %2689 = vmatpush1.bf16.msra.mxu0 0
  %2690 = vmatprep.subr.bf16.mxu0 0
  %2691 = vmatpush1.bf16.msra.mxu0 0
  %2692 = vmatprep.subr.bf16.mxu0 0
  %2693 = vmatpush1.bf16.msra.mxu0 0
  %2694 = vmatprep.mubr.bf16.mxu0 %v2651
  %2695 = vmatmul.mubr.bf16.gmra.mrb[0].mxu0 %v2638
  %v2696 = vpop.f32.mrb[0].mxu0
  %v2697 = vadd.f32 0.0, %v2696
  %v2698 = vpop.f32.mrb[0].mxu0
  %v2699 = vpop.f32.mrb[0].mxu0
  %v2700 = vadd.f32 0.0, %v2699
  %v2701 = vpop.f32.mrb[0].mxu0
  %2702 = vmatprep.mubr.bf16.mxu0 %v2654
  %2703 = vmatmul.mubr.bf16.gmra.mrb[0].mxu0 %v2640
  %v2704 = vpop.f32.mrb[0].mxu0
  %v2705 = vadd.f32 0.0, %v2704
  %v2706 = vpop.f32.mrb[0].mxu0
  %v2707 = vpop.f32.mrb[0].mxu0
  %v2708 = vadd.f32 0.0, %v2707
  %v2709 = vpop.f32.mrb[0].mxu0
  %2710 = vmatprep.mubr.bf16.mxu0 %v2657
  %2711 = vmatmul.mubr.bf16.gmra.mrb[0].mxu0 %v2642
  %v2712 = vpop.f32.mrb[0].mxu0
  %v2713 = vadd.f32 0.0, %v2712
  %v2714 = vpop.f32.mrb[0].mxu0
  %v2715 = vpop.f32.mrb[0].mxu0
  %v2716 = vadd.f32 0.0, %v2715
  %v2717 = vpop.f32.mrb[0].mxu0
  %2718 = vmatprep.mubr.bf16.mxu0 %v2660
  %2719 = vmatmul.mubr.bf16.gmra.mrb[0].mxu0 %v2644
  %v2720 = vpop.f32.mrb[0].mxu0
  %v2721 = vadd.f32 0.0, %v2720
  %v2722 = vpop.f32.mrb[0].mxu0
  %v2723 = vpop.f32.mrb[0].mxu0
  %v2724 = vadd.f32 0.0, %v2723
  %v2725 = vpop.f32.mrb[0].mxu0
  %2726 = vdwg.mxu0
  %v2743 = vunpack.c.l.b16 %v2110
  %v2744 = vunpack.c.h.b16 %v2110
  %v2745 = vunpack.c.l.b16 %v2111
  %v2746 = vunpack.c.l.b16 %v2112
  %v2747 = vunpack.c.h.b16 %v2112
  %v2748 = vunpack.c.l.b16 %v2113
  %v2749 = vunpack.c.l.b16 %v2114
  %v2750 = vunpack.c.h.b16 %v2114
  %v2751 = vunpack.c.l.b16 %v2115
  %v2752 = vunpack.c.l.b16 %v2116
  %v2753 = vunpack.c.h.b16 %v2116
  %v2754 = vunpack.c.l.b16 %v2117
  %v2755 = vunpack.c.l.b16 %v2118
  %v2756 = vunpack.c.h.b16 %v2118
  %v2757 = vunpack.c.l.b16 %v2119
  %v2758 = vunpack.c.l.b16 %v2120
  %v2759 = vunpack.c.h.b16 %v2120
  %v2760 = vunpack.c.l.b16 %v2121
  %v2761 = vunpack.c.l.b16 %v2122
  %v2762 = vunpack.c.h.b16 %v2122
  %v2763 = vunpack.c.l.b16 %v2123
  %v2764 = vunpack.c.l.b16 %v2124
  %v2765 = vunpack.c.h.b16 %v2124
  %v2766 = vunpack.c.l.b16 %v2125
  %v2767 = vpack.c.b16 %v2746, %v2743
  %v2768 = vpack.c.b16 %v2747, %v2744
  %v2769 = vpack.c.b16 %v2748, %v2745
  %v2770 = vpack.c.b16 %v2752, %v2749
  %v2771 = vpack.c.b16 %v2753, %v2750
  %v2772 = vpack.c.b16 %v2754, %v2751
  %v2773 = vpack.c.b16 %v2758, %v2755
  %v2774 = vpack.c.b16 %v2759, %v2756
  %v2775 = vpack.c.b16 %v2760, %v2757
  %v2776 = vpack.c.b16 %v2764, %v2761
  %v2777 = vpack.c.b16 %v2765, %v2762
  %v2778 = vpack.c.b16 %v2766, %v2763
  %2779 = vrot.lane.b32.xlu0 %v2767, 56
  %v2780 = vpop.permute.xlu0 %2779
  %2781 = vrot.lane.b32.xlu0 %v2768, 56
  %v2782 = vpop.permute.xlu0 %2781
  %2783 = vrot.lane.b32.xlu0 %v2769, 56
  %v2784 = vpop.permute.xlu0 %2783
  %2785 = vrot.lane.b32.xlu0 %v2770, 56
  %v2786 = vpop.permute.xlu0 %2785
  %2787 = vrot.lane.b32.xlu0 %v2771, 56
  %v2788 = vpop.permute.xlu0 %2787
  %2789 = vrot.lane.b32.xlu0 %v2772, 56
  %v2790 = vpop.permute.xlu0 %2789
  %2791 = vrot.lane.b32.xlu0 %v2773, 56
  %v2792 = vpop.permute.xlu0 %2791
  %2793 = vrot.lane.b32.xlu0 %v2774, 56
  %v2794 = vpop.permute.xlu0 %2793
  %2795 = vrot.lane.b32.xlu0 %v2775, 56
  %v2796 = vpop.permute.xlu0 %2795
  %2797 = vrot.lane.b32.xlu0 %v2776, 56
  %v2798 = vpop.permute.xlu0 %2797
  %2799 = vrot.lane.b32.xlu0 %v2777, 56
  %v2800 = vpop.permute.xlu0 %2799
  %2801 = vrot.lane.b32.xlu0 %v2778, 56
  %v2802 = vpop.permute.xlu0 %2801
  %v2803 = vsel %vm2637, %v2780, %v2782
  %v2804 = vsel %vm2637, %v2782, %v2784
  %v2805 = vsel %vm2637, %v2786, %v2788
  %v2806 = vsel %vm2637, %v2788, %v2790
  %v2807 = vsel %vm2637, %v2792, %v2794
  %v2808 = vsel %vm2637, %v2794, %v2796
  %v2809 = vsel %vm2637, %v2798, %v2800
  %v2810 = vsel %vm2637, %v2800, %v2802
  %v2816 = vsel %vm2272, %v2804, 0
  %v2819 = vsel %vm2272, %v2806, 0
  %v2822 = vsel %vm2272, %v2808, 0
  %v2825 = vsel %vm2272, %v2810, 0
  %2827 = vmatprep.subr.bf16.mxu0 0
  %2828 = vmatpush1.bf16.msra.mxu0 %v2440
  %2829 = vmatprep.subr.bf16.mxu0 0
  %2830 = vmatpush1.bf16.msra.mxu0 %v2441
  %2831 = vmatprep.subr.bf16.mxu0 0
  %2832 = vmatpush1.bf16.msra.mxu0 %v2442
  %2833 = vmatprep.subr.bf16.mxu0 0
  %2834 = vmatpush1.bf16.msra.mxu0 %v2443
  %2835 = vmatprep.subr.bf16.mxu0 0
  %2836 = vmatpush1.bf16.msra.mxu0 %v2444
  %2837 = vmatprep.subr.bf16.mxu0 0
  %2838 = vmatpush1.bf16.msra.mxu0 %v2445
  %2839 = vmatprep.subr.bf16.mxu0 0
  %2840 = vmatpush1.bf16.msra.mxu0 %v2446
  %2841 = vmatprep.subr.bf16.mxu0 0
  %2842 = vmatpush1.bf16.msra.mxu0 %v2447
  %2843 = vmatprep.subr.bf16.mxu0 0
  %2844 = vmatpush1.bf16.msra.mxu0 %v2448
  %2845 = vmatprep.subr.bf16.mxu0 0
  %2846 = vmatpush1.bf16.msra.mxu0 %v2449
  %2847 = vmatprep.subr.bf16.mxu0 0
  %2848 = vmatpush1.bf16.msra.mxu0 %v2450
  %2849 = vmatprep.subr.bf16.mxu0 0
  %2850 = vmatpush1.bf16.msra.mxu0 %v2451
  %2851 = vmatprep.subr.bf16.mxu0 0
  %2852 = vmatpush1.bf16.msra.mxu0 %v2478
  %2853 = vmatprep.subr.bf16.mxu0 0
  %2854 = vmatpush1.bf16.msra.mxu0 0
  %2855 = vmatprep.subr.bf16.mxu0 0
  %2856 = vmatpush1.bf16.msra.mxu0 0
  %2857 = vmatprep.subr.bf16.mxu0 0
  %2858 = vmatpush1.bf16.msra.mxu0 0
  %2859 = vmatprep.mubr.bf16.mxu0 %v2816
  %2860 = vmatmul.mubr.bf16.gmra.mrb[0].mxu0 %v2803
  %v2861 = vpop.f32.mrb[0].mxu0
  %v2862 = vadd.f32 %v2697, %v2861
  %v2863 = vpop.f32.mrb[0].mxu0
  %v2864 = vpop.f32.mrb[0].mxu0
  %v2865 = vadd.f32 %v2700, %v2864
  %v2866 = vpop.f32.mrb[0].mxu0
  %2867 = vmatprep.mubr.bf16.mxu0 %v2819
  %2868 = vmatmul.mubr.bf16.gmra.mrb[0].mxu0 %v2805
  %v2869 = vpop.f32.mrb[0].mxu0
  %v2870 = vadd.f32 %v2705, %v2869
  %v2871 = vpop.f32.mrb[0].mxu0
  %v2872 = vpop.f32.mrb[0].mxu0
  %v2873 = vadd.f32 %v2708, %v2872
  %v2874 = vpop.f32.mrb[0].mxu0
  %2875 = vmatprep.mubr.bf16.mxu0 %v2822
  %2876 = vmatmul.mubr.bf16.gmra.mrb[0].mxu0 %v2807
  %v2877 = vpop.f32.mrb[0].mxu0
  %v2878 = vadd.f32 %v2713, %v2877
  %v2879 = vpop.f32.mrb[0].mxu0
  %v2880 = vpop.f32.mrb[0].mxu0
  %v2881 = vadd.f32 %v2716, %v2880
  %v2882 = vpop.f32.mrb[0].mxu0
  %2883 = vmatprep.mubr.bf16.mxu0 %v2825
  %2884 = vmatmul.mubr.bf16.gmra.mrb[0].mxu0 %v2809
  %v2885 = vpop.f32.mrb[0].mxu0
  %v2886 = vadd.f32 %v2721, %v2885
  %v2887 = vpop.f32.mrb[0].mxu0
  %v2888 = vpop.f32.mrb[0].mxu0
  %v2889 = vadd.f32 %v2724, %v2888
  %v2890 = vpop.f32.mrb[0].mxu0
  %2891 = vdwg.mxu0
  %s2892 = scalar_lea.vmem %s3, 200
  %v2893 = vld [vmem:[%s2892] sm:$0xf]
  %v2894 = vld [vmem:[%s2892 + $0x4] sm:$0xf]
  %v2895 = vld [vmem:[%s2892 + $0x8] sm:$0xf]
  %v2896 = vld [vmem:[%s2892 + $0xc] sm:$0xf]
  %v2897 = vld [vmem:[%s2892 + $0x10] sm:$0xf]
  %v2898 = vld [vmem:[%s2892 + $0x14] sm:$0xf]
  %v2899 = vld [vmem:[%s2892 + $0x18] sm:$0xf]
  %v2900 = vld [vmem:[%s2892 + $0x1c] sm:$0xf]
  %v2901 = vld [vmem:[%s2892 + $0x20] sm:$0xf]
  %v2902 = vld [vmem:[%s2892 + $0x24] sm:$0xf]
  %v2903 = vld [vmem:[%s2892 + $0x28] sm:$0xf]
  %v2904 = vld [vmem:[%s2892 + $0x2c] sm:$0xf]
  %v2905 = vld [vmem:[%s2892 + $0x30] sm:$0xf]
  %v2906 = vld [vmem:[%s2892 + $0x34] sm:$0xf]
  %v2907 = vld [vmem:[%s2892 + $0x38] sm:$0xf]
  %v2908 = vld [vmem:[%s2892 + $0x3c] sm:$0xf]
  %v2909 = vld [vmem:[%s2892 + $0x40] sm:$0xf]
  %v2910 = vld [vmem:[%s2892 + $0x44] sm:$0xf]
  %v2911 = vld [vmem:[%s2892 + $0x48] sm:$0xf]
  %v2912 = vld [vmem:[%s2892 + $0x4c] sm:$0xf]
  %v2913 = vld [vmem:[%s2892 + $0x50] sm:$0xf]
  %v2914 = vld [vmem:[%s2892 + $0x54] sm:$0xf]
  %v2915 = vld [vmem:[%s2892 + $0x58] sm:$0xf]
  %v2916 = vld [vmem:[%s2892 + $0x5c] sm:$0xf]
  %v2917 = vld [vmem:[%s2892 + $0x60] sm:$0xf]
  %s2918 = scalar_lea.vmem [#allocation3], 32
  %v2919 = vld [vmem:[%s2918] sm:$0xff]
  %v2920 = vld [vmem:[%s2918 + $0x10] sm:$0xff]
  %v2921 = vld [vmem:[%s2918 + $0x20] sm:$0xff]
  %v2922 = vld [vmem:[%s2918 + $0x30] sm:$0xff]
  %v2923 = vld [vmem:[%s2918 + $0x40] sm:$0xff]
  %v2924 = vld [vmem:[%s2918 + $0x50] sm:$0xff]
  %v2925 = vld [vmem:[%s2918 + $0x60] sm:$0xff]
  %v2926 = vld [vmem:[%s2918 + $0x70] sm:$0xff]
  %v2935 = vunpack.c.l.b16 %v2919
  %v2936 = vunpack.c.h.b16 %v2919
  %v2937 = vunpack.c.l.b16 %v2920
  %v2938 = vunpack.c.h.b16 %v2920
  %v2939 = vunpack.c.l.b16 %v2921
  %v2940 = vunpack.c.h.b16 %v2921
  %v2941 = vunpack.c.l.b16 %v2922
  %v2942 = vunpack.c.h.b16 %v2922
  %v2943 = vunpack.c.l.b16 %v2923
  %v2944 = vunpack.c.h.b16 %v2923
  %v2945 = vunpack.c.l.b16 %v2924
  %v2946 = vunpack.c.h.b16 %v2924
  %v2947 = vunpack.c.l.b16 %v2925
  %v2948 = vunpack.c.h.b16 %v2925
  %v2949 = vunpack.c.l.b16 %v2926
  %v2950 = vunpack.c.h.b16 %v2926
  %v2951 = vpack.c.b16 %v2937, %v2935
  %v2952 = vpack.c.b16 %v2938, %v2936
  %v2953 = vpack.c.b16 %v2941, %v2939
  %v2954 = vpack.c.b16 %v2942, %v2940
  %v2955 = vpack.c.b16 %v2945, %v2943
  %v2956 = vpack.c.b16 %v2946, %v2944
  %v2957 = vpack.c.b16 %v2949, %v2947
  %v2958 = vpack.c.b16 %v2950, %v2948
  %v2988 = vunpack.c.l.b16 %v2893
  %v2989 = vunpack.c.l.b16 %v2894
  %v2990 = vunpack.c.l.b16 %v2895
  %v2991 = vunpack.c.l.b16 %v2896
  %v2992 = vunpack.c.l.b16 %v2897
  %v2993 = vunpack.c.l.b16 %v2898
  %v2994 = vunpack.c.l.b16 %v2899
  %v2995 = vunpack.c.l.b16 %v2900
  %v2996 = vunpack.c.l.b16 %v2901
  %v2997 = vunpack.c.l.b16 %v2902
  %v2998 = vunpack.c.l.b16 %v2903
  %v2999 = vunpack.c.l.b16 %v2904
  %v3000 = vunpack.c.l.b16 %v2905
  %v3001 = vunpack.c.l.b16 %v2906
  %v3002 = vunpack.c.l.b16 %v2907
  %v3003 = vunpack.c.l.b16 %v2908
  %v3004 = vunpack.c.l.b16 %v2909
  %v3005 = vunpack.c.l.b16 %v2910
  %v3006 = vunpack.c.l.b16 %v2911
  %v3007 = vunpack.c.l.b16 %v2912
  %v3008 = vunpack.c.l.b16 %v2913
  %v3009 = vunpack.c.l.b16 %v2914
  %v3010 = vunpack.c.l.b16 %v2915
  %v3011 = vunpack.c.l.b16 %v2916
  %v3012 = vunpack.c.l.b16 %v2917
  %v3013 = vpack.c.b16 %v2989, %v2988
  %v3014 = vpack.c.b16 %v2991, %v2990
  %v3015 = vpack.c.b16 %v2993, %v2992
  %v3016 = vpack.c.b16 %v2995, %v2994
  %v3017 = vpack.c.b16 %v2997, %v2996
  %v3018 = vpack.c.b16 %v2999, %v2998
  %v3019 = vpack.c.b16 %v3001, %v3000
  %v3020 = vpack.c.b16 %v3003, %v3002
  %v3021 = vpack.c.b16 %v3005, %v3004
  %v3022 = vpack.c.b16 %v3007, %v3006
  %v3023 = vpack.c.b16 %v3009, %v3008
  %v3024 = vpack.c.b16 %v3011, %v3010
  %v3025 = vpack.c.b16 %v3012, %v3012
  %v3039 = vsel %vm2272, %v2952, 0
  %v3042 = vsel %vm2272, %v2954, 0
  %v3045 = vsel %vm2272, %v2956, 0
  %v3048 = vsel %vm2272, %v2958, 0
  %v3051 = vsel %vm2285, %v3025, 0
  %3053 = vmatprep.subr.bf16.mxu0 0
  %3054 = vmatpush1.bf16.msra.mxu0 %v3013
  %3055 = vmatprep.subr.bf16.mxu0 0
  %3056 = vmatpush1.bf16.msra.mxu0 %v3014
  %3057 = vmatprep.subr.bf16.mxu0 0
  %3058 = vmatpush1.bf16.msra.mxu0 %v3015
  %3059 = vmatprep.subr.bf16.mxu0 0
  %3060 = vmatpush1.bf16.msra.mxu0 %v3016
  %3061 = vmatprep.subr.bf16.mxu0 0
  %3062 = vmatpush1.bf16.msra.mxu0 %v3017
  %3063 = vmatprep.subr.bf16.mxu0 0
  %3064 = vmatpush1.bf16.msra.mxu0 %v3018
  %3065 = vmatprep.subr.bf16.mxu0 0
  %3066 = vmatpush1.bf16.msra.mxu0 %v3019
  %3067 = vmatprep.subr.bf16.mxu0 0
  %3068 = vmatpush1.bf16.msra.mxu0 %v3020
  %3069 = vmatprep.subr.bf16.mxu0 0
  %3070 = vmatpush1.bf16.msra.mxu0 %v3021
  %3071 = vmatprep.subr.bf16.mxu0 0
  %3072 = vmatpush1.bf16.msra.mxu0 %v3022
  %3073 = vmatprep.subr.bf16.mxu0 0
  %3074 = vmatpush1.bf16.msra.mxu0 %v3023
  %3075 = vmatprep.subr.bf16.mxu0 0
  %3076 = vmatpush1.bf16.msra.mxu0 %v3024
  %3077 = vmatprep.subr.bf16.mxu0 0
  %3078 = vmatpush1.bf16.msra.mxu0 %v3051
  %3079 = vmatprep.subr.bf16.mxu0 0
  %3080 = vmatpush1.bf16.msra.mxu0 0
  %3081 = vmatprep.subr.bf16.mxu0 0
  %3082 = vmatpush1.bf16.msra.mxu0 0
  %3083 = vmatprep.subr.bf16.mxu0 0
  %3084 = vmatpush1.bf16.msra.mxu0 0
  %3085 = vmatprep.mubr.bf16.mxu0 %v3039
  %3086 = vmatmul.mubr.bf16.gmra.mrb[0].mxu0 %v2951
  %v3087 = vpop.f32.mrb[0].mxu0
  %v3088 = vadd.f32 0.0, %v3087
  %v3089 = vpop.f32.mrb[0].mxu0
  %v3090 = vpop.f32.mrb[0].mxu0
  %v3091 = vadd.f32 0.0, %v3090
  %v3092 = vpop.f32.mrb[0].mxu0
  %3093 = vmatprep.mubr.bf16.mxu0 %v3042
  %3094 = vmatmul.mubr.bf16.gmra.mrb[0].mxu0 %v2953
  %v3095 = vpop.f32.mrb[0].mxu0
  %v3096 = vadd.f32 0.0, %v3095
  %v3097 = vpop.f32.mrb[0].mxu0
  %v3098 = vpop.f32.mrb[0].mxu0
  %v3099 = vadd.f32 0.0, %v3098
  %v3100 = vpop.f32.mrb[0].mxu0
  %3101 = vmatprep.mubr.bf16.mxu0 %v3045
  %3102 = vmatmul.mubr.bf16.gmra.mrb[0].mxu0 %v2955
  %v3103 = vpop.f32.mrb[0].mxu0
  %v3104 = vadd.f32 0.0, %v3103
  %v3105 = vpop.f32.mrb[0].mxu0
  %v3106 = vpop.f32.mrb[0].mxu0
  %v3107 = vadd.f32 0.0, %v3106
  %v3108 = vpop.f32.mrb[0].mxu0
  %3109 = vmatprep.mubr.bf16.mxu0 %v3048
  %3110 = vmatmul.mubr.bf16.gmra.mrb[0].mxu0 %v2957
  %v3111 = vpop.f32.mrb[0].mxu0
  %v3112 = vadd.f32 0.0, %v3111
  %v3113 = vpop.f32.mrb[0].mxu0
  %v3114 = vpop.f32.mrb[0].mxu0
  %v3115 = vadd.f32 0.0, %v3114
  %v3116 = vpop.f32.mrb[0].mxu0
  %3117 = vdwg.mxu0
  %v3118 = vadd.f32 %v2515, %v3088
  %v3119 = vadd.f32 %v2518, %v3091
  %v3120 = vadd.f32 %v2523, %v3096
  %v3121 = vadd.f32 %v2526, %v3099
  %v3122 = vadd.f32 %v2531, %v3104
  %v3123 = vadd.f32 %v2534, %v3107
  %v3124 = vadd.f32 %v2539, %v3112
  %v3125 = vadd.f32 %v2542, %v3115
  %v3126 = vld [vmem:[%s2918 + $0x4] sm:$0xff]
  %v3127 = vld [vmem:[%s2918 + $0xc] sm:$0xf]
  %v3128 = vld [vmem:[%s2918 + $0x14] sm:$0xff]
  %v3129 = vld [vmem:[%s2918 + $0x1c] sm:$0xf]
  %v3130 = vld [vmem:[%s2918 + $0x24] sm:$0xff]
  %v3131 = vld [vmem:[%s2918 + $0x2c] sm:$0xf]
  %v3132 = vld [vmem:[%s2918 + $0x34] sm:$0xff]
  %v3133 = vld [vmem:[%s2918 + $0x3c] sm:$0xf]
  %v3134 = vld [vmem:[%s2918 + $0x44] sm:$0xff]
  %v3135 = vld [vmem:[%s2918 + $0x4c] sm:$0xf]
  %v3136 = vld [vmem:[%s2918 + $0x54] sm:$0xff]
  %v3137 = vld [vmem:[%s2918 + $0x5c] sm:$0xf]
  %v3138 = vld [vmem:[%s2918 + $0x64] sm:$0xff]
  %v3139 = vld [vmem:[%s2918 + $0x6c] sm:$0xf]
  %v3140 = vld [vmem:[%s2918 + $0x74] sm:$0xff]
  %v3141 = vld [vmem:[%s2918 + $0x7c] sm:$0xf]
  %v3158 = vunpack.c.l.b16 %v3126
  %v3159 = vunpack.c.h.b16 %v3126
  %v3160 = vunpack.c.l.b16 %v3127
  %v3161 = vunpack.c.l.b16 %v3128
  %v3162 = vunpack.c.h.b16 %v3128
  %v3163 = vunpack.c.l.b16 %v3129
  %v3164 = vunpack.c.l.b16 %v3130
  %v3165 = vunpack.c.h.b16 %v3130
  %v3166 = vunpack.c.l.b16 %v3131
  %v3167 = vunpack.c.l.b16 %v3132
  %v3168 = vunpack.c.h.b16 %v3132
  %v3169 = vunpack.c.l.b16 %v3133
  %v3170 = vunpack.c.l.b16 %v3134
  %v3171 = vunpack.c.h.b16 %v3134
  %v3172 = vunpack.c.l.b16 %v3135
  %v3173 = vunpack.c.l.b16 %v3136
  %v3174 = vunpack.c.h.b16 %v3136
  %v3175 = vunpack.c.l.b16 %v3137
  %v3176 = vunpack.c.l.b16 %v3138
  %v3177 = vunpack.c.h.b16 %v3138
  %v3178 = vunpack.c.l.b16 %v3139
  %v3179 = vunpack.c.l.b16 %v3140
  %v3180 = vunpack.c.h.b16 %v3140
  %v3181 = vunpack.c.l.b16 %v3141
  %v3182 = vpack.c.b16 %v3161, %v3158
  %v3183 = vpack.c.b16 %v3162, %v3159
  %v3184 = vpack.c.b16 %v3163, %v3160
  %v3185 = vpack.c.b16 %v3167, %v3164
  %v3186 = vpack.c.b16 %v3168, %v3165
  %v3187 = vpack.c.b16 %v3169, %v3166
  %v3188 = vpack.c.b16 %v3173, %v3170
  %v3189 = vpack.c.b16 %v3174, %v3171
  %v3190 = vpack.c.b16 %v3175, %v3172
  %v3191 = vpack.c.b16 %v3179, %v3176
  %v3192 = vpack.c.b16 %v3180, %v3177
  %v3193 = vpack.c.b16 %v3181, %v3178
  %3194 = vrot.lane.b32.xlu0 %v3182, 56
  %v3195 = vpop.permute.xlu0 %3194
  %3196 = vrot.lane.b32.xlu0 %v3183, 56
  %v3197 = vpop.permute.xlu0 %3196
  %3198 = vrot.lane.b32.xlu0 %v3184, 56
  %v3199 = vpop.permute.xlu0 %3198
  %3200 = vrot.lane.b32.xlu0 %v3185, 56
  %v3201 = vpop.permute.xlu0 %3200
  %3202 = vrot.lane.b32.xlu0 %v3186, 56
  %v3203 = vpop.permute.xlu0 %3202
  %3204 = vrot.lane.b32.xlu0 %v3187, 56
  %v3205 = vpop.permute.xlu0 %3204
  %3206 = vrot.lane.b32.xlu0 %v3188, 56
  %v3207 = vpop.permute.xlu0 %3206
  %3208 = vrot.lane.b32.xlu0 %v3189, 56
  %v3209 = vpop.permute.xlu0 %3208
  %3210 = vrot.lane.b32.xlu0 %v3190, 56
  %v3211 = vpop.permute.xlu0 %3210
  %3212 = vrot.lane.b32.xlu0 %v3191, 56
  %v3213 = vpop.permute.xlu0 %3212
  %3214 = vrot.lane.b32.xlu0 %v3192, 56
  %v3215 = vpop.permute.xlu0 %3214
  %3216 = vrot.lane.b32.xlu0 %v3193, 56
  %v3217 = vpop.permute.xlu0 %3216
  %v3218 = vsel %vm2637, %v3195, %v3197
  %v3219 = vsel %vm2637, %v3197, %v3199
  %v3220 = vsel %vm2637, %v3201, %v3203
  %v3221 = vsel %vm2637, %v3203, %v3205
  %v3222 = vsel %vm2637, %v3207, %v3209
  %v3223 = vsel %vm2637, %v3209, %v3211
  %v3224 = vsel %vm2637, %v3213, %v3215
  %v3225 = vsel %vm2637, %v3215, %v3217
  %v3231 = vsel %vm2272, %v3219, 0
  %v3234 = vsel %vm2272, %v3221, 0
  %v3237 = vsel %vm2272, %v3223, 0
  %v3240 = vsel %vm2272, %v3225, 0
  %3242 = vmatprep.subr.bf16.mxu0 0
  %3243 = vmatpush1.bf16.msra.mxu0 %v3013
  %3244 = vmatprep.subr.bf16.mxu0 0
  %3245 = vmatpush1.bf16.msra.mxu0 %v3014
  %3246 = vmatprep.subr.bf16.mxu0 0
  %3247 = vmatpush1.bf16.msra.mxu0 %v3015
  %3248 = vmatprep.subr.bf16.mxu0 0
  %3249 = vmatpush1.bf16.msra.mxu0 %v3016
  %3250 = vmatprep.subr.bf16.mxu0 0
  %3251 = vmatpush1.bf16.msra.mxu0 %v3017
  %3252 = vmatprep.subr.bf16.mxu0 0
  %3253 = vmatpush1.bf16.msra.mxu0 %v3018
  %3254 = vmatprep.subr.bf16.mxu0 0
  %3255 = vmatpush1.bf16.msra.mxu0 %v3019
  %3256 = vmatprep.subr.bf16.mxu0 0
  %3257 = vmatpush1.bf16.msra.mxu0 %v3020
  %3258 = vmatprep.subr.bf16.mxu0 0
  %3259 = vmatpush1.bf16.msra.mxu0 %v3021
  %3260 = vmatprep.subr.bf16.mxu0 0
  %3261 = vmatpush1.bf16.msra.mxu0 %v3022
  %3262 = vmatprep.subr.bf16.mxu0 0
  %3263 = vmatpush1.bf16.msra.mxu0 %v3023
  %3264 = vmatprep.subr.bf16.mxu0 0
  %3265 = vmatpush1.bf16.msra.mxu0 %v3024
  %3266 = vmatprep.subr.bf16.mxu0 0
  %3267 = vmatpush1.bf16.msra.mxu0 %v3051
  %3268 = vmatprep.subr.bf16.mxu0 0
  %3269 = vmatpush1.bf16.msra.mxu0 0
  %3270 = vmatprep.subr.bf16.mxu0 0
  %3271 = vmatpush1.bf16.msra.mxu0 0
  %3272 = vmatprep.subr.bf16.mxu0 0
  %3273 = vmatpush1.bf16.msra.mxu0 0
  %3274 = vmatprep.mubr.bf16.mxu0 %v3231
  %3275 = vmatmul.mubr.bf16.gmra.mrb[0].mxu0 %v3218
  %v3276 = vpop.f32.mrb[0].mxu0
  %v3277 = vadd.f32 0.0, %v3276
  %v3278 = vpop.f32.mrb[0].mxu0
  %v3279 = vpop.f32.mrb[0].mxu0
  %v3280 = vadd.f32 0.0, %v3279
  %v3281 = vpop.f32.mrb[0].mxu0
  %3282 = vmatprep.mubr.bf16.mxu0 %v3234
  %3283 = vmatmul.mubr.bf16.gmra.mrb[0].mxu0 %v3220
  %v3284 = vpop.f32.mrb[0].mxu0
  %v3285 = vadd.f32 0.0, %v3284
  %v3286 = vpop.f32.mrb[0].mxu0
  %v3287 = vpop.f32.mrb[0].mxu0
  %v3288 = vadd.f32 0.0, %v3287
  %v3289 = vpop.f32.mrb[0].mxu0
  %3290 = vmatprep.mubr.bf16.mxu0 %v3237
  %3291 = vmatmul.mubr.bf16.gmra.mrb[0].mxu0 %v3222
  %v3292 = vpop.f32.mrb[0].mxu0
  %v3293 = vadd.f32 0.0, %v3292
  %v3294 = vpop.f32.mrb[0].mxu0
  %v3295 = vpop.f32.mrb[0].mxu0
  %v3296 = vadd.f32 0.0, %v3295
  %v3297 = vpop.f32.mrb[0].mxu0
  %3298 = vmatprep.mubr.bf16.mxu0 %v3240
  %3299 = vmatmul.mubr.bf16.gmra.mrb[0].mxu0 %v3224
  %v3300 = vpop.f32.mrb[0].mxu0
  %v3301 = vadd.f32 0.0, %v3300
  %v3302 = vpop.f32.mrb[0].mxu0
  %v3303 = vpop.f32.mrb[0].mxu0
  %v3304 = vadd.f32 0.0, %v3303
  %v3305 = vpop.f32.mrb[0].mxu0
  %3306 = vdwg.mxu0
  %v3307 = vadd.f32 %v2862, %v3277
  %v3308 = vadd.f32 %v2865, %v3280
  %v3309 = vadd.f32 %v2870, %v3285
  %v3310 = vadd.f32 %v2873, %v3288
  %v3311 = vadd.f32 %v2878, %v3293
  %v3312 = vadd.f32 %v2881, %v3296
  %v3313 = vadd.f32 %v2886, %v3301
  %v3314 = vadd.f32 %v2889, %v3304
  %s3315 = scalar_lea.vmem %s3, 300
  %v3316 = vld [vmem:[%s3315] sm:$0xf]
  %v3317 = vld [vmem:[%s3315 + $0x4] sm:$0xf]
  %v3318 = vld [vmem:[%s3315 + $0x8] sm:$0xf]
  %v3319 = vld [vmem:[%s3315 + $0xc] sm:$0xf]
  %v3320 = vld [vmem:[%s3315 + $0x10] sm:$0xf]
  %v3321 = vld [vmem:[%s3315 + $0x14] sm:$0xf]
  %v3322 = vld [vmem:[%s3315 + $0x18] sm:$0xf]
  %v3323 = vld [vmem:[%s3315 + $0x1c] sm:$0xf]
  %v3324 = vld [vmem:[%s3315 + $0x20] sm:$0xf]
  %v3325 = vld [vmem:[%s3315 + $0x24] sm:$0xf]
  %v3326 = vld [vmem:[%s3315 + $0x28] sm:$0xf]
  %v3327 = vld [vmem:[%s3315 + $0x2c] sm:$0xf]
  %v3328 = vld [vmem:[%s3315 + $0x30] sm:$0xf]
  %v3329 = vld [vmem:[%s3315 + $0x34] sm:$0xf]
  %v3330 = vld [vmem:[%s3315 + $0x38] sm:$0xf]
  %v3331 = vld [vmem:[%s3315 + $0x3c] sm:$0xf]
  %v3332 = vld [vmem:[%s3315 + $0x40] sm:$0xf]
  %v3333 = vld [vmem:[%s3315 + $0x44] sm:$0xf]
  %v3334 = vld [vmem:[%s3315 + $0x48] sm:$0xf]
  %v3335 = vld [vmem:[%s3315 + $0x4c] sm:$0xf]
  %v3336 = vld [vmem:[%s3315 + $0x50] sm:$0xf]
  %v3337 = vld [vmem:[%s3315 + $0x54] sm:$0xf]
  %v3338 = vld [vmem:[%s3315 + $0x58] sm:$0xf]
  %v3339 = vld [vmem:[%s3315 + $0x5c] sm:$0xf]
  %v3340 = vld [vmem:[%s3315 + $0x60] sm:$0xf]
  %s3341 = scalar_lea.vmem [#allocation3], 48
  %v3342 = vld [vmem:[%s3341] sm:$0xff]
  %v3343 = vld [vmem:[%s3341 + $0x10] sm:$0xff]
  %v3344 = vld [vmem:[%s3341 + $0x20] sm:$0xff]
  %v3345 = vld [vmem:[%s3341 + $0x30] sm:$0xff]
  %v3346 = vld [vmem:[%s3341 + $0x40] sm:$0xff]
  %v3347 = vld [vmem:[%s3341 + $0x50] sm:$0xff]
  %v3348 = vld [vmem:[%s3341 + $0x60] sm:$0xff]
  %v3349 = vld [vmem:[%s3341 + $0x70] sm:$0xff]
  %v3358 = vunpack.c.l.b16 %v3342
  %v3359 = vunpack.c.h.b16 %v3342
  %v3360 = vunpack.c.l.b16 %v3343
  %v3361 = vunpack.c.h.b16 %v3343
  %v3362 = vunpack.c.l.b16 %v3344
  %v3363 = vunpack.c.h.b16 %v3344
  %v3364 = vunpack.c.l.b16 %v3345
  %v3365 = vunpack.c.h.b16 %v3345
  %v3366 = vunpack.c.l.b16 %v3346
  %v3367 = vunpack.c.h.b16 %v3346
  %v3368 = vunpack.c.l.b16 %v3347
  %v3369 = vunpack.c.h.b16 %v3347
  %v3370 = vunpack.c.l.b16 %v3348
  %v3371 = vunpack.c.h.b16 %v3348
  %v3372 = vunpack.c.l.b16 %v3349
  %v3373 = vunpack.c.h.b16 %v3349
  %v3374 = vpack.c.b16 %v3360, %v3358
  %v3375 = vpack.c.b16 %v3361, %v3359
  %v3376 = vpack.c.b16 %v3364, %v3362
  %v3377 = vpack.c.b16 %v3365, %v3363
  %v3378 = vpack.c.b16 %v3368, %v3366
  %v3379 = vpack.c.b16 %v3369, %v3367
  %v3380 = vpack.c.b16 %v3372, %v3370
  %v3381 = vpack.c.b16 %v3373, %v3371
  %v3411 = vunpack.c.l.b16 %v3316
  %v3412 = vunpack.c.l.b16 %v3317
  %v3413 = vunpack.c.l.b16 %v3318
  %v3414 = vunpack.c.l.b16 %v3319
  %v3415 = vunpack.c.l.b16 %v3320
  %v3416 = vunpack.c.l.b16 %v3321
  %v3417 = vunpack.c.l.b16 %v3322
  %v3418 = vunpack.c.l.b16 %v3323
  %v3419 = vunpack.c.l.b16 %v3324
  %v3420 = vunpack.c.l.b16 %v3325
  %v3421 = vunpack.c.l.b16 %v3326
  %v3422 = vunpack.c.l.b16 %v3327
  %v3423 = vunpack.c.l.b16 %v3328
  %v3424 = vunpack.c.l.b16 %v3329
  %v3425 = vunpack.c.l.b16 %v3330
  %v3426 = vunpack.c.l.b16 %v3331
  %v3427 = vunpack.c.l.b16 %v3332
  %v3428 = vunpack.c.l.b16 %v3333
  %v3429 = vunpack.c.l.b16 %v3334
  %v3430 = vunpack.c.l.b16 %v3335
  %v3431 = vunpack.c.l.b16 %v3336
  %v3432 = vunpack.c.l.b16 %v3337
  %v3433 = vunpack.c.l.b16 %v3338
  %v3434 = vunpack.c.l.b16 %v3339
  %v3435 = vunpack.c.l.b16 %v3340
  %v3436 = vpack.c.b16 %v3412, %v3411
  %v3437 = vpack.c.b16 %v3414, %v3413
  %v3438 = vpack.c.b16 %v3416, %v3415
  %v3439 = vpack.c.b16 %v3418, %v3417
  %v3440 = vpack.c.b16 %v3420, %v3419
  %v3441 = vpack.c.b16 %v3422, %v3421
  %v3442 = vpack.c.b16 %v3424, %v3423
  %v3443 = vpack.c.b16 %v3426, %v3425
  %v3444 = vpack.c.b16 %v3428, %v3427
  %v3445 = vpack.c.b16 %v3430, %v3429
  %v3446 = vpack.c.b16 %v3432, %v3431
  %v3447 = vpack.c.b16 %v3434, %v3433
  %v3448 = vpack.c.b16 %v3435, %v3435
  %v3462 = vsel %vm2272, %v3375, 0
  %v3465 = vsel %vm2272, %v3377, 0
  %v3468 = vsel %vm2272, %v3379, 0
  %v3471 = vsel %vm2272, %v3381, 0
  %v3474 = vsel %vm2285, %v3448, 0
  %3476 = vmatprep.subr.bf16.mxu0 0
  %3477 = vmatpush1.bf16.msra.mxu0 %v3436
  %3478 = vmatprep.subr.bf16.mxu0 0
  %3479 = vmatpush1.bf16.msra.mxu0 %v3437
  %3480 = vmatprep.subr.bf16.mxu0 0
  %3481 = vmatpush1.bf16.msra.mxu0 %v3438
  %3482 = vmatprep.subr.bf16.mxu0 0
  %3483 = vmatpush1.bf16.msra.mxu0 %v3439
  %3484 = vmatprep.subr.bf16.mxu0 0
  %3485 = vmatpush1.bf16.msra.mxu0 %v3440
  %3486 = vmatprep.subr.bf16.mxu0 0
  %3487 = vmatpush1.bf16.msra.mxu0 %v3441
  %3488 = vmatprep.subr.bf16.mxu0 0
  %3489 = vmatpush1.bf16.msra.mxu0 %v3442
  %3490 = vmatprep.subr.bf16.mxu0 0
  %3491 = vmatpush1.bf16.msra.mxu0 %v3443
  %3492 = vmatprep.subr.bf16.mxu0 0
  %3493 = vmatpush1.bf16.msra.mxu0 %v3444
  %3494 = vmatprep.subr.bf16.mxu0 0
  %3495 = vmatpush1.bf16.msra.mxu0 %v3445
  %3496 = vmatprep.subr.bf16.mxu0 0
  %3497 = vmatpush1.bf16.msra.mxu0 %v3446
  %3498 = vmatprep.subr.bf16.mxu0 0
  %3499 = vmatpush1.bf16.msra.mxu0 %v3447
  %3500 = vmatprep.subr.bf16.mxu0 0
  %3501 = vmatpush1.bf16.msra.mxu0 %v3474
  %3502 = vmatprep.subr.bf16.mxu0 0
  %3503 = vmatpush1.bf16.msra.mxu0 0
  %3504 = vmatprep.subr.bf16.mxu0 0
  %3505 = vmatpush1.bf16.msra.mxu0 0
  %3506 = vmatprep.subr.bf16.mxu0 0
  %3507 = vmatpush1.bf16.msra.mxu0 0
  %3508 = vmatprep.mubr.bf16.mxu0 %v3462
  %3509 = vmatmul.mubr.bf16.gmra.mrb[0].mxu0 %v3374
  %v3510 = vpop.f32.mrb[0].mxu0
  %v3511 = vadd.f32 0.0, %v3510
  %v3512 = vpop.f32.mrb[0].mxu0
  %v3513 = vpop.f32.mrb[0].mxu0
  %v3514 = vadd.f32 0.0, %v3513
  %v3515 = vpop.f32.mrb[0].mxu0
  %3516 = vmatprep.mubr.bf16.mxu0 %v3465
  %3517 = vmatmul.mubr.bf16.gmra.mrb[0].mxu0 %v3376
  %v3518 = vpop.f32.mrb[0].mxu0
  %v3519 = vadd.f32 0.0, %v3518
  %v3520 = vpop.f32.mrb[0].mxu0
  %v3521 = vpop.f32.mrb[0].mxu0
  %v3522 = vadd.f32 0.0, %v3521
  %v3523 = vpop.f32.mrb[0].mxu0
  %3524 = vmatprep.mubr.bf16.mxu0 %v3468
  %3525 = vmatmul.mubr.bf16.gmra.mrb[0].mxu0 %v3378
  %v3526 = vpop.f32.mrb[0].mxu0
  %v3527 = vadd.f32 0.0, %v3526
  %v3528 = vpop.f32.mrb[0].mxu0
  %v3529 = vpop.f32.mrb[0].mxu0
  %v3530 = vadd.f32 0.0, %v3529
  %v3531 = vpop.f32.mrb[0].mxu0
  %3532 = vmatprep.mubr.bf16.mxu0 %v3471
  %3533 = vmatmul.mubr.bf16.gmra.mrb[0].mxu0 %v3380
  %v3534 = vpop.f32.mrb[0].mxu0
  %v3535 = vadd.f32 0.0, %v3534
  %v3536 = vpop.f32.mrb[0].mxu0
  %v3537 = vpop.f32.mrb[0].mxu0
  %v3538 = vadd.f32 0.0, %v3537
  %v3539 = vpop.f32.mrb[0].mxu0
  %3540 = vdwg.mxu0
  %v3541 = vadd.f32 %v3118, %v3511
  %v3542 = vadd.f32 %v3119, %v3514
  %v3543 = vadd.f32 %v3120, %v3519
  %v3544 = vadd.f32 %v3121, %v3522
  %v3545 = vadd.f32 %v3122, %v3527
  %v3546 = vadd.f32 %v3123, %v3530
  %v3547 = vadd.f32 %v3124, %v3535
  %v3548 = vadd.f32 %v3125, %v3538
  %v3549 = vld [vmem:[%s3341 + $0x4] sm:$0xff]
  %v3550 = vld [vmem:[%s3341 + $0xc] sm:$0xf]
  %v3551 = vld [vmem:[%s3341 + $0x14] sm:$0xff]
  %v3552 = vld [vmem:[%s3341 + $0x1c] sm:$0xf]
  %v3553 = vld [vmem:[%s3341 + $0x24] sm:$0xff]
  %v3554 = vld [vmem:[%s3341 + $0x2c] sm:$0xf]
  %v3555 = vld [vmem:[%s3341 + $0x34] sm:$0xff]
  %v3556 = vld [vmem:[%s3341 + $0x3c] sm:$0xf]
  %v3557 = vld [vmem:[%s3341 + $0x44] sm:$0xff]
  %v3558 = vld [vmem:[%s3341 + $0x4c] sm:$0xf]
  %v3559 = vld [vmem:[%s3341 + $0x54] sm:$0xff]
  %v3560 = vld [vmem:[%s3341 + $0x5c] sm:$0xf]
  %v3561 = vld [vmem:[%s3341 + $0x64] sm:$0xff]
  %v3562 = vld [vmem:[%s3341 + $0x6c] sm:$0xf]
  %v3563 = vld [vmem:[%s3341 + $0x74] sm:$0xff]
  %v3564 = vld [vmem:[%s3341 + $0x7c] sm:$0xf]
  %v3581 = vunpack.c.l.b16 %v3549
  %v3582 = vunpack.c.h.b16 %v3549
  %v3583 = vunpack.c.l.b16 %v3550
  %v3584 = vunpack.c.l.b16 %v3551
  %v3585 = vunpack.c.h.b16 %v3551
  %v3586 = vunpack.c.l.b16 %v3552
  %v3587 = vunpack.c.l.b16 %v3553
  %v3588 = vunpack.c.h.b16 %v3553
  %v3589 = vunpack.c.l.b16 %v3554
  %v3590 = vunpack.c.l.b16 %v3555
  %v3591 = vunpack.c.h.b16 %v3555
  %v3592 = vunpack.c.l.b16 %v3556
  %v3593 = vunpack.c.l.b16 %v3557
  %v3594 = vunpack.c.h.b16 %v3557
  %v3595 = vunpack.c.l.b16 %v3558
  %v3596 = vunpack.c.l.b16 %v3559
  %v3597 = vunpack.c.h.b16 %v3559
  %v3598 = vunpack.c.l.b16 %v3560
  %v3599 = vunpack.c.l.b16 %v3561
  %v3600 = vunpack.c.h.b16 %v3561
  %v3601 = vunpack.c.l.b16 %v3562
  %v3602 = vunpack.c.l.b16 %v3563
  %v3603 = vunpack.c.h.b16 %v3563
  %v3604 = vunpack.c.l.b16 %v3564
  %v3605 = vpack.c.b16 %v3584, %v3581
  %v3606 = vpack.c.b16 %v3585, %v3582
  %v3607 = vpack.c.b16 %v3586, %v3583
  %v3608 = vpack.c.b16 %v3590, %v3587
  %v3609 = vpack.c.b16 %v3591, %v3588
  %v3610 = vpack.c.b16 %v3592, %v3589
  %v3611 = vpack.c.b16 %v3596, %v3593
  %v3612 = vpack.c.b16 %v3597, %v3594
  %v3613 = vpack.c.b16 %v3598, %v3595
  %v3614 = vpack.c.b16 %v3602, %v3599
  %v3615 = vpack.c.b16 %v3603, %v3600
  %v3616 = vpack.c.b16 %v3604, %v3601
  %3617 = vrot.lane.b32.xlu0 %v3605, 56
  %v3618 = vpop.permute.xlu0 %3617
  %3619 = vrot.lane.b32.xlu0 %v3606, 56
  %v3620 = vpop.permute.xlu0 %3619
  %3621 = vrot.lane.b32.xlu0 %v3607, 56
  %v3622 = vpop.permute.xlu0 %3621
  %3623 = vrot.lane.b32.xlu0 %v3608, 56
  %v3624 = vpop.permute.xlu0 %3623
  %3625 = vrot.lane.b32.xlu0 %v3609, 56
  %v3626 = vpop.permute.xlu0 %3625
  %3627 = vrot.lane.b32.xlu0 %v3610, 56
  %v3628 = vpop.permute.xlu0 %3627
  %3629 = vrot.lane.b32.xlu0 %v3611, 56
  %v3630 = vpop.permute.xlu0 %3629
  %3631 = vrot.lane.b32.xlu0 %v3612, 56
  %v3632 = vpop.permute.xlu0 %3631
  %3633 = vrot.lane.b32.xlu0 %v3613, 56
  %v3634 = vpop.permute.xlu0 %3633
  %3635 = vrot.lane.b32.xlu0 %v3614, 56
  %v3636 = vpop.permute.xlu0 %3635
  %3637 = vrot.lane.b32.xlu0 %v3615, 56
  %v3638 = vpop.permute.xlu0 %3637
  %3639 = vrot.lane.b32.xlu0 %v3616, 56
  %v3640 = vpop.permute.xlu0 %3639
  %v3641 = vsel %vm2637, %v3618, %v3620
  %v3642 = vsel %vm2637, %v3620, %v3622
  %v3643 = vsel %vm2637, %v3624, %v3626
  %v3644 = vsel %vm2637, %v3626, %v3628
  %v3645 = vsel %vm2637, %v3630, %v3632
  %v3646 = vsel %vm2637, %v3632, %v3634
  %v3647 = vsel %vm2637, %v3636, %v3638
  %v3648 = vsel %vm2637, %v3638, %v3640
  %v3654 = vsel %vm2272, %v3642, 0
  %v3657 = vsel %vm2272, %v3644, 0
  %v3660 = vsel %vm2272, %v3646, 0
  %v3663 = vsel %vm2272, %v3648, 0
  %3665 = vmatprep.subr.bf16.mxu0 0
  %3666 = vmatpush1.bf16.msra.mxu0 %v3436
  %3667 = vmatprep.subr.bf16.mxu0 0
  %3668 = vmatpush1.bf16.msra.mxu0 %v3437
  %3669 = vmatprep.subr.bf16.mxu0 0
  %3670 = vmatpush1.bf16.msra.mxu0 %v3438
  %3671 = vmatprep.subr.bf16.mxu0 0
  %3672 = vmatpush1.bf16.msra.mxu0 %v3439
  %3673 = vmatprep.subr.bf16.mxu0 0
  %3674 = vmatpush1.bf16.msra.mxu0 %v3440
  %3675 = vmatprep.subr.bf16.mxu0 0
  %3676 = vmatpush1.bf16.msra.mxu0 %v3441
  %3677 = vmatprep.subr.bf16.mxu0 0
  %3678 = vmatpush1.bf16.msra.mxu0 %v3442
  %3679 = vmatprep.subr.bf16.mxu0 0
  %3680 = vmatpush1.bf16.msra.mxu0 %v3443
  %3681 = vmatprep.subr.bf16.mxu0 0
  %3682 = vmatpush1.bf16.msra.mxu0 %v3444
  %3683 = vmatprep.subr.bf16.mxu0 0
  %3684 = vmatpush1.bf16.msra.mxu0 %v3445
  %3685 = vmatprep.subr.bf16.mxu0 0
  %3686 = vmatpush1.bf16.msra.mxu0 %v3446
  %3687 = vmatprep.subr.bf16.mxu0 0
  %3688 = vmatpush1.bf16.msra.mxu0 %v3447
  %3689 = vmatprep.subr.bf16.mxu0 0
  %3690 = vmatpush1.bf16.msra.mxu0 %v3474
  %3691 = vmatprep.subr.bf16.mxu0 0
  %3692 = vmatpush1.bf16.msra.mxu0 0
  %3693 = vmatprep.subr.bf16.mxu0 0
  %3694 = vmatpush1.bf16.msra.mxu0 0
  %3695 = vmatprep.subr.bf16.mxu0 0
  %3696 = vmatpush1.bf16.msra.mxu0 0
  %3697 = vmatprep.mubr.bf16.mxu0 %v3654
  %3698 = vmatmul.mubr.bf16.gmra.mrb[0].mxu0 %v3641
  %v3699 = vpop.f32.mrb[0].mxu0
  %v3700 = vadd.f32 0.0, %v3699
  %v3701 = vpop.f32.mrb[0].mxu0
  %v3702 = vpop.f32.mrb[0].mxu0
  %v3703 = vadd.f32 0.0, %v3702
  %v3704 = vpop.f32.mrb[0].mxu0
  %3705 = vmatprep.mubr.bf16.mxu0 %v3657
  %3706 = vmatmul.mubr.bf16.gmra.mrb[0].mxu0 %v3643
  %v3707 = vpop.f32.mrb[0].mxu0
  %v3708 = vadd.f32 0.0, %v3707
  %v3709 = vpop.f32.mrb[0].mxu0
  %v3710 = vpop.f32.mrb[0].mxu0
  %v3711 = vadd.f32 0.0, %v3710
  %v3712 = vpop.f32.mrb[0].mxu0
  %3713 = vmatprep.mubr.bf16.mxu0 %v3660
  %3714 = vmatmul.mubr.bf16.gmra.mrb[0].mxu0 %v3645
  %v3715 = vpop.f32.mrb[0].mxu0
  %v3716 = vadd.f32 0.0, %v3715
  %v3717 = vpop.f32.mrb[0].mxu0
  %v3718 = vpop.f32.mrb[0].mxu0
  %v3719 = vadd.f32 0.0, %v3718
  %v3720 = vpop.f32.mrb[0].mxu0
  %3721 = vmatprep.mubr.bf16.mxu0 %v3663
  %3722 = vmatmul.mubr.bf16.gmra.mrb[0].mxu0 %v3647
  %v3723 = vpop.f32.mrb[0].mxu0
  %v3724 = vadd.f32 0.0, %v3723
  %v3725 = vpop.f32.mrb[0].mxu0
  %v3726 = vpop.f32.mrb[0].mxu0
  %v3727 = vadd.f32 0.0, %v3726
  %v3728 = vpop.f32.mrb[0].mxu0
  %3729 = vdwg.mxu0
  %v3730 = vadd.f32 %v3307, %v3700
  %v3731 = vadd.f32 %v3308, %v3703
  %v3732 = vadd.f32 %v3309, %v3708
  %v3733 = vadd.f32 %v3310, %v3711
  %v3734 = vadd.f32 %v3311, %v3716
  %v3735 = vadd.f32 %v3312, %v3719
  %v3736 = vadd.f32 %v3313, %v3724
  %v3737 = vadd.f32 %v3314, %v3727
  %s3738 = scalar_lea.vmem %s3, 400
  %v3739 = vld [vmem:[%s3738] sm:$0xf]
  %v3740 = vld [vmem:[%s3738 + $0x4] sm:$0xf]
  %v3741 = vld [vmem:[%s3738 + $0x8] sm:$0xf]
  %v3742 = vld [vmem:[%s3738 + $0xc] sm:$0xf]
  %v3743 = vld [vmem:[%s3738 + $0x10] sm:$0xf]
  %v3744 = vld [vmem:[%s3738 + $0x14] sm:$0xf]
  %v3745 = vld [vmem:[%s3738 + $0x18] sm:$0xf]
  %v3746 = vld [vmem:[%s3738 + $0x1c] sm:$0xf]
  %v3747 = vld [vmem:[%s3738 + $0x20] sm:$0xf]
  %v3748 = vld [vmem:[%s3738 + $0x24] sm:$0xf]
  %v3749 = vld [vmem:[%s3738 + $0x28] sm:$0xf]
  %v3750 = vld [vmem:[%s3738 + $0x2c] sm:$0xf]
  %v3751 = vld [vmem:[%s3738 + $0x30] sm:$0xf]
  %v3752 = vld [vmem:[%s3738 + $0x34] sm:$0xf]
  %v3753 = vld [vmem:[%s3738 + $0x38] sm:$0xf]
  %v3754 = vld [vmem:[%s3738 + $0x3c] sm:$0xf]
  %v3755 = vld [vmem:[%s3738 + $0x40] sm:$0xf]
  %v3756 = vld [vmem:[%s3738 + $0x44] sm:$0xf]
  %v3757 = vld [vmem:[%s3738 + $0x48] sm:$0xf]
  %v3758 = vld [vmem:[%s3738 + $0x4c] sm:$0xf]
  %v3759 = vld [vmem:[%s3738 + $0x50] sm:$0xf]
  %v3760 = vld [vmem:[%s3738 + $0x54] sm:$0xf]
  %v3761 = vld [vmem:[%s3738 + $0x58] sm:$0xf]
  %v3762 = vld [vmem:[%s3738 + $0x5c] sm:$0xf]
  %v3763 = vld [vmem:[%s3738 + $0x60] sm:$0xf]
  %s3764 = scalar_lea.vmem [#allocation3], 64
  %v3765 = vld [vmem:[%s3764] sm:$0xff]
  %v3766 = vld [vmem:[%s3764 + $0x10] sm:$0xff]
  %v3767 = vld [vmem:[%s3764 + $0x20] sm:$0xff]
  %v3768 = vld [vmem:[%s3764 + $0x30] sm:$0xff]
  %v3769 = vld [vmem:[%s3764 + $0x40] sm:$0xff]
  %v3770 = vld [vmem:[%s3764 + $0x50] sm:$0xff]
  %v3771 = vld [vmem:[%s3764 + $0x60] sm:$0xff]
  %v3772 = vld [vmem:[%s3764 + $0x70] sm:$0xff]
  %v3781 = vunpack.c.l.b16 %v3765
  %v3782 = vunpack.c.h.b16 %v3765
  %v3783 = vunpack.c.l.b16 %v3766
  %v3784 = vunpack.c.h.b16 %v3766
  %v3785 = vunpack.c.l.b16 %v3767
  %v3786 = vunpack.c.h.b16 %v3767
  %v3787 = vunpack.c.l.b16 %v3768
  %v3788 = vunpack.c.h.b16 %v3768
  %v3789 = vunpack.c.l.b16 %v3769
  %v3790 = vunpack.c.h.b16 %v3769
  %v3791 = vunpack.c.l.b16 %v3770
  %v3792 = vunpack.c.h.b16 %v3770
  %v3793 = vunpack.c.l.b16 %v3771
  %v3794 = vunpack.c.h.b16 %v3771
  %v3795 = vunpack.c.l.b16 %v3772
  %v3796 = vunpack.c.h.b16 %v3772
  %v3797 = vpack.c.b16 %v3783, %v3781
  %v3798 = vpack.c.b16 %v3784, %v3782
  %v3799 = vpack.c.b16 %v3787, %v3785
  %v3800 = vpack.c.b16 %v3788, %v3786
  %v3801 = vpack.c.b16 %v3791, %v3789
  %v3802 = vpack.c.b16 %v3792, %v3790
  %v3803 = vpack.c.b16 %v3795, %v3793
  %v3804 = vpack.c.b16 %v3796, %v3794
  %v3834 = vunpack.c.l.b16 %v3739
  %v3835 = vunpack.c.l.b16 %v3740
  %v3836 = vunpack.c.l.b16 %v3741
  %v3837 = vunpack.c.l.b16 %v3742
  %v3838 = vunpack.c.l.b16 %v3743
  %v3839 = vunpack.c.l.b16 %v3744
  %v3840 = vunpack.c.l.b16 %v3745
  %v3841 = vunpack.c.l.b16 %v3746
  %v3842 = vunpack.c.l.b16 %v3747
  %v3843 = vunpack.c.l.b16 %v3748
  %v3844 = vunpack.c.l.b16 %v3749
  %v3845 = vunpack.c.l.b16 %v3750
  %v3846 = vunpack.c.l.b16 %v3751
  %v3847 = vunpack.c.l.b16 %v3752
  %v3848 = vunpack.c.l.b16 %v3753
  %v3849 = vunpack.c.l.b16 %v3754
  %v3850 = vunpack.c.l.b16 %v3755
  %v3851 = vunpack.c.l.b16 %v3756
  %v3852 = vunpack.c.l.b16 %v3757
  %v3853 = vunpack.c.l.b16 %v3758
  %v3854 = vunpack.c.l.b16 %v3759
  %v3855 = vunpack.c.l.b16 %v3760
  %v3856 = vunpack.c.l.b16 %v3761
  %v3857 = vunpack.c.l.b16 %v3762
  %v3858 = vunpack.c.l.b16 %v3763
  %v3859 = vpack.c.b16 %v3835, %v3834
  %v3860 = vpack.c.b16 %v3837, %v3836
  %v3861 = vpack.c.b16 %v3839, %v3838
  %v3862 = vpack.c.b16 %v3841, %v3840
  %v3863 = vpack.c.b16 %v3843, %v3842
  %v3864 = vpack.c.b16 %v3845, %v3844
  %v3865 = vpack.c.b16 %v3847, %v3846
  %v3866 = vpack.c.b16 %v3849, %v3848
  %v3867 = vpack.c.b16 %v3851, %v3850
  %v3868 = vpack.c.b16 %v3853, %v3852
  %v3869 = vpack.c.b16 %v3855, %v3854
  %v3870 = vpack.c.b16 %v3857, %v3856
  %v3871 = vpack.c.b16 %v3858, %v3858
  %v3885 = vsel %vm2272, %v3798, 0
  %v3888 = vsel %vm2272, %v3800, 0
  %v3891 = vsel %vm2272, %v3802, 0
  %v3894 = vsel %vm2272, %v3804, 0
  %v3897 = vsel %vm2285, %v3871, 0
  %3899 = vmatprep.subr.bf16.mxu0 0
  %3900 = vmatpush1.bf16.msra.mxu0 %v3859
  %3901 = vmatprep.subr.bf16.mxu0 0
  %3902 = vmatpush1.bf16.msra.mxu0 %v3860
  %3903 = vmatprep.subr.bf16.mxu0 0
  %3904 = vmatpush1.bf16.msra.mxu0 %v3861
  %3905 = vmatprep.subr.bf16.mxu0 0
  %3906 = vmatpush1.bf16.msra.mxu0 %v3862
  %3907 = vmatprep.subr.bf16.mxu0 0
  %3908 = vmatpush1.bf16.msra.mxu0 %v3863
  %3909 = vmatprep.subr.bf16.mxu0 0
  %3910 = vmatpush1.bf16.msra.mxu0 %v3864
  %3911 = vmatprep.subr.bf16.mxu0 0
  %3912 = vmatpush1.bf16.msra.mxu0 %v3865
  %3913 = vmatprep.subr.bf16.mxu0 0
  %3914 = vmatpush1.bf16.msra.mxu0 %v3866
  %3915 = vmatprep.subr.bf16.mxu0 0
  %3916 = vmatpush1.bf16.msra.mxu0 %v3867
  %3917 = vmatprep.subr.bf16.mxu0 0
  %3918 = vmatpush1.bf16.msra.mxu0 %v3868
  %3919 = vmatprep.subr.bf16.mxu0 0
  %3920 = vmatpush1.bf16.msra.mxu0 %v3869
  %3921 = vmatprep.subr.bf16.mxu0 0
  %3922 = vmatpush1.bf16.msra.mxu0 %v3870
  %3923 = vmatprep.subr.bf16.mxu0 0
  %3924 = vmatpush1.bf16.msra.mxu0 %v3897
  %3925 = vmatprep.subr.bf16.mxu0 0
  %3926 = vmatpush1.bf16.msra.mxu0 0
  %3927 = vmatprep.subr.bf16.mxu0 0
  %3928 = vmatpush1.bf16.msra.mxu0 0
  %3929 = vmatprep.subr.bf16.mxu0 0
  %3930 = vmatpush1.bf16.msra.mxu0 0
  %3931 = vmatprep.mubr.bf16.mxu0 %v3885
  %3932 = vmatmul.mubr.bf16.gmra.mrb[0].mxu0 %v3797
  %v3933 = vpop.f32.mrb[0].mxu0
  %v3934 = vadd.f32 0.0, %v3933
  %v3935 = vpop.f32.mrb[0].mxu0
  %v3936 = vpop.f32.mrb[0].mxu0
  %v3937 = vadd.f32 0.0, %v3936
  %v3938 = vpop.f32.mrb[0].mxu0
  %3939 = vmatprep.mubr.bf16.mxu0 %v3888
  %3940 = vmatmul.mubr.bf16.gmra.mrb[0].mxu0 %v3799
  %v3941 = vpop.f32.mrb[0].mxu0
  %v3942 = vadd.f32 0.0, %v3941
  %v3943 = vpop.f32.mrb[0].mxu0
  %v3944 = vpop.f32.mrb[0].mxu0
  %v3945 = vadd.f32 0.0, %v3944
  %v3946 = vpop.f32.mrb[0].mxu0
  %3947 = vmatprep.mubr.bf16.mxu0 %v3891
  %3948 = vmatmul.mubr.bf16.gmra.mrb[0].mxu0 %v3801
  %v3949 = vpop.f32.mrb[0].mxu0
  %v3950 = vadd.f32 0.0, %v3949
  %v3951 = vpop.f32.mrb[0].mxu0
  %v3952 = vpop.f32.mrb[0].mxu0
  %v3953 = vadd.f32 0.0, %v3952
  %v3954 = vpop.f32.mrb[0].mxu0
  %3955 = vmatprep.mubr.bf16.mxu0 %v3894
  %3956 = vmatmul.mubr.bf16.gmra.mrb[0].mxu0 %v3803
  %v3957 = vpop.f32.mrb[0].mxu0
  %v3958 = vadd.f32 0.0, %v3957
  %v3959 = vpop.f32.mrb[0].mxu0
  %v3960 = vpop.f32.mrb[0].mxu0
  %v3961 = vadd.f32 0.0, %v3960
  %v3962 = vpop.f32.mrb[0].mxu0
  %3963 = vdwg.mxu0
  %v3964 = vadd.f32 %v3541, %v3934
  %v3965 = vadd.f32 %v3542, %v3937
  %v3966 = vadd.f32 %v3543, %v3942
  %v3967 = vadd.f32 %v3544, %v3945
  %v3968 = vadd.f32 %v3545, %v3950
  %v3969 = vadd.f32 %v3546, %v3953
  %v3970 = vadd.f32 %v3547, %v3958
  %v3971 = vadd.f32 %v3548, %v3961
  %v3972 = vld [vmem:[%s3764 + $0x4] sm:$0xff]
  %v3973 = vld [vmem:[%s3764 + $0xc] sm:$0xf]
  %v3974 = vld [vmem:[%s3764 + $0x14] sm:$0xff]
  %v3975 = vld [vmem:[%s3764 + $0x1c] sm:$0xf]
  %v3976 = vld [vmem:[%s3764 + $0x24] sm:$0xff]
  %v3977 = vld [vmem:[%s3764 + $0x2c] sm:$0xf]
  %v3978 = vld [vmem:[%s3764 + $0x34] sm:$0xff]
  %v3979 = vld [vmem:[%s3764 + $0x3c] sm:$0xf]
  %v3980 = vld [vmem:[%s3764 + $0x44] sm:$0xff]
  %v3981 = vld [vmem:[%s3764 + $0x4c] sm:$0xf]
  %v3982 = vld [vmem:[%s3764 + $0x54] sm:$0xff]
  %v3983 = vld [vmem:[%s3764 + $0x5c] sm:$0xf]
  %v3984 = vld [vmem:[%s3764 + $0x64] sm:$0xff]
  %v3985 = vld [vmem:[%s3764 + $0x6c] sm:$0xf]
  %v3986 = vld [vmem:[%s3764 + $0x74] sm:$0xff]
  %v3987 = vld [vmem:[%s3764 + $0x7c] sm:$0xf]
  %v4004 = vunpack.c.l.b16 %v3972
  %v4005 = vunpack.c.h.b16 %v3972
  %v4006 = vunpack.c.l.b16 %v3973
  %v4007 = vunpack.c.l.b16 %v3974
  %v4008 = vunpack.c.h.b16 %v3974
  %v4009 = vunpack.c.l.b16 %v3975
  %v4010 = vunpack.c.l.b16 %v3976
  %v4011 = vunpack.c.h.b16 %v3976
  %v4012 = vunpack.c.l.b16 %v3977
  %v4013 = vunpack.c.l.b16 %v3978
  %v4014 = vunpack.c.h.b16 %v3978
  %v4015 = vunpack.c.l.b16 %v3979
  %v4016 = vunpack.c.l.b16 %v3980
  %v4017 = vunpack.c.h.b16 %v3980
  %v4018 = vunpack.c.l.b16 %v3981
  %v4019 = vunpack.c.l.b16 %v3982
  %v4020 = vunpack.c.h.b16 %v3982
  %v4021 = vunpack.c.l.b16 %v3983
  %v4022 = vunpack.c.l.b16 %v3984
  %v4023 = vunpack.c.h.b16 %v3984
  %v4024 = vunpack.c.l.b16 %v3985
  %v4025 = vunpack.c.l.b16 %v3986
  %v4026 = vunpack.c.h.b16 %v3986
  %v4027 = vunpack.c.l.b16 %v3987
  %v4028 = vpack.c.b16 %v4007, %v4004
  %v4029 = vpack.c.b16 %v4008, %v4005
  %v4030 = vpack.c.b16 %v4009, %v4006
  %v4031 = vpack.c.b16 %v4013, %v4010
  %v4032 = vpack.c.b16 %v4014, %v4011
  %v4033 = vpack.c.b16 %v4015, %v4012
  %v4034 = vpack.c.b16 %v4019, %v4016
  %v4035 = vpack.c.b16 %v4020, %v4017
  %v4036 = vpack.c.b16 %v4021, %v4018
  %v4037 = vpack.c.b16 %v4025, %v4022
  %v4038 = vpack.c.b16 %v4026, %v4023
  %v4039 = vpack.c.b16 %v4027, %v4024
  %4040 = vrot.lane.b32.xlu0 %v4028, 56
  %v4041 = vpop.permute.xlu0 %4040
  %4042 = vrot.lane.b32.xlu0 %v4029, 56
  %v4043 = vpop.permute.xlu0 %4042
  %4044 = vrot.lane.b32.xlu0 %v4030, 56
  %v4045 = vpop.permute.xlu0 %4044
  %4046 = vrot.lane.b32.xlu0 %v4031, 56
  %v4047 = vpop.permute.xlu0 %4046
  %4048 = vrot.lane.b32.xlu0 %v4032, 56
  %v4049 = vpop.permute.xlu0 %4048
  %4050 = vrot.lane.b32.xlu0 %v4033, 56
  %v4051 = vpop.permute.xlu0 %4050
  %4052 = vrot.lane.b32.xlu0 %v4034, 56
  %v4053 = vpop.permute.xlu0 %4052
  %4054 = vrot.lane.b32.xlu0 %v4035, 56
  %v4055 = vpop.permute.xlu0 %4054
  %4056 = vrot.lane.b32.xlu0 %v4036, 56
  %v4057 = vpop.permute.xlu0 %4056
  %4058 = vrot.lane.b32.xlu0 %v4037, 56
  %v4059 = vpop.permute.xlu0 %4058
  %4060 = vrot.lane.b32.xlu0 %v4038, 56
  %v4061 = vpop.permute.xlu0 %4060
  %4062 = vrot.lane.b32.xlu0 %v4039, 56
  %v4063 = vpop.permute.xlu0 %4062
  %v4064 = vsel %vm2637, %v4041, %v4043
  %v4065 = vsel %vm2637, %v4043, %v4045
  %v4066 = vsel %vm2637, %v4047, %v4049
  %v4067 = vsel %vm2637, %v4049, %v4051
  %v4068 = vsel %vm2637, %v4053, %v4055
  %v4069 = vsel %vm2637, %v4055, %v4057
  %v4070 = vsel %vm2637, %v4059, %v4061
  %v4071 = vsel %vm2637, %v4061, %v4063
  %v4077 = vsel %vm2272, %v4065, 0
  %v4080 = vsel %vm2272, %v4067, 0
  %v4083 = vsel %vm2272, %v4069, 0
  %v4086 = vsel %vm2272, %v4071, 0
  %4088 = vmatprep.subr.bf16.mxu0 0
  %4089 = vmatpush1.bf16.msra.mxu0 %v3859
  %4090 = vmatprep.subr.bf16.mxu0 0
  %4091 = vmatpush1.bf16.msra.mxu0 %v3860
  %4092 = vmatprep.subr.bf16.mxu0 0
  %4093 = vmatpush1.bf16.msra.mxu0 %v3861
  %4094 = vmatprep.subr.bf16.mxu0 0
  %4095 = vmatpush1.bf16.msra.mxu0 %v3862
  %4096 = vmatprep.subr.bf16.mxu0 0
  %4097 = vmatpush1.bf16.msra.mxu0 %v3863
  %4098 = vmatprep.subr.bf16.mxu0 0
  %4099 = vmatpush1.bf16.msra.mxu0 %v3864
  %4100 = vmatprep.subr.bf16.mxu0 0
  %4101 = vmatpush1.bf16.msra.mxu0 %v3865
  %4102 = vmatprep.subr.bf16.mxu0 0
  %4103 = vmatpush1.bf16.msra.mxu0 %v3866
  %4104 = vmatprep.subr.bf16.mxu0 0
  %4105 = vmatpush1.bf16.msra.mxu0 %v3867
  %4106 = vmatprep.subr.bf16.mxu0 0
  %4107 = vmatpush1.bf16.msra.mxu0 %v3868
  %4108 = vmatprep.subr.bf16.mxu0 0
  %4109 = vmatpush1.bf16.msra.mxu0 %v3869
  %4110 = vmatprep.subr.bf16.mxu0 0
  %4111 = vmatpush1.bf16.msra.mxu0 %v3870
  %4112 = vmatprep.subr.bf16.mxu0 0
  %4113 = vmatpush1.bf16.msra.mxu0 %v3897
  %4114 = vmatprep.subr.bf16.mxu0 0
  %4115 = vmatpush1.bf16.msra.mxu0 0
  %4116 = vmatprep.subr.bf16.mxu0 0
  %4117 = vmatpush1.bf16.msra.mxu0 0
  %4118 = vmatprep.subr.bf16.mxu0 0
  %4119 = vmatpush1.bf16.msra.mxu0 0
  %4120 = vmatprep.mubr.bf16.mxu0 %v4077
  %4121 = vmatmul.mubr.bf16.gmra.mrb[0].mxu0 %v4064
  %v4122 = vpop.f32.mrb[0].mxu0
  %v4123 = vadd.f32 0.0, %v4122
  %v4124 = vpop.f32.mrb[0].mxu0
  %v4125 = vpop.f32.mrb[0].mxu0
  %v4126 = vadd.f32 0.0, %v4125
  %v4127 = vpop.f32.mrb[0].mxu0
  %4128 = vmatprep.mubr.bf16.mxu0 %v4080
  %4129 = vmatmul.mubr.bf16.gmra.mrb[0].mxu0 %v4066
  %v4130 = vpop.f32.mrb[0].mxu0
  %v4131 = vadd.f32 0.0, %v4130
  %v4132 = vpop.f32.mrb[0].mxu0
  %v4133 = vpop.f32.mrb[0].mxu0
  %v4134 = vadd.f32 0.0, %v4133
  %v4135 = vpop.f32.mrb[0].mxu0
  %4136 = vmatprep.mubr.bf16.mxu0 %v4083
  %4137 = vmatmul.mubr.bf16.gmra.mrb[0].mxu0 %v4068
  %v4138 = vpop.f32.mrb[0].mxu0
  %v4139 = vadd.f32 0.0, %v4138
  %v4140 = vpop.f32.mrb[0].mxu0
  %v4141 = vpop.f32.mrb[0].mxu0
  %v4142 = vadd.f32 0.0, %v4141
  %v4143 = vpop.f32.mrb[0].mxu0
  %4144 = vmatprep.mubr.bf16.mxu0 %v4086
  %4145 = vmatmul.mubr.bf16.gmra.mrb[0].mxu0 %v4070
  %v4146 = vpop.f32.mrb[0].mxu0
  %v4147 = vadd.f32 0.0, %v4146
  %v4148 = vpop.f32.mrb[0].mxu0
  %v4149 = vpop.f32.mrb[0].mxu0
  %v4150 = vadd.f32 0.0, %v4149
  %v4151 = vpop.f32.mrb[0].mxu0
  %4152 = vdwg.mxu0
  %v4153 = vadd.f32 %v3730, %v4123
  %v4154 = vadd.f32 %v3731, %v4126
  %v4155 = vadd.f32 %v3732, %v4131
  %v4156 = vadd.f32 %v3733, %v4134
  %v4157 = vadd.f32 %v3734, %v4139
  %v4158 = vadd.f32 %v3735, %v4142
  %v4159 = vadd.f32 %v3736, %v4147
  %v4160 = vadd.f32 %v3737, %v4150
  %v4161 = vmax.f32 %v3964, %v4153
  %v4162 = vmax.f32 %v3965, %v4154
  %v4163 = vmax.f32 %v3966, %v4155
  %v4164 = vmax.f32 %v3967, %v4156
  %v4165 = vmax.f32 %v3968, %v4157
  %v4166 = vmax.f32 %v3969, %v4158
  %v4167 = vmax.f32 %v3970, %v4159
  %v4168 = vmax.f32 %v3971, %v4160
  %v4169 = vld [vmem:[%s6] sm:$0x1]
  %v4171 = vlaneseq
  %v4172 = vshrl.u32 %v4171, 7
  %v4173 = vsub.s32 0, %v4172
  %v4174 = vrot.slane %v4169, %v4173
  %v4176 = vadd.f32 %v4174, 0.0
  %v4177 = vmax.f32 %v4161, %v4162
  %v4178 = vld [vmem:[%s4] sm:$0x1]
  %v4180 = vlaneseq
  %v4181 = vshrl.u32 %v4180, 7
  %v4182 = vsub.s32 0, %v4181
  %v4183 = vrot.slane %v4178, %v4182
  %v4185 = vadd.f32 %v4177, %v4183
  %v4186 = vmax.f32 %v4185, 0.0
  %v4187 = vpack.c.bf16 %v4186, %v4186
  %v4188 = vld [vmem:[%s5] sm:$0xf]
  %v4189 = vld [vmem:[%s5 + $0x4] sm:$0xf]
  %v4190 = vld [vmem:[%s5 + $0x8] sm:$0xf]
  %v4191 = vld [vmem:[%s5 + $0xc] sm:$0xf]
  %v4192 = vld [vmem:[%s5 + $0x10] sm:$0xf]
  %v4193 = vld [vmem:[%s5 + $0x14] sm:$0xf]
  %v4194 = vld [vmem:[%s5 + $0x18] sm:$0xf]
  %v4195 = vld [vmem:[%s5 + $0x1c] sm:$0xf]
  %v4196 = vld [vmem:[%s5 + $0x20] sm:$0xf]
  %v4197 = vld [vmem:[%s5 + $0x24] sm:$0xf]
  %v4208 = vunpack.c.l.b16 %v4188
  %v4209 = vunpack.c.l.b16 %v4189
  %v4210 = vunpack.c.l.b16 %v4190
  %v4211 = vunpack.c.l.b16 %v4191
  %v4212 = vunpack.c.l.b16 %v4192
  %v4213 = vunpack.c.l.b16 %v4193
  %v4214 = vunpack.c.l.b16 %v4194
  %v4215 = vunpack.c.l.b16 %v4195
  %v4216 = vunpack.c.l.b16 %v4196
  %v4217 = vunpack.c.l.b16 %v4197
  %v4218 = vpack.c.b16 %v4209, %v4208
  %v4219 = vpack.c.b16 %v4211, %v4210
  %v4220 = vpack.c.b16 %v4213, %v4212
  %v4221 = vpack.c.b16 %v4215, %v4214
  %v4222 = vpack.c.b16 %v4217, %v4216
  %vm4228 = vcmask 654336
  %v4230 = vsel %vm4228, %v4187, 0
  %4232 = vmatprep.subr.bf16.mxu0 0
  %4233 = vmatpush1.bf16.msra.mxu0 %v4218
  %4234 = vmatprep.subr.bf16.mxu0 0
  %4235 = vmatpush1.bf16.msra.mxu0 %v4219
  %4236 = vmatprep.subr.bf16.mxu0 0
  %4237 = vmatpush1.bf16.msra.mxu0 %v4220
  %4238 = vmatprep.subr.bf16.mxu0 0
  %4239 = vmatpush1.bf16.msra.mxu0 %v4221
  %4240 = vmatprep.subr.bf16.mxu0 0
  %4241 = vmatpush1.bf16.msra.mxu0 %v4222
  %4242 = vmatprep.subr.bf16.mxu0 0
  %4243 = vmatpush1.bf16.msra.mxu0 0
  %4244 = vmatprep.subr.bf16.mxu0 0
  %4245 = vmatpush1.bf16.msra.mxu0 0
  %4246 = vmatprep.subr.bf16.mxu0 0
  %4247 = vmatpush1.bf16.msra.mxu0 0
  %4248 = vmatprep.subr.bf16.mxu0 0
  %4249 = vmatpush1.bf16.msra.mxu0 0
  %4250 = vmatprep.subr.bf16.mxu0 0
  %4251 = vmatpush1.bf16.msra.mxu0 0
  %4252 = vmatprep.subr.bf16.mxu0 0
  %4253 = vmatpush1.bf16.msra.mxu0 0
  %4254 = vmatprep.subr.bf16.mxu0 0
  %4255 = vmatpush1.bf16.msra.mxu0 0
  %4256 = vmatprep.subr.bf16.mxu0 0
  %4257 = vmatpush1.bf16.msra.mxu0 0
  %4258 = vmatprep.subr.bf16.mxu0 0
  %4259 = vmatpush1.bf16.msra.mxu0 0
  %4260 = vmatprep.subr.bf16.mxu0 0
  %4261 = vmatpush1.bf16.msra.mxu0 0
  %4262 = vmatprep.subr.bf16.mxu0 0
  %4263 = vmatpush1.bf16.msra.mxu0 0
  %4264 = vmatprep.mubr.bf16.mxu0 0
  %4265 = vmatmul.mubr.bf16.gmra.mrb[0].mxu0 %v4230
  %v4266 = vpop.f32.mrb[0].mxu0
  %v4267 = vadd.f32 0.0, %v4266
  %v4268 = vpop.f32.mrb[0].mxu0
  %v4269 = vpop.f32.mrb[0].mxu0
  %v4270 = vpop.f32.mrb[0].mxu0
  %4271 = vdwg.mxu0
  %v4272 = vadd.f32 %v4176, %v4267
  %v4273 = vmax.f32 %v4163, %v4164
  %v4274 = vadd.f32 %v4273, %v4183
  %v4275 = vmax.f32 %v4274, 0.0
  %v4276 = vpack.c.bf16 %v4275, %v4275
  %s4277 = scalar_lea.vmem %s5, 40
  %v4278 = vld [vmem:[%s4277] sm:$0xf]
  %v4279 = vld [vmem:[%s4277 + $0x4] sm:$0xf]
  %v4280 = vld [vmem:[%s4277 + $0x8] sm:$0xf]
  %v4281 = vld [vmem:[%s4277 + $0xc] sm:$0xf]
  %v4282 = vld [vmem:[%s4277 + $0x10] sm:$0xf]
  %v4283 = vld [vmem:[%s4277 + $0x14] sm:$0xf]
  %v4284 = vld [vmem:[%s4277 + $0x18] sm:$0xf]
  %v4285 = vld [vmem:[%s4277 + $0x1c] sm:$0xf]
  %v4286 = vld [vmem:[%s4277 + $0x20] sm:$0xf]
  %v4287 = vld [vmem:[%s4277 + $0x24] sm:$0xf]
  %v4298 = vunpack.c.l.b16 %v4278
  %v4299 = vunpack.c.l.b16 %v4279
  %v4300 = vunpack.c.l.b16 %v4280
  %v4301 = vunpack.c.l.b16 %v4281
  %v4302 = vunpack.c.l.b16 %v4282
  %v4303 = vunpack.c.l.b16 %v4283
  %v4304 = vunpack.c.l.b16 %v4284
  %v4305 = vunpack.c.l.b16 %v4285
  %v4306 = vunpack.c.l.b16 %v4286
  %v4307 = vunpack.c.l.b16 %v4287
  %v4308 = vpack.c.b16 %v4299, %v4298
  %v4309 = vpack.c.b16 %v4301, %v4300
  %v4310 = vpack.c.b16 %v4303, %v4302
  %v4311 = vpack.c.b16 %v4305, %v4304
  %v4312 = vpack.c.b16 %v4307, %v4306
  %v4319 = vsel %vm4228, %v4276, 0
  %4321 = vmatprep.subr.bf16.mxu0 0
  %4322 = vmatpush1.bf16.msra.mxu0 %v4308
  %4323 = vmatprep.subr.bf16.mxu0 0
  %4324 = vmatpush1.bf16.msra.mxu0 %v4309
  %4325 = vmatprep.subr.bf16.mxu0 0
  %4326 = vmatpush1.bf16.msra.mxu0 %v4310
  %4327 = vmatprep.subr.bf16.mxu0 0
  %4328 = vmatpush1.bf16.msra.mxu0 %v4311
  %4329 = vmatprep.subr.bf16.mxu0 0
  %4330 = vmatpush1.bf16.msra.mxu0 %v4312
  %4331 = vmatprep.subr.bf16.mxu0 0
  %4332 = vmatpush1.bf16.msra.mxu0 0
  %4333 = vmatprep.subr.bf16.mxu0 0
  %4334 = vmatpush1.bf16.msra.mxu0 0
  %4335 = vmatprep.subr.bf16.mxu0 0
  %4336 = vmatpush1.bf16.msra.mxu0 0
  %4337 = vmatprep.subr.bf16.mxu0 0
  %4338 = vmatpush1.bf16.msra.mxu0 0
  %4339 = vmatprep.subr.bf16.mxu0 0
  %4340 = vmatpush1.bf16.msra.mxu0 0
  %4341 = vmatprep.subr.bf16.mxu0 0
  %4342 = vmatpush1.bf16.msra.mxu0 0
  %4343 = vmatprep.subr.bf16.mxu0 0
  %4344 = vmatpush1.bf16.msra.mxu0 0
  %4345 = vmatprep.subr.bf16.mxu0 0
  %4346 = vmatpush1.bf16.msra.mxu0 0
  %4347 = vmatprep.subr.bf16.mxu0 0
  %4348 = vmatpush1.bf16.msra.mxu0 0
  %4349 = vmatprep.subr.bf16.mxu0 0
  %4350 = vmatpush1.bf16.msra.mxu0 0
  %4351 = vmatprep.subr.bf16.mxu0 0
  %4352 = vmatpush1.bf16.msra.mxu0 0
  %4353 = vmatprep.mubr.bf16.mxu0 0
  %4354 = vmatmul.mubr.bf16.gmra.mrb[0].mxu0 %v4319
  %v4355 = vpop.f32.mrb[0].mxu0
  %v4356 = vadd.f32 0.0, %v4355
  %v4357 = vpop.f32.mrb[0].mxu0
  %v4358 = vpop.f32.mrb[0].mxu0
  %v4359 = vpop.f32.mrb[0].mxu0
  %4360 = vdwg.mxu0
  %v4361 = vadd.f32 %v4272, %v4356
  %v4362 = vmax.f32 %v4165, %v4166
  %v4363 = vadd.f32 %v4362, %v4183
  %v4364 = vmax.f32 %v4363, 0.0
  %v4365 = vpack.c.bf16 %v4364, %v4364
  %s4366 = scalar_lea.vmem %s5, 80
  %v4367 = vld [vmem:[%s4366] sm:$0xf]
  %v4368 = vld [vmem:[%s4366 + $0x4] sm:$0xf]
  %v4369 = vld [vmem:[%s4366 + $0x8] sm:$0xf]
  %v4370 = vld [vmem:[%s4366 + $0xc] sm:$0xf]
  %v4371 = vld [vmem:[%s4366 + $0x10] sm:$0xf]
  %v4372 = vld [vmem:[%s4366 + $0x14] sm:$0xf]
  %v4373 = vld [vmem:[%s4366 + $0x18] sm:$0xf]
  %v4374 = vld [vmem:[%s4366 + $0x1c] sm:$0xf]
  %v4375 = vld [vmem:[%s4366 + $0x20] sm:$0xf]
  %v4376 = vld [vmem:[%s4366 + $0x24] sm:$0xf]
  %v4387 = vunpack.c.l.b16 %v4367
  %v4388 = vunpack.c.l.b16 %v4368
  %v4389 = vunpack.c.l.b16 %v4369
  %v4390 = vunpack.c.l.b16 %v4370
  %v4391 = vunpack.c.l.b16 %v4371
  %v4392 = vunpack.c.l.b16 %v4372
  %v4393 = vunpack.c.l.b16 %v4373
  %v4394 = vunpack.c.l.b16 %v4374
  %v4395 = vunpack.c.l.b16 %v4375
  %v4396 = vunpack.c.l.b16 %v4376
  %v4397 = vpack.c.b16 %v4388, %v4387
  %v4398 = vpack.c.b16 %v4390, %v4389
  %v4399 = vpack.c.b16 %v4392, %v4391
  %v4400 = vpack.c.b16 %v4394, %v4393
  %v4401 = vpack.c.b16 %v4396, %v4395
  %v4408 = vsel %vm4228, %v4365, 0
  %4410 = vmatprep.subr.bf16.mxu0 0
  %4411 = vmatpush1.bf16.msra.mxu0 %v4397
  %4412 = vmatprep.subr.bf16.mxu0 0
  %4413 = vmatpush1.bf16.msra.mxu0 %v4398
  %4414 = vmatprep.subr.bf16.mxu0 0
  %4415 = vmatpush1.bf16.msra.mxu0 %v4399
  %4416 = vmatprep.subr.bf16.mxu0 0
  %4417 = vmatpush1.bf16.msra.mxu0 %v4400
  %4418 = vmatprep.subr.bf16.mxu0 0
  %4419 = vmatpush1.bf16.msra.mxu0 %v4401
  %4420 = vmatprep.subr.bf16.mxu0 0
  %4421 = vmatpush1.bf16.msra.mxu0 0
  %4422 = vmatprep.subr.bf16.mxu0 0
  %4423 = vmatpush1.bf16.msra.mxu0 0
  %4424 = vmatprep.subr.bf16.mxu0 0
  %4425 = vmatpush1.bf16.msra.mxu0 0
  %4426 = vmatprep.subr.bf16.mxu0 0
  %4427 = vmatpush1.bf16.msra.mxu0 0
  %4428 = vmatprep.subr.bf16.mxu0 0
  %4429 = vmatpush1.bf16.msra.mxu0 0
  %4430 = vmatprep.subr.bf16.mxu0 0
  %4431 = vmatpush1.bf16.msra.mxu0 0
  %4432 = vmatprep.subr.bf16.mxu0 0
  %4433 = vmatpush1.bf16.msra.mxu0 0
  %4434 = vmatprep.subr.bf16.mxu0 0
  %4435 = vmatpush1.bf16.msra.mxu0 0
  %4436 = vmatprep.subr.bf16.mxu0 0
  %4437 = vmatpush1.bf16.msra.mxu0 0
  %4438 = vmatprep.subr.bf16.mxu0 0
  %4439 = vmatpush1.bf16.msra.mxu0 0
  %4440 = vmatprep.subr.bf16.mxu0 0
  %4441 = vmatpush1.bf16.msra.mxu0 0
  %4442 = vmatprep.mubr.bf16.mxu0 0
  %4443 = vmatmul.mubr.bf16.gmra.mrb[0].mxu0 %v4408
  %v4444 = vpop.f32.mrb[0].mxu0
  %v4445 = vadd.f32 0.0, %v4444
  %v4446 = vpop.f32.mrb[0].mxu0
  %v4447 = vpop.f32.mrb[0].mxu0
  %v4448 = vpop.f32.mrb[0].mxu0
  %4449 = vdwg.mxu0
  %v4450 = vadd.f32 %v4361, %v4445
  %v4451 = vmax.f32 %v4167, %v4168
  %v4452 = vadd.f32 %v4451, %v4183
  %v4453 = vmax.f32 %v4452, 0.0
  %v4454 = vpack.c.bf16 %v4453, %v4453
  %s4455 = scalar_lea.vmem %s5, 120
  %v4456 = vld [vmem:[%s4455] sm:$0xf]
  %v4457 = vld [vmem:[%s4455 + $0x4] sm:$0xf]
  %v4458 = vld [vmem:[%s4455 + $0x8] sm:$0xf]
  %v4459 = vld [vmem:[%s4455 + $0xc] sm:$0xf]
  %v4460 = vld [vmem:[%s4455 + $0x10] sm:$0xf]
  %v4461 = vld [vmem:[%s4455 + $0x14] sm:$0xf]
  %v4462 = vld [vmem:[%s4455 + $0x18] sm:$0xf]
  %v4463 = vld [vmem:[%s4455 + $0x1c] sm:$0xf]
  %v4464 = vld [vmem:[%s4455 + $0x20] sm:$0xf]
  %v4465 = vld [vmem:[%s4455 + $0x24] sm:$0xf]
  %v4476 = vunpack.c.l.b16 %v4456
  %v4477 = vunpack.c.l.b16 %v4457
  %v4478 = vunpack.c.l.b16 %v4458
  %v4479 = vunpack.c.l.b16 %v4459
  %v4480 = vunpack.c.l.b16 %v4460
  %v4481 = vunpack.c.l.b16 %v4461
  %v4482 = vunpack.c.l.b16 %v4462
  %v4483 = vunpack.c.l.b16 %v4463
  %v4484 = vunpack.c.l.b16 %v4464
  %v4485 = vunpack.c.l.b16 %v4465
  %v4486 = vpack.c.b16 %v4477, %v4476
  %v4487 = vpack.c.b16 %v4479, %v4478
  %v4488 = vpack.c.b16 %v4481, %v4480
  %v4489 = vpack.c.b16 %v4483, %v4482
  %v4490 = vpack.c.b16 %v4485, %v4484
  %v4497 = vsel %vm4228, %v4454, 0
  %4499 = vmatprep.subr.bf16.mxu0 0
  %4500 = vmatpush1.bf16.msra.mxu0 %v4486
  %4501 = vmatprep.subr.bf16.mxu0 0
  %4502 = vmatpush1.bf16.msra.mxu0 %v4487
  %4503 = vmatprep.subr.bf16.mxu0 0
  %4504 = vmatpush1.bf16.msra.mxu0 %v4488
  %4505 = vmatprep.subr.bf16.mxu0 0
  %4506 = vmatpush1.bf16.msra.mxu0 %v4489
  %4507 = vmatprep.subr.bf16.mxu0 0
  %4508 = vmatpush1.bf16.msra.mxu0 %v4490
  %4509 = vmatprep.subr.bf16.mxu0 0
  %4510 = vmatpush1.bf16.msra.mxu0 0
  %4511 = vmatprep.subr.bf16.mxu0 0
  %4512 = vmatpush1.bf16.msra.mxu0 0
  %4513 = vmatprep.subr.bf16.mxu0 0
  %4514 = vmatpush1.bf16.msra.mxu0 0
  %4515 = vmatprep.subr.bf16.mxu0 0
  %4516 = vmatpush1.bf16.msra.mxu0 0
  %4517 = vmatprep.subr.bf16.mxu0 0
  %4518 = vmatpush1.bf16.msra.mxu0 0
  %4519 = vmatprep.subr.bf16.mxu0 0
  %4520 = vmatpush1.bf16.msra.mxu0 0
  %4521 = vmatprep.subr.bf16.mxu0 0
  %4522 = vmatpush1.bf16.msra.mxu0 0
  %4523 = vmatprep.subr.bf16.mxu0 0
  %4524 = vmatpush1.bf16.msra.mxu0 0
  %4525 = vmatprep.subr.bf16.mxu0 0
  %4526 = vmatpush1.bf16.msra.mxu0 0
  %4527 = vmatprep.subr.bf16.mxu0 0
  %4528 = vmatpush1.bf16.msra.mxu0 0
  %4529 = vmatprep.subr.bf16.mxu0 0
  %4530 = vmatpush1.bf16.msra.mxu0 0
  %4531 = vmatprep.mubr.bf16.mxu0 0
  %4532 = vmatmul.mubr.bf16.gmra.mrb[0].mxu0 %v4497
  %v4533 = vpop.f32.mrb[0].mxu0
  %v4534 = vadd.f32 0.0, %v4533
  %v4535 = vpop.f32.mrb[0].mxu0
  %v4536 = vpop.f32.mrb[0].mxu0
  %v4537 = vpop.f32.mrb[0].mxu0
  %4538 = vdwg.mxu0
  %v4539 = vadd.f32 %v4450, %v4534
  %v4540 = vmax.f32 %v4539, 0.0
  %v4541 = vpack.c.bf16 %v4540, %v4540
  %v4542 = vld [vmem:[%s7] sm:$0xf]
  %v4543 = vld [vmem:[%s7 + $0x4] sm:$0xf]
  %v4544 = vld [vmem:[%s7 + $0x8] sm:$0xf]
  %v4545 = vld [vmem:[%s7 + $0xc] sm:$0xf]
  %v4546 = vld [vmem:[%s7 + $0x10] sm:$0xf]
  %v4547 = vld [vmem:[%s7 + $0x14] sm:$0xf]
  %v4548 = vld [vmem:[%s7 + $0x18] sm:$0x1]
  %v4549 = vld [vmem:[%s8] sm:$0x1]
  %v4551 = vlaneseq
  %v4552 = vshrl.u32 %v4551, 7
  %v4553 = vsub.s32 0, %v4552
  %v4554 = vrot.slane %v4549, %v4553
  %v4563 = vunpack.c.l.b16 %v4542
  %v4564 = vunpack.c.l.b16 %v4543
  %v4565 = vunpack.c.l.b16 %v4544
  %v4566 = vunpack.c.l.b16 %v4545
  %v4567 = vunpack.c.l.b16 %v4546
  %v4568 = vunpack.c.l.b16 %v4547
  %v4569 = vunpack.c.l.b16 %v4548
  %v4570 = vpack.c.b16 %v4564, %v4563
  %v4571 = vpack.c.b16 %v4566, %v4565
  %v4572 = vpack.c.b16 %v4568, %v4567
  %v4573 = vpack.c.b16 %v4569, %v4569
  %vm4577 = vcmask 408576
  %v4579 = vsel %vm4577, %v4541, 0
  %vm4581 = vcmask 1040384
  %v4583 = vsel %vm4581, %v4573, 0
  %4585 = vmatprep.subr.bf16.mxu0 0
  %4586 = vmatpush1.bf16.msra.mxu0 %v4570
  %4587 = vmatprep.subr.bf16.mxu0 0
  %4588 = vmatpush1.bf16.msra.mxu0 %v4571
  %4589 = vmatprep.subr.bf16.mxu0 0
  %4590 = vmatpush1.bf16.msra.mxu0 %v4572
  %4591 = vmatprep.subr.bf16.mxu0 0
  %4592 = vmatpush1.bf16.msra.mxu0 %v4583
  %4593 = vmatprep.subr.bf16.mxu0 0
  %4594 = vmatpush1.bf16.msra.mxu0 0
  %4595 = vmatprep.subr.bf16.mxu0 0
  %4596 = vmatpush1.bf16.msra.mxu0 0
  %4597 = vmatprep.subr.bf16.mxu0 0
  %4598 = vmatpush1.bf16.msra.mxu0 0
  %4599 = vmatprep.subr.bf16.mxu0 0
  %4600 = vmatpush1.bf16.msra.mxu0 0
  %4601 = vmatprep.subr.bf16.mxu0 0
  %4602 = vmatpush1.bf16.msra.mxu0 0
  %4603 = vmatprep.subr.bf16.mxu0 0
  %4604 = vmatpush1.bf16.msra.mxu0 0
  %4605 = vmatprep.subr.bf16.mxu0 0
  %4606 = vmatpush1.bf16.msra.mxu0 0
  %4607 = vmatprep.subr.bf16.mxu0 0
  %4608 = vmatpush1.bf16.msra.mxu0 0
  %4609 = vmatprep.subr.bf16.mxu0 0
  %4610 = vmatpush1.bf16.msra.mxu0 0
  %4611 = vmatprep.subr.bf16.mxu0 0
  %4612 = vmatpush1.bf16.msra.mxu0 0
  %4613 = vmatprep.subr.bf16.mxu0 0
  %4614 = vmatpush1.bf16.msra.mxu0 0
  %4615 = vmatprep.subr.bf16.mxu0 0
  %4616 = vmatpush1.bf16.msra.mxu0 0
  %4617 = vmatprep.mubr.bf16.mxu0 0
  %4618 = vmatmul.mubr.bf16.gmra.mrb[0].mxu0 %v4579
  %v4619 = vpop.f32.mrb[0].mxu0
  %v4620 = vadd.f32 %v4554, %v4619
  %v4621 = vpop.f32.mrb[0].mxu0
  %v4622 = vpop.f32.mrb[0].mxu0
  %v4623 = vpop.f32.mrb[0].mxu0
  %4624 = vdwg.mxu0
  %4625 = vmax.xlane.f32.xlu0 %v4620
  %v4626 = vpop.xlane.xlu0 %4625
  %v4627 = vsub.f32 %v4620, %v4626
  %v4628 = vmul.f32 %v4627, 1.442695
  %v4629 = vpow.pop %v4628
  %4630 = vadd.xlane.f32.xlu0 %v4629
  %v4631 = vpop.xlane.xlu0 %4630
  %v4632 = vlog2.pop %v4631
  %v4633 = vmul.f32 %v4632, 0.6931472
  %v4634 = vsub.f32 %v4627, %v4633
  %4635 = vst [vmem:[%s9] sm:$0xff] %v4634
  // Predicated region
  $region38: #{_lambda_.1} parent=0 // pred_check
    _
  $region39: #{_lambda_.1} parent=0 // pred_check_branch
    %4637 = sbr.rel (0) target = $region41
  $region40: #{_lambda_.1} parent=0 // pred_region
    _
  $region41: #{_lambda_.1} parent=0 // pred_fallthru
    _
  // Predicated region
  $region42: #{_lambda_.1} parent=0 // pred_check
    _
  $region43: #{_lambda_.1} parent=0 // pred_check_branch
    %4639 = sbr.rel (0) target = $region45
  $region44: #{_lambda_.1} parent=0 // pred_region
    _
  $region45: #{_lambda_.1} parent=0 // pred_fallthru
    _

</llo_original>
